<compile_context>
chip_gen: v6e
topology: v6e:2x2x1
jax: 0.10.0
libtpu: 0.0.40
codegen_flags: <defaults>
</compile_context>

<pallas_src>
import functools

import jax
import jax.numpy as jnp
from jax.experimental import pallas as pl
from jax.experimental.pallas import tpu as pltpu


# ---------------------------------------------------------------------------
# One-time probe: pin down pltpu.roll's rotate direction (jnp.roll-compatible
# on current jax, but cheap to verify; 0 -> slice+concat fallback).
# ---------------------------------------------------------------------------
def _roll_probe_kernel(x_ref, o_ref):
    o_ref[...] = pltpu.roll(x_ref[...], 1, 1)


@functools.lru_cache(maxsize=None)
def _pltpu_roll_sign():
    try:
        x = jnp.tile(jnp.arange(128, dtype=jnp.float32), (8, 1))
        y = pl.pallas_call(
            _roll_probe_kernel,
            out_shape=jax.ShapeDtypeStruct((8, 128), jnp.float32))(x)
        v = int(jax.device_get(y)[0, 1])
    except Exception:
        return 0
    if v == 0:      # roll(x, 1)[1] == x[0]  ->  jnp.roll convention
        return 1
    if v == 2:      # roll(x, 1)[1] == x[2]  ->  opposite convention
        return -1
    return 0


# ---------------------------------------------------------------------------
# Kernel
# ---------------------------------------------------------------------------
def chambon_kernel(x_ref, w2k_ref, b2_ref, w3k_ref, b3_ref,
                   mask2_ref, mask3_ref, sel2_ref, sel3_ref, out_ref,
                   *, K, P, M, Bb, T, roll_sign, mxu_dtype):
    f32 = jnp.float32
    T2 = T // M

    def lroll(v, shift):
        # jnp.roll semantics along the lane axis; hot path = XLU rotate.
        n = v.shape[-1]
        s = shift % n
        if s == 0:
            return v
        if roll_sign == 0:   # conservative fallback (probe inconclusive)
            return jnp.concatenate([v[:, n - s:], v[:, :n - s]], axis=-1)
        return pltpu.roll(v, (roll_sign * shift) % n, axis=1)

    def pool_downsample(z, seg_in, sel_ref):
        # Stride-m downsample after the shift-max.  The full selector is
        # block-diagonal (I_Bb (x) sel_seg), so do Bb small per-segment
        # matmuls instead of one (Bb*T, Bb*T/m) dense selection matmul.
        sel = sel_ref[...]
        zc = z.astype(mxu_dtype)
        parts = [jnp.dot(zc[:, b * seg_in:(b + 1) * seg_in], sel,
                         preferred_element_type=f32) for b in range(Bb)]
        return parts[0] if Bb == 1 else jnp.concatenate(parts, axis=-1)

    x = x_ref[...]                                          # (8, Bb*T) f32

    # ---- conv1 folded into conv2: taps built in registers from lane rolls
    # of the padded input slab (x channels + ones row carrying b1), masked at
    # batch-segment edges; ONE kron(w2, [W1|b1|0]) MXU matmul. ----
    taps2 = jnp.concatenate(
        [lroll(x, P - d) * mask2_ref[pl.ds(d, 1), :] for d in range(K)],
        axis=0)                                             # (8K, Bb*T)
    ch2 = jnp.dot(w2k_ref[...], taps2.astype(mxu_dtype),
                  preferred_element_type=f32) + b2_ref[...]
    ch2 = jnp.maximum(ch2, 0.0)                             # (8C, Bb*T)

    # ---- maxpool2: (m-1) lane-roll maxes + block-diag downsample ----
    z2 = ch2
    for j in range(1, M):
        z2 = jnp.maximum(z2, lroll(ch2, -j))
    pool2 = pool_downsample(z2, T, sel2_ref)                # (8C, Bb*T2)

    # ---- conv3 'same': k lane-rolled taps of the pooled slab (32-row
    # aligned groups, in registers), ONE kron(w3', I_C) MXU matmul ----
    taps3 = jnp.concatenate(
        [lroll(pool2, P - d) * mask3_ref[pl.ds(d, 1), :] for d in range(K)],
        axis=0)                                             # (8KC, Bb*T2)
    ch3 = jnp.dot(w3k_ref[...], taps3.astype(mxu_dtype),
                  preferred_element_type=f32) + b3_ref[...]
    ch3 = jnp.maximum(ch3, 0.0)                             # (8C, Bb*T2)

    # ---- maxpool3 + single lane-dense output store ----
    z3 = ch3
    for j in range(1, M):
        z3 = jnp.maximum(z3, lroll(ch3, -j))
    out_ref[...] = pool_downsample(z3, T2, sel3_ref).astype(out_ref.dtype)


# ---------------------------------------------------------------------------
# Wrapper
# ---------------------------------------------------------------------------
def chambon_forward(x, params, *, k, m, block_b=None, mxu_dtype=jnp.bfloat16):
    """x: (B, C, T) float32.  Returns (B, 8 * C * T // m**2) float32."""
    B, C, T = x.shape
    assert (k - 1) % 2 == 0, "k must be odd"
    assert T % (m * m) == 0, "T must be divisible by m**2"
    assert T >= k * m, "T must be at least k*m"
    P = (k - 1) // 2
    T2, Tf = T // m, T // (m * m)
    f32 = jnp.float32

    # Batch block: smallest divisor of B whose lane extents are multiples of
    # 128 (lane-dense output stores), which also maximizes the grid length
    # (v7x: keeps both TensorCores busy).  Falls back to a single full block.
    if block_b is None:
        divs = [d for d in range(1, B + 1) if B % d == 0]
        ok = [d for d in divs if (d * Tf) % 128 == 0]
        block_b = ok[0] if ok else B
    Bb = block_b
    assert B % Bb == 0, "batch must be divisible by the batch block"
    L, L2, Lf = Bb * T, Bb * T2, Bb * Tf
    if B // Bb > 1:
        assert L % 128 == 0 and Lf % 128 == 0, (
            "with grid > 1 the lane extents must be multiples of 128")

    w1, b1, w2, b2, w3, b3 = params
    W1 = w1.reshape(C, C).astype(f32)
    w2r = w2.reshape(8, k).astype(f32)
    w3r = w3.reshape(8, 8, k).astype(f32)

    # ---- constants (computed once; MXU operands stored in mxu_dtype) ----
    # conv1 folded into conv2: per-tap input row group is
    #   [x (C rows) | ones (1 row, carries b1) | zero pad to 8 rows]
    RX = -(-(C + 1) // 8) * 8
    W1ext = jnp.concatenate(
        [W1, b1.reshape(C, 1).astype(f32),
         jnp.zeros((C, RX - C - 1), f32)], axis=1)                # (C, RX)
    w2k = jnp.kron(w2r, W1ext).astype(mxu_dtype)                  # (8C, k*RX)
    b2c = jnp.repeat(b2.astype(f32), C).reshape(8 * C, 1)

    w3p = jnp.transpose(w3r, (0, 2, 1)).reshape(8, 8 * k)         # (o,(d,i))
    w3k = jnp.kron(w3p, jnp.eye(C, dtype=f32)).astype(mxu_dtype)  # (8C, 8kC)
    b3c = jnp.repeat(b3.astype(f32), C).reshape(8 * C, 1)
    # NOTE: kron(., I_C) is block-diagonal; for large C fold C into the lane
    # axis (lanes = (b, c, t)) instead so the conv matmuls stay exact-size.

    # 'same'-padding edge masks (also kill cross-segment roll bleed)
    dd = jnp.arange(k)[:, None]
    t_in = (jnp.arange(L) % T)[None, :]
    mask2 = ((t_in + dd - P >= 0) & (t_in + dd - P < T)).astype(f32)   # (k,L)
    u_in = (jnp.arange(L2) % T2)[None, :]
    mask3 = ((u_in + dd - P >= 0) & (u_in + dd - P < T2)).astype(f32)  # (k,L2)

    # per-segment pooling selectors: (T, T2) and (T2, Tf), independent of Bb
    def seg_sel(n_in, n_out):
        r = jnp.arange(n_in)[:, None]
        c = jnp.arange(n_out)[None, :]
        return (r == c * m).astype(mxu_dtype)
    sel2 = seg_sel(T, T2)
    sel3 = seg_sel(T2, Tf)

    # input slab: rows = (x channels, ones, zero pad), lanes = (b, t)
    x_rows = jnp.transpose(x.astype(f32), (1, 0, 2)).reshape(C, B * T)
    x_slab = jnp.concatenate(
        [x_rows, jnp.ones((1, B * T), f32),
         jnp.zeros((RX - C - 1, B * T), f32)], axis=0)            # (RX, B*T)

    kernel = functools.partial(
        chambon_kernel, K=k, P=P, M=m, Bb=Bb, T=T,
        roll_sign=_pltpu_roll_sign(), mxu_dtype=mxu_dtype)
    const = lambda i: (0, 0)
    grid = (B // Bb,)

    mac = (8 * C) * ((k * RX) * L + (8 * k * C) * L2
                     + Bb * (T * T2 + T2 * Tf))
    const_bytes = sum(int(a.size) * a.dtype.itemsize
                      for a in (w2k, b2c, w3k, b3c, mask2, mask3, sel2, sel3))
    cost = pl.CostEstimate(
        flops=2 * mac * grid[0], transcendentals=0,
        bytes_accessed=int(x_slab.size) * 4 + 8 * C * B * Tf * 4 + const_bytes)

    out_slab = pl.pallas_call(
        kernel,
        out_shape=jax.ShapeDtypeStruct((8 * C, B * Tf), f32),
        grid=grid,
        in_specs=[
            pl.BlockSpec((RX, L), lambda i: (0, i)),   # input slab (per block)
            pl.BlockSpec(w2k.shape, const),            # kron(conv2 w, [W1|b1])
            pl.BlockSpec(b2c.shape, const),            # conv2 bias (rows)
            pl.BlockSpec(w3k.shape, const),            # kron(conv3 w', I_C)
            pl.BlockSpec(b3c.shape, const),            # conv3 bias (rows)
            pl.BlockSpec(mask2.shape, const),          # conv2 tap edge masks
            pl.BlockSpec(mask3.shape, const),          # conv3 tap edge masks
            pl.BlockSpec(sel2.shape, const),           # pool2 segment selector
            pl.BlockSpec(sel3.shape, const),           # pool3 segment selector
        ],
        out_specs=pl.BlockSpec((8 * C, Lf), lambda i: (0, i)),
        compiler_params=pltpu.CompilerParams(
            dimension_semantics=("parallel",),
            # actual per-step use is well under 1 MiB; 32 MiB fits every
            # generation's scoped/physical VMEM (incl. v7x's 64 MiB).
            vmem_limit_bytes=32 * 1024 * 1024),
        cost_estimate=cost,
    )(x_slab, w2k, b2c, w3k, b3c, mask2, mask3, sel2, sel3)

    # rows are (o, c), lanes are (b, tf)  ->  torch (B, 8, C, Tf).view(B, -1)
    return (out_slab.reshape(8, C, B, Tf)
            .transpose(2, 0, 1, 3).reshape(B, 8 * C * Tf))


# ---------------------------------------------------------------------------
# Pure-JAX reference mirroring the PyTorch forward exactly (f32 everywhere)
# ---------------------------------------------------------------------------
def chambon_reference(x, params, *, k, m):
    w1, b1, w2, b2, w3, b3 = params
    B, C, T = x.shape
    p = (k - 1) // 2
    w1r = w1.reshape(C, C)
    w2r = w2.reshape(8, k)
    w3r = w3.reshape(8, 8, k)

    y1 = jnp.einsum('oc,bct->bot', w1r, x) + b1.reshape(1, C, 1)      # (B,C,T)

    y1p = jnp.pad(y1, ((0, 0), (0, 0), (p, p)))
    y2 = jnp.stack([sum(w2r[o, d] * y1p[:, :, d:d + T] for d in range(k))
                    + b2[o] for o in range(8)], axis=1)               # (B,8,C,T)
    y2 = jnp.maximum(y2, 0.0)
    y2 = y2.reshape(B, 8, C, T // m, m).max(-1)
    T2 = T // m

    y2p = jnp.pad(y2, ((0, 0), (0, 0), (0, 0), (p, p)))
    y3 = jnp.stack([sum(w3r[o, i, d] * y2p[:, i, :, d:d + T2]
                        for i in range(8) for d in range(k))
                    + b3[o] for o in range(8)], axis=1)               # (B,8,C,T2)
    y3 = jnp.maximum(y3, 0.0)
    y3 = y3.reshape(B, 8, C, T2 // m, m).max(-1)
    return y3.reshape(B, -1)


if __name__ == "__main__":
    # ChambonConfig: C=4 channels, k=5 (odd), m=2; T=64 (>= k*m, % m**2 == 0).
    # B=16 so the default batch block (8) gives lane-dense 128-lane output
    # blocks and a 2-step parallel grid.
    B, C, T, K, M = 16, 4, 64, 5, 2

    key = jax.random.PRNGKey(0)
    ks = jax.random.split(key, 7)
    w1 = jax.random.normal(ks[0], (C, 1, C, 1), jnp.float32) * 0.3   # conv1.w
    b1 = jax.random.normal(ks[1], (C,), jnp.float32) * 0.1           # conv1.b
    w2 = jax.random.normal(ks[2], (8, 1, 1, K), jnp.float32) * 0.3   # conv2.w
    b2 = jax.random.normal(ks[3], (8,), jnp.float32) * 0.1           # conv2.b
    w3 = jax.random.normal(ks[4], (8, 8, 1, K), jnp.float32) * 0.2   # conv3.w
    b3 = jax.random.normal(ks[5], (8,), jnp.float32) * 0.1           # conv3.b
    x = jax.random.normal(ks[6], (B, C, T), jnp.float32)
    params = (w1, b1, w2, b2, w3, b3)

    ref = chambon_reference(x, params, k=K, m=M)

    # f32 MXU path: tight check.  bf16 MXU path (production default): looser
    # tolerance covering bf16 operand rounding through two conv stages.
    for mxu_dtype, tol in ((jnp.float32, 1e-3), (jnp.bfloat16, 5e-2)):
        out = chambon_forward(x, params, k=K, m=M, mxu_dtype=mxu_dtype)
        out = jax.block_until_ready(out)
        assert out.shape == (B, 8 * C * T // (M * M)), out.shape
        assert jnp.allclose(out, ref, rtol=tol, atol=tol), (
            str(mxu_dtype), float(jnp.max(jnp.abs(out - ref))))

    print("KERNEL_OK")
</pallas_src>

<mosaic_0001>
module attributes {stable_mosaic.version = 11 : i64} {
  func.func @_roll_probe_kernel(%arg0: memref<8x128xf32, #tpu.memory_space<vmem>>, %arg1: memref<8x128xf32, #tpu.memory_space<vmem>>) attributes {dimension_semantics = [], scalar_prefetch = 0 : i64, scratch_operands = 0 : i64, tpu.core_type = #tpu.core_type<tc>} {
    %c0 = arith.constant 0 : index
    %c0_0 = arith.constant 0 : index
    %0 = vector.load %arg0[%c0, %c0_0] : memref<8x128xf32, #tpu.memory_space<vmem>>, vector<8x128xf32>
    %c1_i32 = arith.constant 1 : i32
    %1 = tpu.dynamic_rotate %0 by %c1_i32 dim 1 : vector<8x128xf32>, i32 -> vector<8x128xf32>
    %c0_1 = arith.constant 0 : index
    %c0_2 = arith.constant 0 : index
    %2 = vector.load %arg1[%c0_1, %c0_2] : memref<8x128xf32, #tpu.memory_space<vmem>>, vector<8x128xf32>
    tpu.vector_store %arg1[%c0_1, %c0_2], %1 {strides = array<i32>} : memref<8x128xf32, #tpu.memory_space<vmem>>, vector<8x128xf32>,
    return
  }
}

module attributes {stable_mosaic.version = 11 : i64} {
  func.func @chambon_kernel(%arg0: i32, %arg1: memref<8x512xf32, #tpu.memory_space<vmem>>, %arg2: memref<32x40xf32, #tpu.memory_space<vmem>>, %arg3: memref<32x1xf32, #tpu.memory_space<vmem>>, %arg4: memref<32x160xf32, #tpu.memory_space<vmem>>, %arg5: memref<32x1xf32, #tpu.memory_space<vmem>>, %arg6: memref<5x512xf32, #tpu.memory_space<vmem>>, %arg7: memref<5x256xf32, #tpu.memory_space<vmem>>, %arg8: memref<64x32xf32, #tpu.memory_space<vmem>>, %arg9: memref<32x16xf32, #tpu.memory_space<vmem>>, %arg10: memref<32x128xf32, #tpu.memory_space<vmem>>) attributes {dimension_semantics = [#tpu.dimension_semantics<parallel>], iteration_bounds = array<i64: 2>, scalar_prefetch = 0 : i64, scratch_operands = 0 : i64, tpu.core_type = #tpu.core_type<tc>, window_params = [{transform_indices = @transform_0, window_bounds = array<i64: 8, 512>}, {pipeline_mode = #tpu.pipeline_mode<synchronous>, transform_indices = @transform_1, window_bounds = array<i64: 32, 40>}, {pipeline_mode = #tpu.pipeline_mode<synchronous>, transform_indices = @transform_2, window_bounds = array<i64: 32, 1>}, {pipeline_mode = #tpu.pipeline_mode<synchronous>, transform_indices = @transform_3, window_bounds = array<i64: 32, 160>}, {pipeline_mode = #tpu.pipeline_mode<synchronous>, transform_indices = @transform_4, window_bounds = array<i64: 32, 1>}, {pipeline_mode = #tpu.pipeline_mode<synchronous>, transform_indices = @transform_5, window_bounds = array<i64: 5, 512>}, {pipeline_mode = #tpu.pipeline_mode<synchronous>, transform_indices = @transform_6, window_bounds = array<i64: 5, 256>}, {pipeline_mode = #tpu.pipeline_mode<synchronous>, transform_indices = @transform_7, window_bounds = array<i64: 64, 32>}, {pipeline_mode = #tpu.pipeline_mode<synchronous>, transform_indices = @transform_8, window_bounds = array<i64: 32, 16>}, {transform_indices = @transform_9, window_bounds = array<i64: 32, 128>}]} {
    %c0 = arith.constant 0 : index
    %c0_0 = arith.constant 0 : index
    %0 = vector.load %arg1[%c0, %c0_0] : memref<8x512xf32, #tpu.memory_space<vmem>>, vector<8x512xf32>
    %1 = vector.extract_strided_slice %0 {offsets = [0, 510], sizes = [8, 2], strides = [1, 1]} : vector<8x512xf32> to vector<8x2xf32>
    %2 = vector.extract_strided_slice %0 {offsets = [0, 0], sizes = [8, 510], strides = [1, 1]} : vector<8x512xf32> to vector<8x510xf32>
    %3 = tpu.concatenate %1, %2 in 1 : vector<8x2xf32>, vector<8x510xf32> -> vector<8x512xf32>
    %c0_1 = arith.constant 0 : index
    %c0_2 = arith.constant 0 : index
    %4 = vector.load %arg6[%c0_1, %c0_2] : memref<5x512xf32, #tpu.memory_space<vmem>>, vector<1x512xf32>
    %5 = vector.broadcast %4 : vector<1x512xf32> to vector<8x512xf32>
    %6 = arith.mulf %3, %5 : vector<8x512xf32>
    %7 = vector.extract_strided_slice %0 {offsets = [0, 511], sizes = [8, 1], strides = [1, 1]} : vector<8x512xf32> to vector<8x1xf32>
    %8 = vector.extract_strided_slice %0 {offsets = [0, 0], sizes = [8, 511], strides = [1, 1]} : vector<8x512xf32> to vector<8x511xf32>
    %9 = tpu.concatenate %7, %8 in 1 : vector<8x1xf32>, vector<8x511xf32> -> vector<8x512xf32>
    %c1 = arith.constant 1 : index
    %c0_3 = arith.constant 0 : index
    %10 = vector.load %arg6[%c1, %c0_3] : memref<5x512xf32, #tpu.memory_space<vmem>>, vector<1x512xf32>
    %11 = vector.broadcast %10 : vector<1x512xf32> to vector<8x512xf32>
    %12 = arith.mulf %9, %11 : vector<8x512xf32>
    %c2 = arith.constant 2 : index
    %c0_4 = arith.constant 0 : index
    %13 = vector.load %arg6[%c2, %c0_4] : memref<5x512xf32, #tpu.memory_space<vmem>>, vector<1x512xf32>
    %14 = vector.broadcast %13 : vector<1x512xf32> to vector<8x512xf32>
    %15 = arith.mulf %0, %14 : vector<8x512xf32>
    %16 = vector.extract_strided_slice %0 {offsets = [0, 1], sizes = [8, 511], strides = [1, 1]} : vector<8x512xf32> to vector<8x511xf32>
    %17 = vector.extract_strided_slice %0 {offsets = [0, 0], sizes = [8, 1], strides = [1, 1]} : vector<8x512xf32> to vector<8x1xf32>
    %18 = tpu.concatenate %16, %17 in 1 : vector<8x511xf32>, vector<8x1xf32> -> vector<8x512xf32>
    %c3 = arith.constant 3 : index
    %c0_5 = arith.constant 0 : index
    %19 = vector.load %arg6[%c3, %c0_5] : memref<5x512xf32, #tpu.memory_space<vmem>>, vector<1x512xf32>
    %20 = vector.broadcast %19 : vector<1x512xf32> to vector<8x512xf32>
    %21 = arith.mulf %18, %20 : vector<8x512xf32>
    %22 = vector.extract_strided_slice %0 {offsets = [0, 2], sizes = [8, 510], strides = [1, 1]} : vector<8x512xf32> to vector<8x510xf32>
    %23 = vector.extract_strided_slice %0 {offsets = [0, 0], sizes = [8, 2], strides = [1, 1]} : vector<8x512xf32> to vector<8x2xf32>
    %24 = tpu.concatenate %22, %23 in 1 : vector<8x510xf32>, vector<8x2xf32> -> vector<8x512xf32>
    %c4 = arith.constant 4 : index
    %c0_6 = arith.constant 0 : index
    %25 = vector.load %arg6[%c4, %c0_6] : memref<5x512xf32, #tpu.memory_space<vmem>>, vector<1x512xf32>
    %26 = vector.broadcast %25 : vector<1x512xf32> to vector<8x512xf32>
    %27 = arith.mulf %24, %26 : vector<8x512xf32>
    %28 = tpu.concatenate %6, %12, %15, %21, %27 in 0 : vector<8x512xf32>, vector<8x512xf32>, vector<8x512xf32>, vector<8x512xf32>, vector<8x512xf32> -> vector<40x512xf32>
    %c0_7 = arith.constant 0 : index
    %c0_8 = arith.constant 0 : index
    %29 = vector.load %arg2[%c0_7, %c0_8] : memref<32x40xf32, #tpu.memory_space<vmem>>, vector<32x40xf32>
    %cst = arith.constant dense<0.000000e+00> : vector<32x512xf32>
    %30 = tpu.matmul %29, %28, %cst {dimension_numbers = #tpu.dot_dimension_numbers<[1], [0], [0], [1], [0, 0, 1, 1], [], []>} : vector<32x40xf32>, vector<40x512xf32>, vector<32x512xf32> -> vector<32x512xf32>
    %c0_9 = arith.constant 0 : index
    %c0_10 = arith.constant 0 : index
    %31 = vector.load %arg3[%c0_9, %c0_10] : memref<32x1xf32, #tpu.memory_space<vmem>>, vector<32x1xf32>
    %32 = vector.broadcast %31 : vector<32x1xf32> to vector<32x512xf32>
    %33 = arith.addf %30, %32 : vector<32x512xf32>
    %cst_11 = arith.constant 0.000000e+00 : f32
    %34 = vector.broadcast %cst_11 : f32 to vector<32x512xf32>
    %35 = arith.maximumf %33, %34 : vector<32x512xf32>
    %36 = vector.extract_strided_slice %35 {offsets = [0, 1], sizes = [32, 511], strides = [1, 1]} : vector<32x512xf32> to vector<32x511xf32>
    %37 = vector.extract_strided_slice %35 {offsets = [0, 0], sizes = [32, 1], strides = [1, 1]} : vector<32x512xf32> to vector<32x1xf32>
    %38 = tpu.concatenate %36, %37 in 1 : vector<32x511xf32>, vector<32x1xf32> -> vector<32x512xf32>
    %39 = arith.maximumf %35, %38 : vector<32x512xf32>
    %c0_12 = arith.constant 0 : index
    %c0_13 = arith.constant 0 : index
    %40 = vector.load %arg8[%c0_12, %c0_13] : memref<64x32xf32, #tpu.memory_space<vmem>>, vector<64x32xf32>
    %41 = vector.extract_strided_slice %39 {offsets = [0, 0], sizes = [32, 64], strides = [1, 1]} : vector<32x512xf32> to vector<32x64xf32>
    %cst_14 = arith.constant dense<0.000000e+00> : vector<32x32xf32>
    %42 = tpu.matmul %41, %40, %cst_14 {dimension_numbers = #tpu.dot_dimension_numbers<[1], [0], [0], [1], [0, 0, 1, 1], [], []>} : vector<32x64xf32>, vector<64x32xf32>, vector<32x32xf32> -> vector<32x32xf32>
    %43 = vector.extract_strided_slice %39 {offsets = [0, 64], sizes = [32, 64], strides = [1, 1]} : vector<32x512xf32> to vector<32x64xf32>
    %cst_15 = arith.constant dense<0.000000e+00> : vector<32x32xf32>
    %44 = tpu.matmul %43, %40, %cst_15 {dimension_numbers = #tpu.dot_dimension_numbers<[1], [0], [0], [1], [0, 0, 1, 1], [], []>} : vector<32x64xf32>, vector<64x32xf32>, vector<32x32xf32> -> vector<32x32xf32>
    %45 = vector.extract_strided_slice %39 {offsets = [0, 128], sizes = [32, 64], strides = [1, 1]} : vector<32x512xf32> to vector<32x64xf32>
    %cst_16 = arith.constant dense<0.000000e+00> : vector<32x32xf32>
    %46 = tpu.matmul %45, %40, %cst_16 {dimension_numbers = #tpu.dot_dimension_numbers<[1], [0], [0], [1], [0, 0, 1, 1], [], []>} : vector<32x64xf32>, vector<64x32xf32>, vector<32x32xf32> -> vector<32x32xf32>
    %47 = vector.extract_strided_slice %39 {offsets = [0, 192], sizes = [32, 64], strides = [1, 1]} : vector<32x512xf32> to vector<32x64xf32>
    %cst_17 = arith.constant dense<0.000000e+00> : vector<32x32xf32>
    %48 = tpu.matmul %47, %40, %cst_17 {dimension_numbers = #tpu.dot_dimension_numbers<[1], [0], [0], [1], [0, 0, 1, 1], [], []>} : vector<32x64xf32>, vector<64x32xf32>, vector<32x32xf32> -> vector<32x32xf32>
    %49 = vector.extract_strided_slice %39 {offsets = [0, 256], sizes = [32, 64], strides = [1, 1]} : vector<32x512xf32> to vector<32x64xf32>
    %cst_18 = arith.constant dense<0.000000e+00> : vector<32x32xf32>
    %50 = tpu.matmul %49, %40, %cst_18 {dimension_numbers = #tpu.dot_dimension_numbers<[1], [0], [0], [1], [0, 0, 1, 1], [], []>} : vector<32x64xf32>, vector<64x32xf32>, vector<32x32xf32> -> vector<32x32xf32>
    %51 = vector.extract_strided_slice %39 {offsets = [0, 320], sizes = [32, 64], strides = [1, 1]} : vector<32x512xf32> to vector<32x64xf32>
    %cst_19 = arith.constant dense<0.000000e+00> : vector<32x32xf32>
    %52 = tpu.matmul %51, %40, %cst_19 {dimension_numbers = #tpu.dot_dimension_numbers<[1], [0], [0], [1], [0, 0, 1, 1], [], []>} : vector<32x64xf32>, vector<64x32xf32>, vector<32x32xf32> -> vector<32x32xf32>
    %53 = vector.extract_strided_slice %39 {offsets = [0, 384], sizes = [32, 64], strides = [1, 1]} : vector<32x512xf32> to vector<32x64xf32>
    %cst_20 = arith.constant dense<0.000000e+00> : vector<32x32xf32>
    %54 = tpu.matmul %53, %40, %cst_20 {dimension_numbers = #tpu.dot_dimension_numbers<[1], [0], [0], [1], [0, 0, 1, 1], [], []>} : vector<32x64xf32>, vector<64x32xf32>, vector<32x32xf32> -> vector<32x32xf32>
    %55 = vector.extract_strided_slice %39 {offsets = [0, 448], sizes = [32, 64], strides = [1, 1]} : vector<32x512xf32> to vector<32x64xf32>
    %cst_21 = arith.constant dense<0.000000e+00> : vector<32x32xf32>
    %56 = tpu.matmul %55, %40, %cst_21 {dimension_numbers = #tpu.dot_dimension_numbers<[1], [0], [0], [1], [0, 0, 1, 1], [], []>} : vector<32x64xf32>, vector<64x32xf32>, vector<32x32xf32> -> vector<32x32xf32>
    %57 = tpu.concatenate %42, %44, %46, %48, %50, %52, %54, %56 in 1 : vector<32x32xf32>, vector<32x32xf32>, vector<32x32xf32>, vector<32x32xf32>, vector<32x32xf32>, vector<32x32xf32>, vector<32x32xf32>, vector<32x32xf32> -> vector<32x256xf32>
    %58 = vector.extract_strided_slice %57 {offsets = [0, 254], sizes = [32, 2], strides = [1, 1]} : vector<32x256xf32> to vector<32x2xf32>
    %59 = vector.extract_strided_slice %57 {offsets = [0, 0], sizes = [32, 254], strides = [1, 1]} : vector<32x256xf32> to vector<32x254xf32>
    %60 = tpu.concatenate %58, %59 in 1 : vector<32x2xf32>, vector<32x254xf32> -> vector<32x256xf32>
    %c0_22 = arith.constant 0 : index
    %c0_23 = arith.constant 0 : index
    %61 = vector.load %arg7[%c0_22, %c0_23] : memref<5x256xf32, #tpu.memory_space<vmem>>, vector<1x256xf32>
    %62 = vector.broadcast %61 : vector<1x256xf32> to vector<32x256xf32>
    %63 = arith.mulf %60, %62 : vector<32x256xf32>
    %64 = vector.extract_strided_slice %57 {offsets = [0, 255], sizes = [32, 1], strides = [1, 1]} : vector<32x256xf32> to vector<32x1xf32>
    %65 = vector.extract_strided_slice %57 {offsets = [0, 0], sizes = [32, 255], strides = [1, 1]} : vector<32x256xf32> to vector<32x255xf32>
    %66 = tpu.concatenate %64, %65 in 1 : vector<32x1xf32>, vector<32x255xf32> -> vector<32x256xf32>
    %c1_24 = arith.constant 1 : index
    %c0_25 = arith.constant 0 : index
    %67 = vector.load %arg7[%c1_24, %c0_25] : memref<5x256xf32, #tpu.memory_space<vmem>>, vector<1x256xf32>
    %68 = vector.broadcast %67 : vector<1x256xf32> to vector<32x256xf32>
    %69 = arith.mulf %66, %68 : vector<32x256xf32>
    %c2_26 = arith.constant 2 : index
    %c0_27 = arith.constant 0 : index
    %70 = vector.load %arg7[%c2_26, %c0_27] : memref<5x256xf32, #tpu.memory_space<vmem>>, vector<1x256xf32>
    %71 = vector.broadcast %70 : vector<1x256xf32> to vector<32x256xf32>
    %72 = arith.mulf %57, %71 : vector<32x256xf32>
    %73 = vector.extract_strided_slice %57 {offsets = [0, 1], sizes = [32, 255], strides = [1, 1]} : vector<32x256xf32> to vector<32x255xf32>
    %74 = vector.extract_strided_slice %57 {offsets = [0, 0], sizes = [32, 1], strides = [1, 1]} : vector<32x256xf32> to vector<32x1xf32>
    %75 = tpu.concatenate %73, %74 in 1 : vector<32x255xf32>, vector<32x1xf32> -> vector<32x256xf32>
    %c3_28 = arith.constant 3 : index
    %c0_29 = arith.constant 0 : index
    %76 = vector.load %arg7[%c3_28, %c0_29] : memref<5x256xf32, #tpu.memory_space<vmem>>, vector<1x256xf32>
    %77 = vector.broadcast %76 : vector<1x256xf32> to vector<32x256xf32>
    %78 = arith.mulf %75, %77 : vector<32x256xf32>
    %79 = vector.extract_strided_slice %57 {offsets = [0, 2], sizes = [32, 254], strides = [1, 1]} : vector<32x256xf32> to vector<32x254xf32>
    %80 = vector.extract_strided_slice %57 {offsets = [0, 0], sizes = [32, 2], strides = [1, 1]} : vector<32x256xf32> to vector<32x2xf32>
    %81 = tpu.concatenate %79, %80 in 1 : vector<32x254xf32>, vector<32x2xf32> -> vector<32x256xf32>
    %c4_30 = arith.constant 4 : index
    %c0_31 = arith.constant 0 : index
    %82 = vector.load %arg7[%c4_30, %c0_31] : memref<5x256xf32, #tpu.memory_space<vmem>>, vector<1x256xf32>
    %83 = vector.broadcast %82 : vector<1x256xf32> to vector<32x256xf32>
    %84 = arith.mulf %81, %83 : vector<32x256xf32>
    %85 = tpu.concatenate %63, %69, %72, %78, %84 in 0 : vector<32x256xf32>, vector<32x256xf32>, vector<32x256xf32>, vector<32x256xf32>, vector<32x256xf32> -> vector<160x256xf32>
    %c0_32 = arith.constant 0 : index
    %c0_33 = arith.constant 0 : index
    %86 = vector.load %arg4[%c0_32, %c0_33] : memref<32x160xf32, #tpu.memory_space<vmem>>, vector<32x160xf32>
    %cst_34 = arith.constant dense<0.000000e+00> : vector<32x256xf32>
    %87 = tpu.matmul %86, %85, %cst_34 {dimension_numbers = #tpu.dot_dimension_numbers<[1], [0], [0], [1], [0, 0, 1, 1], [], []>} : vector<32x160xf32>, vector<160x256xf32>, vector<32x256xf32> -> vector<32x256xf32>
    %c0_35 = arith.constant 0 : index
    %c0_36 = arith.constant 0 : index
    %88 = vector.load %arg5[%c0_35, %c0_36] : memref<32x1xf32, #tpu.memory_space<vmem>>, vector<32x1xf32>
    %89 = vector.broadcast %88 : vector<32x1xf32> to vector<32x256xf32>
    %90 = arith.addf %87, %89 : vector<32x256xf32>
    %cst_37 = arith.constant 0.000000e+00 : f32
    %91 = vector.broadcast %cst_37 : f32 to vector<32x256xf32>
    %92 = arith.maximumf %90, %91 : vector<32x256xf32>
    %93 = vector.extract_strided_slice %92 {offsets = [0, 1], sizes = [32, 255], strides = [1, 1]} : vector<32x256xf32> to vector<32x255xf32>
    %94 = vector.extract_strided_slice %92 {offsets = [0, 0], sizes = [32, 1], strides = [1, 1]} : vector<32x256xf32> to vector<32x1xf32>
    %95 = tpu.concatenate %93, %94 in 1 : vector<32x255xf32>, vector<32x1xf32> -> vector<32x256xf32>
    %96 = arith.maximumf %92, %95 : vector<32x256xf32>
    %c0_38 = arith.constant 0 : index
    %c0_39 = arith.constant 0 : index
    %97 = vector.load %arg9[%c0_38, %c0_39] : memref<32x16xf32, #tpu.memory_space<vmem>>, vector<32x16xf32>
    %98 = vector.extract_strided_slice %96 {offsets = [0, 0], sizes = [32, 32], strides = [1, 1]} : vector<32x256xf32> to vector<32x32xf32>
    %cst_40 = arith.constant dense<0.000000e+00> : vector<32x16xf32>
    %99 = tpu.matmul %98, %97, %cst_40 {dimension_numbers = #tpu.dot_dimension_numbers<[1], [0], [0], [1], [0, 0, 1, 1], [], []>} : vector<32x32xf32>, vector<32x16xf32>, vector<32x16xf32> -> vector<32x16xf32>
    %100 = vector.extract_strided_slice %96 {offsets = [0, 32], sizes = [32, 32], strides = [1, 1]} : vector<32x256xf32> to vector<32x32xf32>
    %cst_41 = arith.constant dense<0.000000e+00> : vector<32x16xf32>
    %101 = tpu.matmul %100, %97, %cst_41 {dimension_numbers = #tpu.dot_dimension_numbers<[1], [0], [0], [1], [0, 0, 1, 1], [], []>} : vector<32x32xf32>, vector<32x16xf32>, vector<32x16xf32> -> vector<32x16xf32>
    %102 = vector.extract_strided_slice %96 {offsets = [0, 64], sizes = [32, 32], strides = [1, 1]} : vector<32x256xf32> to vector<32x32xf32>
    %cst_42 = arith.constant dense<0.000000e+00> : vector<32x16xf32>
    %103 = tpu.matmul %102, %97, %cst_42 {dimension_numbers = #tpu.dot_dimension_numbers<[1], [0], [0], [1], [0, 0, 1, 1], [], []>} : vector<32x32xf32>, vector<32x16xf32>, vector<32x16xf32> -> vector<32x16xf32>
    %104 = vector.extract_strided_slice %96 {offsets = [0, 96], sizes = [32, 32], strides = [1, 1]} : vector<32x256xf32> to vector<32x32xf32>
    %cst_43 = arith.constant dense<0.000000e+00> : vector<32x16xf32>
    %105 = tpu.matmul %104, %97, %cst_43 {dimension_numbers = #tpu.dot_dimension_numbers<[1], [0], [0], [1], [0, 0, 1, 1], [], []>} : vector<32x32xf32>, vector<32x16xf32>, vector<32x16xf32> -> vector<32x16xf32>
    %106 = vector.extract_strided_slice %96 {offsets = [0, 128], sizes = [32, 32], strides = [1, 1]} : vector<32x256xf32> to vector<32x32xf32>
    %cst_44 = arith.constant dense<0.000000e+00> : vector<32x16xf32>
    %107 = tpu.matmul %106, %97, %cst_44 {dimension_numbers = #tpu.dot_dimension_numbers<[1], [0], [0], [1], [0, 0, 1, 1], [], []>} : vector<32x32xf32>, vector<32x16xf32>, vector<32x16xf32> -> vector<32x16xf32>
    %108 = vector.extract_strided_slice %96 {offsets = [0, 160], sizes = [32, 32], strides = [1, 1]} : vector<32x256xf32> to vector<32x32xf32>
    %cst_45 = arith.constant dense<0.000000e+00> : vector<32x16xf32>
    %109 = tpu.matmul %108, %97, %cst_45 {dimension_numbers = #tpu.dot_dimension_numbers<[1], [0], [0], [1], [0, 0, 1, 1], [], []>} : vector<32x32xf32>, vector<32x16xf32>, vector<32x16xf32> -> vector<32x16xf32>
    %110 = vector.extract_strided_slice %96 {offsets = [0, 192], sizes = [32, 32], strides = [1, 1]} : vector<32x256xf32> to vector<32x32xf32>
    %cst_46 = arith.constant dense<0.000000e+00> : vector<32x16xf32>
    %111 = tpu.matmul %110, %97, %cst_46 {dimension_numbers = #tpu.dot_dimension_numbers<[1], [0], [0], [1], [0, 0, 1, 1], [], []>} : vector<32x32xf32>, vector<32x16xf32>, vector<32x16xf32> -> vector<32x16xf32>
    %112 = vector.extract_strided_slice %96 {offsets = [0, 224], sizes = [32, 32], strides = [1, 1]} : vector<32x256xf32> to vector<32x32xf32>
    %cst_47 = arith.constant dense<0.000000e+00> : vector<32x16xf32>
    %113 = tpu.matmul %112, %97, %cst_47 {dimension_numbers = #tpu.dot_dimension_numbers<[1], [0], [0], [1], [0, 0, 1, 1], [], []>} : vector<32x32xf32>, vector<32x16xf32>, vector<32x16xf32> -> vector<32x16xf32>
    %114 = tpu.concatenate %99, %101, %103, %105, %107, %109, %111, %113 in 1 : vector<32x16xf32>, vector<32x16xf32>, vector<32x16xf32>, vector<32x16xf32>, vector<32x16xf32>, vector<32x16xf32>, vector<32x16xf32>, vector<32x16xf32> -> vector<32x128xf32>
    %c0_48 = arith.constant 0 : index
    %c0_49 = arith.constant 0 : index
    %115 = vector.load %arg10[%c0_48, %c0_49] : memref<32x128xf32, #tpu.memory_space<vmem>>, vector<32x128xf32>
    tpu.vector_store %arg10[%c0_48, %c0_49], %114 {strides = array<i32>} : memref<32x128xf32, #tpu.memory_space<vmem>>, vector<32x128xf32>,
    return
  }
  func.func @transform_0(%arg0: i32) -> (i32, i32) {
    %c0_i32 = arith.constant 0 : i32
    %c0_i32_0 = arith.constant 0 : i32
    return %c0_i32, %arg0 : i32, i32
  }
  func.func @transform_1(%arg0: i32) -> (i32, i32) {
    %c0_i32 = arith.constant 0 : i32
    %c0_i32_0 = arith.constant 0 : i32
    %c0_i32_1 = arith.constant 0 : i32
    return %c0_i32, %c0_i32_0 : i32, i32
  }
  func.func @transform_2(%arg0: i32) -> (i32, i32) {
    %c0_i32 = arith.constant 0 : i32
    %c0_i32_0 = arith.constant 0 : i32
    %c0_i32_1 = arith.constant 0 : i32
    return %c0_i32, %c0_i32_0 : i32, i32
  }
  func.func @transform_3(%arg0: i32) -> (i32, i32) {
    %c0_i32 = arith.constant 0 : i32
    %c0_i32_0 = arith.constant 0 : i32
    %c0_i32_1 = arith.constant 0 : i32
    return %c0_i32, %c0_i32_0 : i32, i32
  }
  func.func @transform_4(%arg0: i32) -> (i32, i32) {
    %c0_i32 = arith.constant 0 : i32
    %c0_i32_0 = arith.constant 0 : i32
    %c0_i32_1 = arith.constant 0 : i32
    return %c0_i32, %c0_i32_0 : i32, i32
  }
  func.func @transform_5(%arg0: i32) -> (i32, i32) {
    %c0_i32 = arith.constant 0 : i32
    %c0_i32_0 = arith.constant 0 : i32
    %c0_i32_1 = arith.constant 0 : i32
    return %c0_i32, %c0_i32_0 : i32, i32
  }
  func.func @transform_6(%arg0: i32) -> (i32, i32) {
    %c0_i32 = arith.constant 0 : i32
    %c0_i32_0 = arith.constant 0 : i32
    %c0_i32_1 = arith.constant 0 : i32
    return %c0_i32, %c0_i32_0 : i32, i32
  }
  func.func @transform_7(%arg0: i32) -> (i32, i32) {
    %c0_i32 = arith.constant 0 : i32
    %c0_i32_0 = arith.constant 0 : i32
    %c0_i32_1 = arith.constant 0 : i32
    return %c0_i32, %c0_i32_0 : i32, i32
  }
  func.func @transform_8(%arg0: i32) -> (i32, i32) {
    %c0_i32 = arith.constant 0 : i32
    %c0_i32_0 = arith.constant 0 : i32
    %c0_i32_1 = arith.constant 0 : i32
    return %c0_i32, %c0_i32_0 : i32, i32
  }
  func.func @transform_9(%arg0: i32) -> (i32, i32) {
    %c0_i32 = arith.constant 0 : i32
    %c0_i32_0 = arith.constant 0 : i32
    return %c0_i32, %arg0 : i32, i32
  }
}

</mosaic_0001>

<llo_original>
// kernel: tpu_custom_call.1
$region0: #{tpu_custom_call.1}
  #allocation0 [shape = 'u32[]', space=smem, size = 0x4, offset = 0x4, fixed_abs, tag = 'smem constant byte address 0x4 - core index']
  #allocation1 [shape = 'u32[144,128]{1,0:T(1,128)}', space=vmem, size = 0x12000, scoped, tag = 'internal scratch']
  %s0 = inlined_call_operand.hbm [shape: f32[8,128], index: 0, kind: input, shape index: {}]
  %s1 = inlined_call_operand.hbm [shape: f32[8,128], index: 1, kind: output, shape index: {}]
  %s2 = sld [smem:[#allocation0]]
  $region18: #{tpu_custom_call.1} parent=0
    _
  %s4 = ssub.s32 1, %s2
  %s5 = scalar_select 0, %s4, %s2
  $region1: #{tpu_custom_call.1} parent=0
    #allocation2 [shape = 'u8[4096]{0}', space=vmem, size = 0x1000, scoped, tag = 'input window, operand 0, single buffered']
    #allocation3 [shape = 's32[1]{0}', space=sflag, size = 0x4, scoped, tag = 'scoped memory for tpu_custom_call.1']
    #allocation4 [shape = 's32[1]{0}', space=sflag, size = 0x4, scoped, tag = 'scoped memory for tpu_custom_call.1']
    #allocation5 [shape = 'u8[4096]{0}', space=vmem, size = 0x1000, scoped, tag = 'output window, operand 0, single buffered']
    %6 = vsyncpa [#allocation3], 0
    %7 = vsyncpa [#allocation4], 0
    // Predicated region
    $region2: #{tpu_custom_call.1} parent=1 // pred_check
      _
    $region3: #{tpu_custom_call.1} parent=1 // pred_check_branch
      %9 = sbr.rel (0) target = $region5
    $region4: #{tpu_custom_call.1} parent=1 // pred_region
      %s11 = ssub.s32 128, 128
      %12 = vsyncadd [#allocation3], %s11
      %s14 = sshll.u32 [#allocation2], 4
      %s15 = int_to_ptr.vmem [resolvable:$true] %s14
      %17 = dma.hbm_to_vmem [thread:$0]  %s0, 128, %s15, [#allocation3]
    $region5: #{tpu_custom_call.1} parent=1 // pred_fallthru
      _
    // Predicated region
    $region6: #{tpu_custom_call.1} parent=1 // pred_check
      _
    $region7: #{tpu_custom_call.1} parent=1 // pred_check_branch
      %19 = sbr.rel (0) target = $region9
    $region8: #{tpu_custom_call.1} parent=1 // pred_region
      %20 = dma.done [#allocation3], 128
    $region9: #{tpu_custom_call.1} parent=1 // pred_fallthru
      _
    %v21 = vld [vmem:[#allocation2] sm:$0xff]
    %22 = vrot.lane.b32.xlu0 %v21, 1
    %v23 = vpop.permute.xlu0 %22
    %24 = vst [vmem:[#allocation5] sm:$0xff] %v23
    // Predicated region
    $region10: #{tpu_custom_call.1} parent=1 // pred_check
      _
    $region11: #{tpu_custom_call.1} parent=1 // pred_check_branch
      %26 = sbr.rel (0) target = $region13
    $region12: #{tpu_custom_call.1} parent=1 // pred_region
      %s28 = ssub.s32 128, 128
      %29 = vsyncadd [#allocation4], %s28
      %s31 = sshll.u32 [#allocation5], 4
      %s32 = int_to_ptr.vmem [resolvable:$true] %s31
      %34 = dma.vmem_to_hbm [thread:$0]  %s32, 128, %s1, [#allocation4]
    $region13: #{tpu_custom_call.1} parent=1 // pred_fallthru
      _
    // Predicated region
    $region14: #{tpu_custom_call.1} parent=1 // pred_check
      _
    $region15: #{tpu_custom_call.1} parent=1 // pred_check_branch
      %36 = sbr.rel (0) target = $region17
    $region16: #{tpu_custom_call.1} parent=1 // pred_region
      %37 = dma.done [#allocation4], 128
    $region17: #{tpu_custom_call.1} parent=1 // pred_fallthru
      _
    %38 = vsyncpa [#allocation3], 1
    %39 = vsyncpa [#allocation4], 1

// kernel: tpu_custom_call.1
$region0: #{tpu_custom_call.1}
  #allocation0 [shape = 'u32[]', space=smem, size = 0x4, offset = 0x4, fixed_abs, tag = 'smem constant byte address 0x4 - core index']
  #allocation1 [shape = 'u32[144,128]{1,0:T(1,128)}', space=vmem, size = 0x12000, scoped, tag = 'internal scratch']
  %s0 = inlined_call_operand.vmem [shape: f32[8,1024], index: 0, kind: input, shape index: {}]
  %s1 = inlined_call_operand.vmem [shape: f32[32,40], index: 1, kind: input, shape index: {}]
  %s2 = inlined_call_operand.vmem [shape: f32[32,1], index: 2, kind: input, shape index: {}]
  %s3 = inlined_call_operand.vmem [shape: f32[32,160], index: 3, kind: input, shape index: {}]
  %s4 = inlined_call_operand.vmem [shape: f32[32,1], index: 4, kind: input, shape index: {}]
  %s5 = inlined_call_operand.hbm [shape: f32[5,512], index: 5, kind: input, shape index: {}]
  %s6 = inlined_call_operand.hbm [shape: f32[5,256], index: 6, kind: input, shape index: {}]
  %s7 = inlined_call_operand.vmem [shape: f32[64,32], index: 7, kind: input, shape index: {}]
  %s8 = inlined_call_operand.vmem [shape: f32[32,16], index: 8, kind: input, shape index: {}]
  %s9 = inlined_call_operand.hbm [shape: f32[32,256], index: 9, kind: output, shape index: {}]
  %s10 = sld [smem:[#allocation0]]
  $region77: #{tpu_custom_call.1} parent=0
    _
  %s12 = ssub.s32 1, %s10
  %s13 = scalar_select 0, %s12, %s10
  $region1: #{tpu_custom_call.1} parent=0
    #allocation2 [shape = 'u8[16384]{0}', space=vmem, size = 0x4000, scoped, tag = 'input window, operand 5, single buffered']
    #allocation3 [shape = 's32[2]{0}', space=sflag, size = 0x8, scoped, tag = 'scoped memory for tpu_custom_call.1']
    #allocation4 [shape = 's32[2]{0}', space=sflag, size = 0x8, scoped, tag = 'scoped memory for tpu_custom_call.1']
    #allocation5 [shape = 'u8[8192]{0}', space=vmem, size = 0x2000, scoped, tag = 'input window, operand 6, single buffered']
    #allocation6 [shape = 's32[1]{0}', space=sflag, size = 0x4, scoped, tag = 'scoped memory for tpu_custom_call.1']
    #allocation7 [shape = 'u8[32768]{0}', space=vmem, size = 0x8000, scoped, tag = 'output window, operand 0']
    %14 = vsyncpa [#allocation3], 0
    %15 = vsyncpa [#allocation6], 0
    %16 = vsyncpa [#allocation4], 0
    %s17 = scalar_lea.sflag [#allocation4], 1
    %18 = vsyncpa %s17, 0
    loop: start=0, step=1, limit=4
    $region2: #{tpu_custom_call.1} parent=1 // loop_pre_header
      _
    $region3: #{tpu_custom_call.1} parent=1 // loop_header
      %s20 = sphi 0, %s24
      %p21 = scmp.ge.s32.totalorder %s20, 4
      %s30 = sphi 0, %s32
      %s33 = sphi 0, %s30
      %s34 = sphi 0, %s33
      %s50 = sphi 0, %s34
      %s54 = sphi 0, %s54
      %s56 = sphi 0, %s54
      %s57 = sphi 0, %s56
      %s71 = sphi 0, %s57
      %s75 = sphi 0, %s75
      %s77 = sphi 0, %s75
      %s78 = sphi 0, %s77
      %s92 = sphi 0, %s78
      %s96 = sphi 0, %s96
      %s98 = sphi 0, %s96
      %s99 = sphi 0, %s98
      %s113 = sphi 0, %s99
      %s117 = sphi 0, %s117
      %s119 = sphi 0, %s117
      %s120 = sphi 0, %s119
      %s134 = sphi 0, %s120
      %s138 = sphi 0, %s138
      %s140 = sphi 0, %s138
      %s141 = sphi 0, %s140
      %s155 = sphi 0, %s141
      %s159 = sphi 0, %s159
      %s161 = sphi 0, %s159
      %s162 = sphi 0, %s161
      %s176 = sphi 0, %s162
      %s180 = sphi 0, %s180
      %s182 = sphi 0, %s180
      %s183 = sphi 0, %s182
      %s197 = sphi 0, %s183
      %s201 = sphi 0, %s201
      %s203 = sphi 0, %s201
      %s204 = sphi 0, %s203
      %s218 = sphi 0, %s204
      %s224 = sphi 0, %s226
      %s227 = sphi 0, %s224
      %s228 = sphi 0, %s227
      %s244 = sphi 0, %s228
    $region4: #{tpu_custom_call.1} parent=1 // loop_header_branch
      %23 = sbr.rel (%p21) target = $region8
    $region5: #{tpu_custom_call.1} parent=1 // loop_body
      %s25 = ssub.s32 %s20, 1
      %s26 = ssub.s32 %s20, 2
      %s27 = sadd.s32 %s20, 1
      %s28 = ssub.s32 %s20, %s27
      %p29 = scmp.eq.s32.totalorder %s28, 0
      %s31 = sadd.s32 %s30, 1
      %s32 = scalar_select %p29, %s30, %s31
      %p35 = pneg %p29
      %p36 = scmp.eq.s32.totalorder %s20, 1
      %p37 = por %p35, %p36
      %p38 = scmp.ne.s32.totalorder %s30, %s33
      %p39 = scmp.eq.s32.totalorder %s20, 0
      %p40 = por %p38, %p39
      %p41 = scmp.ne.s32.totalorder %s30, %s33
      %p42 = scmp.eq.s32.totalorder %s25, 1
      %p43 = por %p41, %p42
      %p44 = scmp.ne.s32.totalorder %s33, %s34
      %p45 = scmp.eq.s32.totalorder %s25, 0
      %p46 = por %p44, %p45
      %p47 = scmp.ne.s32.totalorder %s33, %s34
      %p48 = scmp.eq.s32.totalorder %s26, 1
      %p49 = por %p47, %p48
      %p51 = scmp.ne.s32.totalorder %s34, %s50
      %p52 = scmp.eq.s32.totalorder %s26, 0
      %p53 = por %p51, %p52
      %s55 = sadd.s32 %s54, 1
      %p58 = scmp.eq.s32.totalorder %s20, 1
      %p59 = scmp.ne.s32.totalorder %s54, %s56
      %p60 = scmp.eq.s32.totalorder %s20, 0
      %p61 = por %p59, %p60
      %p62 = scmp.ne.s32.totalorder %s54, %s56
      %p63 = scmp.eq.s32.totalorder %s25, 1
      %p64 = por %p62, %p63
      %p65 = scmp.ne.s32.totalorder %s56, %s57
      %p66 = scmp.eq.s32.totalorder %s25, 0
      %p67 = por %p65, %p66
      %p68 = scmp.ne.s32.totalorder %s56, %s57
      %p69 = scmp.eq.s32.totalorder %s26, 1
      %p70 = por %p68, %p69
      %p72 = scmp.ne.s32.totalorder %s57, %s71
      %p73 = scmp.eq.s32.totalorder %s26, 0
      %p74 = por %p72, %p73
      %s76 = sadd.s32 %s75, 1
      %p79 = scmp.eq.s32.totalorder %s20, 1
      %p80 = scmp.ne.s32.totalorder %s75, %s77
      %p81 = scmp.eq.s32.totalorder %s20, 0
      %p82 = por %p80, %p81
      %p83 = scmp.ne.s32.totalorder %s75, %s77
      %p84 = scmp.eq.s32.totalorder %s25, 1
      %p85 = por %p83, %p84
      %p86 = scmp.ne.s32.totalorder %s77, %s78
      %p87 = scmp.eq.s32.totalorder %s25, 0
      %p88 = por %p86, %p87
      %p89 = scmp.ne.s32.totalorder %s77, %s78
      %p90 = scmp.eq.s32.totalorder %s26, 1
      %p91 = por %p89, %p90
      %p93 = scmp.ne.s32.totalorder %s78, %s92
      %p94 = scmp.eq.s32.totalorder %s26, 0
      %p95 = por %p93, %p94
      %s97 = sadd.s32 %s96, 1
      %p100 = scmp.eq.s32.totalorder %s20, 1
      %p101 = scmp.ne.s32.totalorder %s96, %s98
      %p102 = scmp.eq.s32.totalorder %s20, 0
      %p103 = por %p101, %p102
      %p104 = scmp.ne.s32.totalorder %s96, %s98
      %p105 = scmp.eq.s32.totalorder %s25, 1
      %p106 = por %p104, %p105
      %p107 = scmp.ne.s32.totalorder %s98, %s99
      %p108 = scmp.eq.s32.totalorder %s25, 0
      %p109 = por %p107, %p108
      %p110 = scmp.ne.s32.totalorder %s98, %s99
      %p111 = scmp.eq.s32.totalorder %s26, 1
      %p112 = por %p110, %p111
      %p114 = scmp.ne.s32.totalorder %s99, %s113
      %p115 = scmp.eq.s32.totalorder %s26, 0
      %p116 = por %p114, %p115
      %s118 = sadd.s32 %s117, 1
      %p121 = scmp.eq.s32.totalorder %s20, 1
      %p122 = scmp.ne.s32.totalorder %s117, %s119
      %p123 = scmp.eq.s32.totalorder %s20, 0
      %p124 = por %p122, %p123
      %p125 = scmp.ne.s32.totalorder %s117, %s119
      %p126 = scmp.eq.s32.totalorder %s25, 1
      %p127 = por %p125, %p126
      %p128 = scmp.ne.s32.totalorder %s119, %s120
      %p129 = scmp.eq.s32.totalorder %s25, 0
      %p130 = por %p128, %p129
      %p131 = scmp.ne.s32.totalorder %s119, %s120
      %p132 = scmp.eq.s32.totalorder %s26, 1
      %p133 = por %p131, %p132
      %p135 = scmp.ne.s32.totalorder %s120, %s134
      %p136 = scmp.eq.s32.totalorder %s26, 0
      %p137 = por %p135, %p136
      %s139 = sadd.s32 %s138, 1
      %p142 = scmp.eq.s32.totalorder %s20, 1
      %p143 = scmp.ne.s32.totalorder %s138, %s140
      %p144 = scmp.eq.s32.totalorder %s20, 0
      %p145 = por %p143, %p144
      %p146 = scmp.ne.s32.totalorder %s138, %s140
      %p147 = scmp.eq.s32.totalorder %s25, 1
      %p148 = por %p146, %p147
      %p149 = scmp.ne.s32.totalorder %s140, %s141
      %p150 = scmp.eq.s32.totalorder %s25, 0
      %p151 = por %p149, %p150
      %p152 = scmp.ne.s32.totalorder %s140, %s141
      %p153 = scmp.eq.s32.totalorder %s26, 1
      %p154 = por %p152, %p153
      %p156 = scmp.ne.s32.totalorder %s141, %s155
      %p157 = scmp.eq.s32.totalorder %s26, 0
      %p158 = por %p156, %p157
      %s160 = sadd.s32 %s159, 1
      %p163 = scmp.eq.s32.totalorder %s20, 1
      %p164 = scmp.ne.s32.totalorder %s159, %s161
      %p165 = scmp.eq.s32.totalorder %s20, 0
      %p166 = por %p164, %p165
      %p167 = scmp.ne.s32.totalorder %s159, %s161
      %p168 = scmp.eq.s32.totalorder %s25, 1
      %p169 = por %p167, %p168
      %p170 = scmp.ne.s32.totalorder %s161, %s162
      %p171 = scmp.eq.s32.totalorder %s25, 0
      %p172 = por %p170, %p171
      %p173 = scmp.ne.s32.totalorder %s161, %s162
      %p174 = scmp.eq.s32.totalorder %s26, 1
      %p175 = por %p173, %p174
      %p177 = scmp.ne.s32.totalorder %s162, %s176
      %p178 = scmp.eq.s32.totalorder %s26, 0
      %p179 = por %p177, %p178
      %s181 = sadd.s32 %s180, 1
      %p184 = scmp.eq.s32.totalorder %s20, 1
      %p185 = scmp.ne.s32.totalorder %s180, %s182
      %p186 = scmp.eq.s32.totalorder %s20, 0
      %p187 = por %p185, %p186
      %p188 = scmp.ne.s32.totalorder %s180, %s182
      %p189 = scmp.eq.s32.totalorder %s25, 1
      %p190 = por %p188, %p189
      %p191 = scmp.ne.s32.totalorder %s182, %s183
      %p192 = scmp.eq.s32.totalorder %s25, 0
      %p193 = por %p191, %p192
      %p194 = scmp.ne.s32.totalorder %s182, %s183
      %p195 = scmp.eq.s32.totalorder %s26, 1
      %p196 = por %p194, %p195
      %p198 = scmp.ne.s32.totalorder %s183, %s197
      %p199 = scmp.eq.s32.totalorder %s26, 0
      %p200 = por %p198, %p199
      %s202 = sadd.s32 %s201, 1
      %p205 = scmp.eq.s32.totalorder %s20, 1
      %p206 = scmp.ne.s32.totalorder %s201, %s203
      %p207 = scmp.eq.s32.totalorder %s20, 0
      %p208 = por %p206, %p207
      %p209 = scmp.ne.s32.totalorder %s201, %s203
      %p210 = scmp.eq.s32.totalorder %s25, 1
      %p211 = por %p209, %p210
      %p212 = scmp.ne.s32.totalorder %s203, %s204
      %p213 = scmp.eq.s32.totalorder %s25, 0
      %p214 = por %p212, %p213
      %p215 = scmp.ne.s32.totalorder %s203, %s204
      %p216 = scmp.eq.s32.totalorder %s26, 1
      %p217 = por %p215, %p216
      %p219 = scmp.ne.s32.totalorder %s204, %s218
      %p220 = scmp.eq.s32.totalorder %s26, 0
      %p221 = por %p219, %p220
      %s222 = ssub.s32 %s20, %s27
      %p223 = scmp.eq.s32.totalorder %s222, 0
      %s225 = sadd.s32 %s224, 1
      %s226 = scalar_select %p223, %s224, %s225
      %p229 = pneg %p223
      %p230 = scmp.eq.s32.totalorder %s20, 1
      %p231 = por %p229, %p230
      %p232 = scmp.ne.s32.totalorder %s224, %s227
      %p233 = scmp.eq.s32.totalorder %s20, 0
      %p234 = por %p232, %p233
      %p235 = scmp.ne.s32.totalorder %s224, %s227
      %p236 = scmp.eq.s32.totalorder %s25, 1
      %p237 = por %p235, %p236
      %p238 = scmp.ne.s32.totalorder %s227, %s228
      %p239 = scmp.eq.s32.totalorder %s25, 0
      %p240 = por %p238, %p239
      %p241 = scmp.ne.s32.totalorder %s227, %s228
      %p242 = scmp.eq.s32.totalorder %s26, 1
      %p243 = por %p241, %p242
      %p245 = scmp.ne.s32.totalorder %s228, %s244
      %p246 = scmp.eq.s32.totalorder %s26, 0
      %p247 = por %p245, %p246
      %p248 = scmp.le.s32.totalorder 1, %s20
      %p249 = scmp.lt.s32.totalorder %s20, 3
      %p250 = pnand %p248, %p249
      %p251 = pneg %p250
      // Predicated region
      $region9: #{tpu_custom_call.1} parent=5 // pred_check
        _
      $region10: #{tpu_custom_call.1} parent=5 // pred_check_branch
        %253 = sbr.rel (%p250) target = $region12
      $region11: #{tpu_custom_call.1} parent=5 // pred_region
        %s254 = ssub.s32 %s20, 1
        // Predicated region
        $region13: #{tpu_custom_call.1} parent=11 // pred_check
          %p255 = pneg %p67
        $region14: #{tpu_custom_call.1} parent=11 // pred_check_branch
          %257 = sbr.rel (%p255) target = $region16
        $region15: #{tpu_custom_call.1} parent=11 // pred_region
          _
        $region16: #{tpu_custom_call.1} parent=11 // pred_fallthru
          _
        // Predicated region
        $region17: #{tpu_custom_call.1} parent=11 // pred_check
          %p258 = pneg %p88
        $region18: #{tpu_custom_call.1} parent=11 // pred_check_branch
          %260 = sbr.rel (%p258) target = $region20
        $region19: #{tpu_custom_call.1} parent=11 // pred_region
          _
        $region20: #{tpu_custom_call.1} parent=11 // pred_fallthru
          _
        // Predicated region
        $region21: #{tpu_custom_call.1} parent=11 // pred_check
          %p261 = pneg %p109
        $region22: #{tpu_custom_call.1} parent=11 // pred_check_branch
          %263 = sbr.rel (%p261) target = $region24
        $region23: #{tpu_custom_call.1} parent=11 // pred_region
          _
        $region24: #{tpu_custom_call.1} parent=11 // pred_fallthru
          _
        // Predicated region
        $region25: #{tpu_custom_call.1} parent=11 // pred_check
          %p264 = pneg %p130
        $region26: #{tpu_custom_call.1} parent=11 // pred_check_branch
          %266 = sbr.rel (%p264) target = $region28
        $region27: #{tpu_custom_call.1} parent=11 // pred_region
          _
        $region28: #{tpu_custom_call.1} parent=11 // pred_fallthru
          _
        // Predicated region
        $region29: #{tpu_custom_call.1} parent=11 // pred_check
          %p267 = pneg %p151
        $region30: #{tpu_custom_call.1} parent=11 // pred_check_branch
          %269 = sbr.rel (%p267) target = $region32
        $region31: #{tpu_custom_call.1} parent=11 // pred_region
          %s271 = ssub.s32 512, 512
          %272 = vsyncadd [#allocation3], %s271
          %s274 = sshll.u32 [#allocation2], 4
          %s275 = int_to_ptr.vmem [resolvable:$true] %s274
          %277 = dma.hbm_to_vmem [thread:$0]  %s5, 512, %s275, [#allocation3]
        $region32: #{tpu_custom_call.1} parent=11 // pred_fallthru
          _
        // Predicated region
        $region33: #{tpu_custom_call.1} parent=11 // pred_check
          %p278 = pneg %p172
        $region34: #{tpu_custom_call.1} parent=11 // pred_check_branch
          %280 = sbr.rel (%p278) target = $region36
        $region35: #{tpu_custom_call.1} parent=11 // pred_region
          %s282 = ssub.s32 256, 256
          %283 = vsyncadd [#allocation6], %s282
          %s285 = sshll.u32 [#allocation5], 4
          %s286 = int_to_ptr.vmem [resolvable:$true] %s285
          %288 = dma.hbm_to_vmem [thread:$0]  %s6, 256, %s286, [#allocation6]
        $region36: #{tpu_custom_call.1} parent=11 // pred_fallthru
          _
        // Predicated region
        $region37: #{tpu_custom_call.1} parent=11 // pred_check
          %p289 = pneg %p193
        $region38: #{tpu_custom_call.1} parent=11 // pred_check_branch
          %291 = sbr.rel (%p289) target = $region40
        $region39: #{tpu_custom_call.1} parent=11 // pred_region
          _
        $region40: #{tpu_custom_call.1} parent=11 // pred_fallthru
          _
        // Predicated region
        $region41: #{tpu_custom_call.1} parent=11 // pred_check
          %p292 = pneg %p214
        $region42: #{tpu_custom_call.1} parent=11 // pred_check_branch
          %294 = sbr.rel (%p292) target = $region44
        $region43: #{tpu_custom_call.1} parent=11 // pred_region
          _
        $region44: #{tpu_custom_call.1} parent=11 // pred_fallthru
          _
      $region12: #{tpu_custom_call.1} parent=5 // pred_fallthru
        _
      %p295 = scmp.lt.s32.totalorder %s20, 2
      // Predicated region
      $region45: #{tpu_custom_call.1} parent=5 // pred_check
        %p296 = pneg %p295
      $region46: #{tpu_custom_call.1} parent=5 // pred_check_branch
        %298 = sbr.rel (%p296) target = $region48
      $region47: #{tpu_custom_call.1} parent=5 // pred_region
        // Predicated region
        $region49: #{tpu_custom_call.1} parent=47 // pred_check
          %p299 = pneg %p40
        $region50: #{tpu_custom_call.1} parent=47 // pred_check_branch
          %301 = sbr.rel (%p299) target = $region52
        $region51: #{tpu_custom_call.1} parent=47 // pred_region
          %s302 = smul.u32 4, %s20
          %p303 = scmp.lt.s32.totalorder %s302, 7
          %s304 = scalar_select %p303, %s302, 7
          %s305 = smul.addr %s304, 8
          %s306 = scalar_lea.vmem %s0, %s305
          %s307 = smul.u32 4, %s20
        $region52: #{tpu_custom_call.1} parent=47 // pred_fallthru
          _
      $region48: #{tpu_custom_call.1} parent=5 // pred_fallthru
        _
      %p308 = scmp.le.s32.totalorder 1, %s20
      %p309 = scmp.lt.s32.totalorder %s20, 3
      %p310 = pnand %p308, %p309
      %p311 = pneg %p310
      // Predicated region
      $region53: #{tpu_custom_call.1} parent=5 // pred_check
        _
      $region54: #{tpu_custom_call.1} parent=5 // pred_check_branch
        %313 = sbr.rel (%p310) target = $region56
      $region55: #{tpu_custom_call.1} parent=5 // pred_region
        %s314 = ssub.s32 %s20, 1
        // Predicated region
        $region57: #{tpu_custom_call.1} parent=55 // pred_check
          %p315 = pneg %p151
        $region58: #{tpu_custom_call.1} parent=55 // pred_check_branch
          %317 = sbr.rel (%p315) target = $region60
        $region59: #{tpu_custom_call.1} parent=55 // pred_region
          %318 = dma.done [#allocation3], 512
        $region60: #{tpu_custom_call.1} parent=55 // pred_fallthru
          _
        // Predicated region
        $region61: #{tpu_custom_call.1} parent=55 // pred_check
          %p319 = pneg %p172
        $region62: #{tpu_custom_call.1} parent=55 // pred_check_branch
          %321 = sbr.rel (%p319) target = $region64
        $region63: #{tpu_custom_call.1} parent=55 // pred_region
          %322 = dma.done [#allocation6], 256
        $region64: #{tpu_custom_call.1} parent=55 // pred_fallthru
          _
        %s323 = smul.u32 4, %s25
        %p324 = scmp.lt.s32.totalorder %s323, 7
        %s325 = scalar_select %p324, %s323, 7
        %s326 = smul.addr %s325, 8
        %s327 = scalar_lea.vmem %s0, %s326
        %p328 = pneg %p46
        %p329 = pneg %p43
        %p330 = pneg %p67
        %p331 = pneg %p64
        %p332 = pneg %p88
        %p333 = pneg %p85
        %p334 = pneg %p109
        %p335 = pneg %p106
        %p336 = pneg %p130
        %p337 = pneg %p127
        %p338 = pneg %p151
        %p339 = pneg %p148
        %p340 = pneg %p172
        %p341 = pneg %p169
        %p342 = pneg %p193
        %p343 = pneg %p190
        %p344 = pneg %p214
        %p345 = pneg %p211
        %p346 = pneg %p240
        %p347 = pneg %p237
        %s348 = sand.u32 %s227, 1
        %s349 = scalar_lea.sflag [#allocation4], %s348
        %s350 = sand.u32 %s227, 1
        %s351 = smul.addr %s350, 32
        %s352 = scalar_lea.vmem [#allocation7], %s351
        %s353 = smul.u32 4, %s25
        %p354 = scmp.lt.s32.totalorder %s353, 7
        %s355 = scalar_select %p354, %s353, 7
        %s356 = smul.addr %s355, 8
        %s357 = scalar_lea.vmem %s0, %s356
        %s358 = smul.u32 4, %s25
        %v359 = vld [vmem:[%s357] sm:$0xff]
        %v360 = vld [vmem:[%s357 + $0x8] sm:$0xff]
        %v361 = vld [vmem:[%s357 + $0x10] sm:$0xff]
        %v362 = vld [vmem:[%s357 + $0x18] sm:$0xff]
        %364 = vrot.lane.b32.xlu0 %v362, 2
        %v365 = vpop.permute.xlu0 %364
        %370 = vrot.lane.b32.xlu0 %v359, 2
        %v371 = vpop.permute.xlu0 %370
        %372 = vrot.lane.b32.xlu0 %v360, 2
        %v373 = vpop.permute.xlu0 %372
        %374 = vrot.lane.b32.xlu0 %v361, 2
        %v375 = vpop.permute.xlu0 %374
        %vm376 = vcmask 15360
        %v377 = vsel %vm376, %v371, %v373
        %v378 = vsel %vm376, %v373, %v375
        %v379 = vsel %vm376, %v375, %v365
        %v384 = vsel %vm376, %v365, %v371
        %v385 = vld [vmem:[#allocation2] ss:$8 sm:$0xf]
        %v387 = vlaneseq
        %v388 = vshrl.u32 %v387, 7
        %v389 = vsub.s32 0, %v388
        %v390 = vrot.slane %v385, %v389
        %v391 = vlaneseq
        %v392 = vshrl.u32 %v391, 7
        %v393 = vsub.s32 1, %v392
        %v394 = vrot.slane %v385, %v393
        %v395 = vlaneseq
        %v396 = vshrl.u32 %v395, 7
        %v397 = vsub.s32 2, %v396
        %v398 = vrot.slane %v385, %v397
        %v399 = vlaneseq
        %v400 = vshrl.u32 %v399, 7
        %v401 = vsub.s32 3, %v400
        %v402 = vrot.slane %v385, %v401
        %v407 = vmul.f32 %v384, %v390
        %v408 = vmul.f32 %v377, %v394
        %v409 = vmul.f32 %v378, %v398
        %v410 = vmul.f32 %v379, %v402
        %411 = vrot.lane.b32.xlu0 %v362, 1
        %v412 = vpop.permute.xlu0 %411
        %414 = vrot.lane.b32.xlu0 %v359, 1
        %v415 = vpop.permute.xlu0 %414
        %416 = vrot.lane.b32.xlu0 %v360, 1
        %v417 = vpop.permute.xlu0 %416
        %418 = vrot.lane.b32.xlu0 %v361, 1
        %v419 = vpop.permute.xlu0 %418
        %vm420 = vcmask 7168
        %v421 = vsel %vm420, %v415, %v417
        %v422 = vsel %vm420, %v417, %v419
        %v423 = vsel %vm420, %v419, %v412
        %v428 = vsel %vm420, %v412, %v415
        %s429 = scalar_lea.vmem [#allocation2], 1
        %v430 = vld [vmem:[%s429] ss:$8 sm:$0xf]
        %v432 = vlaneseq
        %v433 = vshrl.u32 %v432, 7
        %v434 = vsub.s32 0, %v433
        %v435 = vrot.slane %v430, %v434
        %v436 = vlaneseq
        %v437 = vshrl.u32 %v436, 7
        %v438 = vsub.s32 1, %v437
        %v439 = vrot.slane %v430, %v438
        %v440 = vlaneseq
        %v441 = vshrl.u32 %v440, 7
        %v442 = vsub.s32 2, %v441
        %v443 = vrot.slane %v430, %v442
        %v444 = vlaneseq
        %v445 = vshrl.u32 %v444, 7
        %v446 = vsub.s32 3, %v445
        %v447 = vrot.slane %v430, %v446
        %v452 = vmul.f32 %v428, %v435
        %v453 = vmul.f32 %v421, %v439
        %v454 = vmul.f32 %v422, %v443
        %v455 = vmul.f32 %v423, %v447
        %s456 = scalar_lea.vmem [#allocation2], 2
        %v457 = vld [vmem:[%s456] ss:$8 sm:$0xf]
        %v459 = vlaneseq
        %v460 = vshrl.u32 %v459, 7
        %v461 = vsub.s32 0, %v460
        %v462 = vrot.slane %v457, %v461
        %v463 = vlaneseq
        %v464 = vshrl.u32 %v463, 7
        %v465 = vsub.s32 1, %v464
        %v466 = vrot.slane %v457, %v465
        %v467 = vlaneseq
        %v468 = vshrl.u32 %v467, 7
        %v469 = vsub.s32 2, %v468
        %v470 = vrot.slane %v457, %v469
        %v471 = vlaneseq
        %v472 = vshrl.u32 %v471, 7
        %v473 = vsub.s32 3, %v472
        %v474 = vrot.slane %v457, %v473
        %v479 = vmul.f32 %v359, %v462
        %v480 = vmul.f32 %v360, %v466
        %v481 = vmul.f32 %v361, %v470
        %v482 = vmul.f32 %v362, %v474
        %483 = vrot.lane.b32.xlu0 %v359, 127
        %v484 = vpop.permute.xlu0 %483
        %485 = vrot.lane.b32.xlu0 %v360, 127
        %v486 = vpop.permute.xlu0 %485
        %487 = vrot.lane.b32.xlu0 %v361, 127
        %v488 = vpop.permute.xlu0 %487
        %489 = vrot.lane.b32.xlu0 %v362, 127
        %v490 = vpop.permute.xlu0 %489
        %vm491 = vcmask 1039360
        %v492 = vsel %vm491, %v484, %v486
        %v493 = vsel %vm491, %v486, %v488
        %v494 = vsel %vm491, %v488, %v490
        %v500 = vsel %vm491, %v490, %v484
        %s501 = scalar_lea.vmem [#allocation2], 3
        %v502 = vld [vmem:[%s501] ss:$8 sm:$0xf]
        %v504 = vlaneseq
        %v505 = vshrl.u32 %v504, 7
        %v506 = vsub.s32 0, %v505
        %v507 = vrot.slane %v502, %v506
        %v508 = vlaneseq
        %v509 = vshrl.u32 %v508, 7
        %v510 = vsub.s32 1, %v509
        %v511 = vrot.slane %v502, %v510
        %v512 = vlaneseq
        %v513 = vshrl.u32 %v512, 7
        %v514 = vsub.s32 2, %v513
        %v515 = vrot.slane %v502, %v514
        %v516 = vlaneseq
        %v517 = vshrl.u32 %v516, 7
        %v518 = vsub.s32 3, %v517
        %v519 = vrot.slane %v502, %v518
        %v524 = vmul.f32 %v492, %v507
        %v525 = vmul.f32 %v493, %v511
        %v526 = vmul.f32 %v494, %v515
        %v527 = vmul.f32 %v500, %v519
        %528 = vrot.lane.b32.xlu0 %v359, 126
        %v529 = vpop.permute.xlu0 %528
        %530 = vrot.lane.b32.xlu0 %v360, 126
        %v531 = vpop.permute.xlu0 %530
        %532 = vrot.lane.b32.xlu0 %v361, 126
        %v533 = vpop.permute.xlu0 %532
        %534 = vrot.lane.b32.xlu0 %v362, 126
        %v535 = vpop.permute.xlu0 %534
        %vm536 = vcmask 1031168
        %v537 = vsel %vm536, %v529, %v531
        %v538 = vsel %vm536, %v531, %v533
        %v539 = vsel %vm536, %v533, %v535
        %v545 = vsel %vm536, %v535, %v529
        %s546 = scalar_lea.vmem [#allocation2], 4
        %v547 = vld [vmem:[%s546] ss:$8 sm:$0xf]
        %v549 = vlaneseq
        %v550 = vshrl.u32 %v549, 7
        %v551 = vsub.s32 0, %v550
        %v552 = vrot.slane %v547, %v551
        %v553 = vlaneseq
        %v554 = vshrl.u32 %v553, 7
        %v555 = vsub.s32 1, %v554
        %v556 = vrot.slane %v547, %v555
        %v557 = vlaneseq
        %v558 = vshrl.u32 %v557, 7
        %v559 = vsub.s32 2, %v558
        %v560 = vrot.slane %v547, %v559
        %v561 = vlaneseq
        %v562 = vshrl.u32 %v561, 7
        %v563 = vsub.s32 3, %v562
        %v564 = vrot.slane %v547, %v563
        %v569 = vmul.f32 %v537, %v552
        %v570 = vmul.f32 %v538, %v556
        %v571 = vmul.f32 %v539, %v560
        %v572 = vmul.f32 %v545, %v564
        %v573 = vld [vmem:[%s1] sm:$0xff]
        %v574 = vld [vmem:[%s1 + $0x8] sm:$0xff]
        %v575 = vld [vmem:[%s1 + $0x10] sm:$0xff]
        %v576 = vld [vmem:[%s1 + $0x18] sm:$0xff]
        %v577 = vld [vmem:[%s2] sm:$0xff]
        %v578 = vld [vmem:[%s2 + $0x8] sm:$0xff]
        %v579 = vld [vmem:[%s2 + $0x10] sm:$0xff]
        %v580 = vld [vmem:[%s2 + $0x18] sm:$0xff]
        %582 = vset.pattern.permute.xlu0 0
        %583 = vperm.xlu0 %582, %v577
        %v584 = vpop.permute.xlu0 %583
        %587 = vset.pattern.permute.xlu0 0
        %588 = vperm.xlu0 %587, %v578
        %v589 = vpop.permute.xlu0 %588
        %592 = vset.pattern.permute.xlu0 0
        %593 = vperm.xlu0 %592, %v579
        %v594 = vpop.permute.xlu0 %593
        %597 = vset.pattern.permute.xlu0 0
        %598 = vperm.xlu0 %597, %v580
        %v599 = vpop.permute.xlu0 %598
        %vm601 = vcmask 326656
        %v603 = vsel %vm601, %v573, 0
        %v606 = vsel %vm601, %v574, 0
        %v609 = vsel %vm601, %v575, 0
        %v612 = vsel %vm601, %v576, 0
        %614 = vmatprep.subr.mxu0 0.0
        %615 = vmatpush1.msra.mxu0 0.0
        %616 = vmatprep.subr.mxu0 0.0
        %617 = vmatpush1.msra.mxu0 0.0
        %618 = vmatprep.subr.mxu0 0.0
        %619 = vmatpush1.msra.mxu0 0.0
        %620 = vmatprep.subr.mxu0 0.0
        %621 = vmatpush1.msra.mxu0 0.0
        %622 = vmatprep.subr.mxu0 0.0
        %623 = vmatpush1.msra.mxu0 0.0
        %624 = vmatprep.subr.mxu0 0.0
        %625 = vmatpush1.msra.mxu0 0.0
        %626 = vmatprep.subr.mxu0 0.0
        %627 = vmatpush1.msra.mxu0 0.0
        %628 = vmatprep.subr.mxu0 0.0
        %629 = vmatpush1.msra.mxu0 0.0
        %630 = vmatprep.subr.mxu0 0.0
        %631 = vmatpush1.msra.mxu0 0.0
        %632 = vmatprep.subr.mxu0 0.0
        %633 = vmatpush1.msra.mxu0 0.0
        %634 = vmatprep.subr.mxu0 0.0
        %635 = vmatpush1.msra.mxu0 0.0
        %636 = vmatprep.subr.mxu0 %v570
        %637 = vmatpush1.msra.mxu0 %v569
        %638 = vmatprep.subr.mxu0 %v525
        %639 = vmatpush1.msra.mxu0 %v524
        %640 = vmatprep.subr.mxu0 %v480
        %641 = vmatpush1.msra.mxu0 %v479
        %642 = vmatprep.subr.mxu0 %v453
        %643 = vmatpush1.msra.mxu0 %v452
        %644 = vmatprep.subr.mxu0 %v408
        %645 = vmatpush1.msra.mxu0 %v407
        %646 = vmatprep.subr.mxu0 0.0
        %647 = vmatpush2.msra.mxu0 0.0
        %648 = vmatprep.subr.mxu0 0.0
        %649 = vmatpush2.msra.mxu0 0.0
        %650 = vmatprep.subr.mxu0 0.0
        %651 = vmatpush2.msra.mxu0 0.0
        %652 = vmatprep.subr.mxu0 0.0
        %653 = vmatpush2.msra.mxu0 0.0
        %654 = vmatprep.subr.mxu0 0.0
        %655 = vmatpush2.msra.mxu0 0.0
        %656 = vmatprep.subr.mxu0 0.0
        %657 = vmatpush2.msra.mxu0 0.0
        %658 = vmatprep.subr.mxu0 0.0
        %659 = vmatpush2.msra.mxu0 0.0
        %660 = vmatprep.subr.mxu0 0.0
        %661 = vmatpush2.msra.mxu0 0.0
        %662 = vmatprep.subr.mxu0 0.0
        %663 = vmatpush2.msra.mxu0 0.0
        %664 = vmatprep.subr.mxu0 0.0
        %665 = vmatpush2.msra.mxu0 0.0
        %666 = vmatprep.subr.mxu0 0.0
        %667 = vmatpush2.msra.mxu0 0.0
        %668 = vmatprep.subr.mxu0 0.0
        %669 = vmatpush2.msra.mxu0 0.0
        %670 = vmatprep.subr.mxu0 0.0
        %671 = vmatpush2.msra.mxu0 0.0
        %672 = vmatprep.subr.mxu0 0.0
        %673 = vmatpush2.msra.mxu0 0.0
        %674 = vmatprep.subr.mxu0 0.0
        %675 = vmatpush2.msra.mxu0 0.0
        %676 = vmatprep.subr.mxu0 0.0
        %677 = vmatpush2.msra.mxu0 0.0
        %678 = vmatprep.mubr.f32.mxu0 0.0
        %679 = vmatmul.mubr.f32.gmra.mxu0 %v603
        %v680 = vpop.f32.mrf.mxu0
        %v681 = vadd.f32 %v584, %v680
        %v682 = vpop.f32.mrf.mxu0
        %v683 = vadd.f32 %v584, %v682
        %684 = vmatprep.mubr.f32.mxu0 0.0
        %685 = vmatmul.mubr.f32.gmra.mxu0 %v606
        %v686 = vpop.f32.mrf.mxu0
        %v687 = vadd.f32 %v589, %v686
        %v688 = vpop.f32.mrf.mxu0
        %v689 = vadd.f32 %v589, %v688
        %690 = vmatprep.mubr.f32.mxu0 0.0
        %691 = vmatmul.mubr.f32.gmra.mxu0 %v609
        %v692 = vpop.f32.mrf.mxu0
        %v693 = vadd.f32 %v594, %v692
        %v694 = vpop.f32.mrf.mxu0
        %v695 = vadd.f32 %v594, %v694
        %696 = vmatprep.mubr.f32.mxu0 0.0
        %697 = vmatmul.mubr.f32.gmra.mxu0 %v612
        %v698 = vpop.f32.mrf.mxu0
        %v699 = vadd.f32 %v599, %v698
        %v700 = vpop.f32.mrf.mxu0
        %v701 = vadd.f32 %v599, %v700
        %702 = vdwg.mxu0
        %703 = vmatprep.subr.mxu0 0.0
        %704 = vmatpush1.msra.mxu0 0.0
        %705 = vmatprep.subr.mxu0 0.0
        %706 = vmatpush1.msra.mxu0 0.0
        %707 = vmatprep.subr.mxu0 0.0
        %708 = vmatpush1.msra.mxu0 0.0
        %709 = vmatprep.subr.mxu0 0.0
        %710 = vmatpush1.msra.mxu0 0.0
        %711 = vmatprep.subr.mxu0 0.0
        %712 = vmatpush1.msra.mxu0 0.0
        %713 = vmatprep.subr.mxu0 0.0
        %714 = vmatpush1.msra.mxu0 0.0
        %715 = vmatprep.subr.mxu0 0.0
        %716 = vmatpush1.msra.mxu0 0.0
        %717 = vmatprep.subr.mxu0 0.0
        %718 = vmatpush1.msra.mxu0 0.0
        %719 = vmatprep.subr.mxu0 0.0
        %720 = vmatpush1.msra.mxu0 0.0
        %721 = vmatprep.subr.mxu0 0.0
        %722 = vmatpush1.msra.mxu0 0.0
        %723 = vmatprep.subr.mxu0 0.0
        %724 = vmatpush1.msra.mxu0 0.0
        %725 = vmatprep.subr.mxu0 %v572
        %726 = vmatpush1.msra.mxu0 %v571
        %727 = vmatprep.subr.mxu0 %v527
        %728 = vmatpush1.msra.mxu0 %v526
        %729 = vmatprep.subr.mxu0 %v482
        %730 = vmatpush1.msra.mxu0 %v481
        %731 = vmatprep.subr.mxu0 %v455
        %732 = vmatpush1.msra.mxu0 %v454
        %733 = vmatprep.subr.mxu0 %v410
        %734 = vmatpush1.msra.mxu0 %v409
        %735 = vmatprep.subr.mxu0 0.0
        %736 = vmatpush2.msra.mxu0 0.0
        %737 = vmatprep.subr.mxu0 0.0
        %738 = vmatpush2.msra.mxu0 0.0
        %739 = vmatprep.subr.mxu0 0.0
        %740 = vmatpush2.msra.mxu0 0.0
        %741 = vmatprep.subr.mxu0 0.0
        %742 = vmatpush2.msra.mxu0 0.0
        %743 = vmatprep.subr.mxu0 0.0
        %744 = vmatpush2.msra.mxu0 0.0
        %745 = vmatprep.subr.mxu0 0.0
        %746 = vmatpush2.msra.mxu0 0.0
        %747 = vmatprep.subr.mxu0 0.0
        %748 = vmatpush2.msra.mxu0 0.0
        %749 = vmatprep.subr.mxu0 0.0
        %750 = vmatpush2.msra.mxu0 0.0
        %751 = vmatprep.subr.mxu0 0.0
        %752 = vmatpush2.msra.mxu0 0.0
        %753 = vmatprep.subr.mxu0 0.0
        %754 = vmatpush2.msra.mxu0 0.0
        %755 = vmatprep.subr.mxu0 0.0
        %756 = vmatpush2.msra.mxu0 0.0
        %757 = vmatprep.subr.mxu0 0.0
        %758 = vmatpush2.msra.mxu0 0.0
        %759 = vmatprep.subr.mxu0 0.0
        %760 = vmatpush2.msra.mxu0 0.0
        %761 = vmatprep.subr.mxu0 0.0
        %762 = vmatpush2.msra.mxu0 0.0
        %763 = vmatprep.subr.mxu0 0.0
        %764 = vmatpush2.msra.mxu0 0.0
        %765 = vmatprep.subr.mxu0 0.0
        %766 = vmatpush2.msra.mxu0 0.0
        %767 = vmatprep.mubr.f32.mxu0 0.0
        %768 = vmatmul.mubr.f32.gmra.mxu0 %v603
        %v769 = vpop.f32.mrf.mxu0
        %v770 = vadd.f32 %v584, %v769
        %v771 = vpop.f32.mrf.mxu0
        %v772 = vadd.f32 %v584, %v771
        %773 = vmatprep.mubr.f32.mxu0 0.0
        %774 = vmatmul.mubr.f32.gmra.mxu0 %v606
        %v775 = vpop.f32.mrf.mxu0
        %v776 = vadd.f32 %v589, %v775
        %v777 = vpop.f32.mrf.mxu0
        %v778 = vadd.f32 %v589, %v777
        %779 = vmatprep.mubr.f32.mxu0 0.0
        %780 = vmatmul.mubr.f32.gmra.mxu0 %v609
        %v781 = vpop.f32.mrf.mxu0
        %v782 = vadd.f32 %v594, %v781
        %v783 = vpop.f32.mrf.mxu0
        %v784 = vadd.f32 %v594, %v783
        %785 = vmatprep.mubr.f32.mxu0 0.0
        %786 = vmatmul.mubr.f32.gmra.mxu0 %v612
        %v787 = vpop.f32.mrf.mxu0
        %v788 = vadd.f32 %v599, %v787
        %v789 = vpop.f32.mrf.mxu0
        %v790 = vadd.f32 %v599, %v789
        %791 = vdwg.mxu0
        %v792 = vmax.f32 %v681, 0.0
        %v793 = vmax.f32 %v683, 0.0
        %v794 = vmax.f32 %v770, 0.0
        %v795 = vmax.f32 %v772, 0.0
        %v796 = vmax.f32 %v687, 0.0
        %v797 = vmax.f32 %v689, 0.0
        %v798 = vmax.f32 %v776, 0.0
        %v799 = vmax.f32 %v778, 0.0
        %v800 = vmax.f32 %v693, 0.0
        %v801 = vmax.f32 %v695, 0.0
        %v802 = vmax.f32 %v782, 0.0
        %v803 = vmax.f32 %v784, 0.0
        %v804 = vmax.f32 %v699, 0.0
        %v805 = vmax.f32 %v701, 0.0
        %v806 = vmax.f32 %v788, 0.0
        %v807 = vmax.f32 %v790, 0.0
        %824 = vrot.lane.b32.xlu0 %v792, 127
        %v825 = vpop.permute.xlu0 %824
        %826 = vrot.lane.b32.xlu0 %v793, 127
        %v827 = vpop.permute.xlu0 %826
        %828 = vrot.lane.b32.xlu0 %v794, 127
        %v829 = vpop.permute.xlu0 %828
        %830 = vrot.lane.b32.xlu0 %v795, 127
        %v831 = vpop.permute.xlu0 %830
        %832 = vrot.lane.b32.xlu0 %v796, 127
        %v833 = vpop.permute.xlu0 %832
        %834 = vrot.lane.b32.xlu0 %v797, 127
        %v835 = vpop.permute.xlu0 %834
        %836 = vrot.lane.b32.xlu0 %v798, 127
        %v837 = vpop.permute.xlu0 %836
        %838 = vrot.lane.b32.xlu0 %v799, 127
        %v839 = vpop.permute.xlu0 %838
        %840 = vrot.lane.b32.xlu0 %v800, 127
        %v841 = vpop.permute.xlu0 %840
        %842 = vrot.lane.b32.xlu0 %v801, 127
        %v843 = vpop.permute.xlu0 %842
        %844 = vrot.lane.b32.xlu0 %v802, 127
        %v845 = vpop.permute.xlu0 %844
        %846 = vrot.lane.b32.xlu0 %v803, 127
        %v847 = vpop.permute.xlu0 %846
        %848 = vrot.lane.b32.xlu0 %v804, 127
        %v849 = vpop.permute.xlu0 %848
        %850 = vrot.lane.b32.xlu0 %v805, 127
        %v851 = vpop.permute.xlu0 %850
        %852 = vrot.lane.b32.xlu0 %v806, 127
        %v853 = vpop.permute.xlu0 %852
        %854 = vrot.lane.b32.xlu0 %v807, 127
        %v855 = vpop.permute.xlu0 %854
        %v856 = vsel %vm491, %v825, %v827
        %v857 = vsel %vm491, %v827, %v829
        %v858 = vsel %vm491, %v829, %v831
        %v859 = vsel %vm491, %v833, %v835
        %v860 = vsel %vm491, %v835, %v837
        %v861 = vsel %vm491, %v837, %v839
        %v862 = vsel %vm491, %v841, %v843
        %v863 = vsel %vm491, %v843, %v845
        %v864 = vsel %vm491, %v845, %v847
        %v865 = vsel %vm491, %v849, %v851
        %v866 = vsel %vm491, %v851, %v853
        %v867 = vsel %vm491, %v853, %v855
        %v888 = vsel %vm491, %v831, %v825
        %v889 = vsel %vm491, %v839, %v833
        %v890 = vsel %vm491, %v847, %v841
        %v891 = vsel %vm491, %v855, %v849
        %v892 = vmax.f32 %v792, %v856
        %v893 = vmax.f32 %v793, %v857
        %v894 = vmax.f32 %v794, %v858
        %v895 = vmax.f32 %v795, %v888
        %v896 = vmax.f32 %v796, %v859
        %v897 = vmax.f32 %v797, %v860
        %v898 = vmax.f32 %v798, %v861
        %v899 = vmax.f32 %v799, %v889
        %v900 = vmax.f32 %v800, %v862
        %v901 = vmax.f32 %v801, %v863
        %v902 = vmax.f32 %v802, %v864
        %v903 = vmax.f32 %v803, %v890
        %v904 = vmax.f32 %v804, %v865
        %v905 = vmax.f32 %v805, %v866
        %v906 = vmax.f32 %v806, %v867
        %v907 = vmax.f32 %v807, %v891
        %v908 = vld [vmem:[%s7] sm:$0xff]
        %v909 = vld [vmem:[%s7 + $0x8] sm:$0xff]
        %v910 = vld [vmem:[%s7 + $0x10] sm:$0xff]
        %v911 = vld [vmem:[%s7 + $0x18] sm:$0xff]
        %v912 = vld [vmem:[%s7 + $0x20] sm:$0xff]
        %v913 = vld [vmem:[%s7 + $0x28] sm:$0xff]
        %v914 = vld [vmem:[%s7 + $0x30] sm:$0xff]
        %v915 = vld [vmem:[%s7 + $0x38] sm:$0xff]
        %vm916 = vcmask 523264
        %v918 = vsel %vm916, %v892, 0
        %v921 = vsel %vm916, %v896, 0
        %v924 = vsel %vm916, %v900, 0
        %v927 = vsel %vm916, %v904, 0
        %929 = vmatprep.subr.mxu0 0.0
        %930 = vmatpush1.msra.mxu0 0.0
        %931 = vmatprep.subr.mxu0 0.0
        %932 = vmatpush1.msra.mxu0 0.0
        %933 = vmatprep.subr.mxu0 0.0
        %934 = vmatpush1.msra.mxu0 0.0
        %935 = vmatprep.subr.mxu0 0.0
        %936 = vmatpush1.msra.mxu0 0.0
        %937 = vmatprep.subr.mxu0 0.0
        %938 = vmatpush1.msra.mxu0 0.0
        %939 = vmatprep.subr.mxu0 0.0
        %940 = vmatpush1.msra.mxu0 0.0
        %941 = vmatprep.subr.mxu0 0.0
        %942 = vmatpush1.msra.mxu0 0.0
        %943 = vmatprep.subr.mxu0 0.0
        %944 = vmatpush1.msra.mxu0 0.0
        %945 = vmatprep.subr.mxu0 0.0
        %946 = vmatpush1.msra.mxu0 %v915
        %947 = vmatprep.subr.mxu0 0.0
        %948 = vmatpush1.msra.mxu0 %v914
        %949 = vmatprep.subr.mxu0 0.0
        %950 = vmatpush1.msra.mxu0 %v913
        %951 = vmatprep.subr.mxu0 0.0
        %952 = vmatpush1.msra.mxu0 %v912
        %953 = vmatprep.subr.mxu0 0.0
        %954 = vmatpush1.msra.mxu0 %v911
        %955 = vmatprep.subr.mxu0 0.0
        %956 = vmatpush1.msra.mxu0 %v910
        %957 = vmatprep.subr.mxu0 0.0
        %958 = vmatpush1.msra.mxu0 %v909
        %959 = vmatprep.subr.mxu0 0.0
        %960 = vmatpush1.msra.mxu0 %v908
        %961 = vmatprep.subr.mxu0 0.0
        %962 = vmatpush2.msra.mxu0 0.0
        %963 = vmatprep.subr.mxu0 0.0
        %964 = vmatpush2.msra.mxu0 0.0
        %965 = vmatprep.subr.mxu0 0.0
        %966 = vmatpush2.msra.mxu0 0.0
        %967 = vmatprep.subr.mxu0 0.0
        %968 = vmatpush2.msra.mxu0 0.0
        %969 = vmatprep.subr.mxu0 0.0
        %970 = vmatpush2.msra.mxu0 0.0
        %971 = vmatprep.subr.mxu0 0.0
        %972 = vmatpush2.msra.mxu0 0.0
        %973 = vmatprep.subr.mxu0 0.0
        %974 = vmatpush2.msra.mxu0 0.0
        %975 = vmatprep.subr.mxu0 0.0
        %976 = vmatpush2.msra.mxu0 0.0
        %977 = vmatprep.subr.mxu0 0.0
        %978 = vmatpush2.msra.mxu0 0.0
        %979 = vmatprep.subr.mxu0 0.0
        %980 = vmatpush2.msra.mxu0 0.0
        %981 = vmatprep.subr.mxu0 0.0
        %982 = vmatpush2.msra.mxu0 0.0
        %983 = vmatprep.subr.mxu0 0.0
        %984 = vmatpush2.msra.mxu0 0.0
        %985 = vmatprep.subr.mxu0 0.0
        %986 = vmatpush2.msra.mxu0 0.0
        %987 = vmatprep.subr.mxu0 0.0
        %988 = vmatpush2.msra.mxu0 0.0
        %989 = vmatprep.subr.mxu0 0.0
        %990 = vmatpush2.msra.mxu0 0.0
        %991 = vmatprep.subr.mxu0 0.0
        %992 = vmatpush2.msra.mxu0 0.0
        %993 = vmatprep.mubr.f32.mxu0 0.0
        %994 = vmatmul.mubr.f32.gmra.mxu0 %v918
        %v995 = vpop.f32.mrf.mxu0
        %v996 = vadd.f32 0.0, %v995
        %v997 = vpop.f32.mrf.mxu0
        %998 = vmatprep.mubr.f32.mxu0 0.0
        %999 = vmatmul.mubr.f32.gmra.mxu0 %v921
        %v1000 = vpop.f32.mrf.mxu0
        %v1001 = vadd.f32 0.0, %v1000
        %v1002 = vpop.f32.mrf.mxu0
        %1003 = vmatprep.mubr.f32.mxu0 0.0
        %1004 = vmatmul.mubr.f32.gmra.mxu0 %v924
        %v1005 = vpop.f32.mrf.mxu0
        %v1006 = vadd.f32 0.0, %v1005
        %v1007 = vpop.f32.mrf.mxu0
        %1008 = vmatprep.mubr.f32.mxu0 0.0
        %1009 = vmatmul.mubr.f32.gmra.mxu0 %v927
        %v1010 = vpop.f32.mrf.mxu0
        %v1011 = vadd.f32 0.0, %v1010
        %v1012 = vpop.f32.mrf.mxu0
        %1013 = vdwg.mxu0
        %1014 = vrot.lane.b32.xlu0 %v892, 64
        %v1015 = vpop.permute.xlu0 %1014
        %1016 = vrot.lane.b32.xlu0 %v896, 64
        %v1017 = vpop.permute.xlu0 %1016
        %1018 = vrot.lane.b32.xlu0 %v900, 64
        %v1019 = vpop.permute.xlu0 %1018
        %1020 = vrot.lane.b32.xlu0 %v904, 64
        %v1021 = vpop.permute.xlu0 %1020
        %v1022 = vsel %vm916, %v1015, 0
        %v1024 = vsel %vm916, %v1017, 0
        %v1026 = vsel %vm916, %v1019, 0
        %v1028 = vsel %vm916, %v1021, 0
        %1030 = vmatprep.subr.mxu0 0.0
        %1031 = vmatpush1.msra.mxu0 0.0
        %1032 = vmatprep.subr.mxu0 0.0
        %1033 = vmatpush1.msra.mxu0 0.0
        %1034 = vmatprep.subr.mxu0 0.0
        %1035 = vmatpush1.msra.mxu0 0.0
        %1036 = vmatprep.subr.mxu0 0.0
        %1037 = vmatpush1.msra.mxu0 0.0
        %1038 = vmatprep.subr.mxu0 0.0
        %1039 = vmatpush1.msra.mxu0 0.0
        %1040 = vmatprep.subr.mxu0 0.0
        %1041 = vmatpush1.msra.mxu0 0.0
        %1042 = vmatprep.subr.mxu0 0.0
        %1043 = vmatpush1.msra.mxu0 0.0
        %1044 = vmatprep.subr.mxu0 0.0
        %1045 = vmatpush1.msra.mxu0 0.0
        %1046 = vmatprep.subr.mxu0 0.0
        %1047 = vmatpush1.msra.mxu0 %v915
        %1048 = vmatprep.subr.mxu0 0.0
        %1049 = vmatpush1.msra.mxu0 %v914
        %1050 = vmatprep.subr.mxu0 0.0
        %1051 = vmatpush1.msra.mxu0 %v913
        %1052 = vmatprep.subr.mxu0 0.0
        %1053 = vmatpush1.msra.mxu0 %v912
        %1054 = vmatprep.subr.mxu0 0.0
        %1055 = vmatpush1.msra.mxu0 %v911
        %1056 = vmatprep.subr.mxu0 0.0
        %1057 = vmatpush1.msra.mxu0 %v910
        %1058 = vmatprep.subr.mxu0 0.0
        %1059 = vmatpush1.msra.mxu0 %v909
        %1060 = vmatprep.subr.mxu0 0.0
        %1061 = vmatpush1.msra.mxu0 %v908
        %1062 = vmatprep.subr.mxu0 0.0
        %1063 = vmatpush2.msra.mxu0 0.0
        %1064 = vmatprep.subr.mxu0 0.0
        %1065 = vmatpush2.msra.mxu0 0.0
        %1066 = vmatprep.subr.mxu0 0.0
        %1067 = vmatpush2.msra.mxu0 0.0
        %1068 = vmatprep.subr.mxu0 0.0
        %1069 = vmatpush2.msra.mxu0 0.0
        %1070 = vmatprep.subr.mxu0 0.0
        %1071 = vmatpush2.msra.mxu0 0.0
        %1072 = vmatprep.subr.mxu0 0.0
        %1073 = vmatpush2.msra.mxu0 0.0
        %1074 = vmatprep.subr.mxu0 0.0
        %1075 = vmatpush2.msra.mxu0 0.0
        %1076 = vmatprep.subr.mxu0 0.0
        %1077 = vmatpush2.msra.mxu0 0.0
        %1078 = vmatprep.subr.mxu0 0.0
        %1079 = vmatpush2.msra.mxu0 0.0
        %1080 = vmatprep.subr.mxu0 0.0
        %1081 = vmatpush2.msra.mxu0 0.0
        %1082 = vmatprep.subr.mxu0 0.0
        %1083 = vmatpush2.msra.mxu0 0.0
        %1084 = vmatprep.subr.mxu0 0.0
        %1085 = vmatpush2.msra.mxu0 0.0
        %1086 = vmatprep.subr.mxu0 0.0
        %1087 = vmatpush2.msra.mxu0 0.0
        %1088 = vmatprep.subr.mxu0 0.0
        %1089 = vmatpush2.msra.mxu0 0.0
        %1090 = vmatprep.subr.mxu0 0.0
        %1091 = vmatpush2.msra.mxu0 0.0
        %1092 = vmatprep.subr.mxu0 0.0
        %1093 = vmatpush2.msra.mxu0 0.0
        %1094 = vmatprep.mubr.f32.mxu0 0.0
        %1095 = vmatmul.mubr.f32.gmra.mxu0 %v1022
        %v1096 = vpop.f32.mrf.mxu0
        %v1097 = vadd.f32 0.0, %v1096
        %v1098 = vpop.f32.mrf.mxu0
        %1099 = vmatprep.mubr.f32.mxu0 0.0
        %1100 = vmatmul.mubr.f32.gmra.mxu0 %v1024
        %v1101 = vpop.f32.mrf.mxu0
        %v1102 = vadd.f32 0.0, %v1101
        %v1103 = vpop.f32.mrf.mxu0
        %1104 = vmatprep.mubr.f32.mxu0 0.0
        %1105 = vmatmul.mubr.f32.gmra.mxu0 %v1026
        %v1106 = vpop.f32.mrf.mxu0
        %v1107 = vadd.f32 0.0, %v1106
        %v1108 = vpop.f32.mrf.mxu0
        %1109 = vmatprep.mubr.f32.mxu0 0.0
        %1110 = vmatmul.mubr.f32.gmra.mxu0 %v1028
        %v1111 = vpop.f32.mrf.mxu0
        %v1112 = vadd.f32 0.0, %v1111
        %v1113 = vpop.f32.mrf.mxu0
        %1114 = vdwg.mxu0
        %v1116 = vsel %vm916, %v893, 0
        %v1119 = vsel %vm916, %v897, 0
        %v1122 = vsel %vm916, %v901, 0
        %v1125 = vsel %vm916, %v905, 0
        %1127 = vmatprep.subr.mxu0 0.0
        %1128 = vmatpush1.msra.mxu0 0.0
        %1129 = vmatprep.subr.mxu0 0.0
        %1130 = vmatpush1.msra.mxu0 0.0
        %1131 = vmatprep.subr.mxu0 0.0
        %1132 = vmatpush1.msra.mxu0 0.0
        %1133 = vmatprep.subr.mxu0 0.0
        %1134 = vmatpush1.msra.mxu0 0.0
        %1135 = vmatprep.subr.mxu0 0.0
        %1136 = vmatpush1.msra.mxu0 0.0
        %1137 = vmatprep.subr.mxu0 0.0
        %1138 = vmatpush1.msra.mxu0 0.0
        %1139 = vmatprep.subr.mxu0 0.0
        %1140 = vmatpush1.msra.mxu0 0.0
        %1141 = vmatprep.subr.mxu0 0.0
        %1142 = vmatpush1.msra.mxu0 0.0
        %1143 = vmatprep.subr.mxu0 0.0
        %1144 = vmatpush1.msra.mxu0 %v915
        %1145 = vmatprep.subr.mxu0 0.0
        %1146 = vmatpush1.msra.mxu0 %v914
        %1147 = vmatprep.subr.mxu0 0.0
        %1148 = vmatpush1.msra.mxu0 %v913
        %1149 = vmatprep.subr.mxu0 0.0
        %1150 = vmatpush1.msra.mxu0 %v912
        %1151 = vmatprep.subr.mxu0 0.0
        %1152 = vmatpush1.msra.mxu0 %v911
        %1153 = vmatprep.subr.mxu0 0.0
        %1154 = vmatpush1.msra.mxu0 %v910
        %1155 = vmatprep.subr.mxu0 0.0
        %1156 = vmatpush1.msra.mxu0 %v909
        %1157 = vmatprep.subr.mxu0 0.0
        %1158 = vmatpush1.msra.mxu0 %v908
        %1159 = vmatprep.subr.mxu0 0.0
        %1160 = vmatpush2.msra.mxu0 0.0
        %1161 = vmatprep.subr.mxu0 0.0
        %1162 = vmatpush2.msra.mxu0 0.0
        %1163 = vmatprep.subr.mxu0 0.0
        %1164 = vmatpush2.msra.mxu0 0.0
        %1165 = vmatprep.subr.mxu0 0.0
        %1166 = vmatpush2.msra.mxu0 0.0
        %1167 = vmatprep.subr.mxu0 0.0
        %1168 = vmatpush2.msra.mxu0 0.0
        %1169 = vmatprep.subr.mxu0 0.0
        %1170 = vmatpush2.msra.mxu0 0.0
        %1171 = vmatprep.subr.mxu0 0.0
        %1172 = vmatpush2.msra.mxu0 0.0
        %1173 = vmatprep.subr.mxu0 0.0
        %1174 = vmatpush2.msra.mxu0 0.0
        %1175 = vmatprep.subr.mxu0 0.0
        %1176 = vmatpush2.msra.mxu0 0.0
        %1177 = vmatprep.subr.mxu0 0.0
        %1178 = vmatpush2.msra.mxu0 0.0
        %1179 = vmatprep.subr.mxu0 0.0
        %1180 = vmatpush2.msra.mxu0 0.0
        %1181 = vmatprep.subr.mxu0 0.0
        %1182 = vmatpush2.msra.mxu0 0.0
        %1183 = vmatprep.subr.mxu0 0.0
        %1184 = vmatpush2.msra.mxu0 0.0
        %1185 = vmatprep.subr.mxu0 0.0
        %1186 = vmatpush2.msra.mxu0 0.0
        %1187 = vmatprep.subr.mxu0 0.0
        %1188 = vmatpush2.msra.mxu0 0.0
        %1189 = vmatprep.subr.mxu0 0.0
        %1190 = vmatpush2.msra.mxu0 0.0
        %1191 = vmatprep.mubr.f32.mxu0 0.0
        %1192 = vmatmul.mubr.f32.gmra.mxu0 %v1116
        %v1193 = vpop.f32.mrf.mxu0
        %v1194 = vadd.f32 0.0, %v1193
        %v1195 = vpop.f32.mrf.mxu0
        %1196 = vmatprep.mubr.f32.mxu0 0.0
        %1197 = vmatmul.mubr.f32.gmra.mxu0 %v1119
        %v1198 = vpop.f32.mrf.mxu0
        %v1199 = vadd.f32 0.0, %v1198
        %v1200 = vpop.f32.mrf.mxu0
        %1201 = vmatprep.mubr.f32.mxu0 0.0
        %1202 = vmatmul.mubr.f32.gmra.mxu0 %v1122
        %v1203 = vpop.f32.mrf.mxu0
        %v1204 = vadd.f32 0.0, %v1203
        %v1205 = vpop.f32.mrf.mxu0
        %1206 = vmatprep.mubr.f32.mxu0 0.0
        %1207 = vmatmul.mubr.f32.gmra.mxu0 %v1125
        %v1208 = vpop.f32.mrf.mxu0
        %v1209 = vadd.f32 0.0, %v1208
        %v1210 = vpop.f32.mrf.mxu0
        %1211 = vdwg.mxu0
        %1212 = vrot.lane.b32.xlu0 %v893, 64
        %v1213 = vpop.permute.xlu0 %1212
        %1214 = vrot.lane.b32.xlu0 %v897, 64
        %v1215 = vpop.permute.xlu0 %1214
        %1216 = vrot.lane.b32.xlu0 %v901, 64
        %v1217 = vpop.permute.xlu0 %1216
        %1218 = vrot.lane.b32.xlu0 %v905, 64
        %v1219 = vpop.permute.xlu0 %1218
        %v1220 = vsel %vm916, %v1213, 0
        %v1222 = vsel %vm916, %v1215, 0
        %v1224 = vsel %vm916, %v1217, 0
        %v1226 = vsel %vm916, %v1219, 0
        %1228 = vmatprep.subr.mxu0 0.0
        %1229 = vmatpush1.msra.mxu0 0.0
        %1230 = vmatprep.subr.mxu0 0.0
        %1231 = vmatpush1.msra.mxu0 0.0
        %1232 = vmatprep.subr.mxu0 0.0
        %1233 = vmatpush1.msra.mxu0 0.0
        %1234 = vmatprep.subr.mxu0 0.0
        %1235 = vmatpush1.msra.mxu0 0.0
        %1236 = vmatprep.subr.mxu0 0.0
        %1237 = vmatpush1.msra.mxu0 0.0
        %1238 = vmatprep.subr.mxu0 0.0
        %1239 = vmatpush1.msra.mxu0 0.0
        %1240 = vmatprep.subr.mxu0 0.0
        %1241 = vmatpush1.msra.mxu0 0.0
        %1242 = vmatprep.subr.mxu0 0.0
        %1243 = vmatpush1.msra.mxu0 0.0
        %1244 = vmatprep.subr.mxu0 0.0
        %1245 = vmatpush1.msra.mxu0 %v915
        %1246 = vmatprep.subr.mxu0 0.0
        %1247 = vmatpush1.msra.mxu0 %v914
        %1248 = vmatprep.subr.mxu0 0.0
        %1249 = vmatpush1.msra.mxu0 %v913
        %1250 = vmatprep.subr.mxu0 0.0
        %1251 = vmatpush1.msra.mxu0 %v912
        %1252 = vmatprep.subr.mxu0 0.0
        %1253 = vmatpush1.msra.mxu0 %v911
        %1254 = vmatprep.subr.mxu0 0.0
        %1255 = vmatpush1.msra.mxu0 %v910
        %1256 = vmatprep.subr.mxu0 0.0
        %1257 = vmatpush1.msra.mxu0 %v909
        %1258 = vmatprep.subr.mxu0 0.0
        %1259 = vmatpush1.msra.mxu0 %v908
        %1260 = vmatprep.subr.mxu0 0.0
        %1261 = vmatpush2.msra.mxu0 0.0
        %1262 = vmatprep.subr.mxu0 0.0
        %1263 = vmatpush2.msra.mxu0 0.0
        %1264 = vmatprep.subr.mxu0 0.0
        %1265 = vmatpush2.msra.mxu0 0.0
        %1266 = vmatprep.subr.mxu0 0.0
        %1267 = vmatpush2.msra.mxu0 0.0
        %1268 = vmatprep.subr.mxu0 0.0
        %1269 = vmatpush2.msra.mxu0 0.0
        %1270 = vmatprep.subr.mxu0 0.0
        %1271 = vmatpush2.msra.mxu0 0.0
        %1272 = vmatprep.subr.mxu0 0.0
        %1273 = vmatpush2.msra.mxu0 0.0
        %1274 = vmatprep.subr.mxu0 0.0
        %1275 = vmatpush2.msra.mxu0 0.0
        %1276 = vmatprep.subr.mxu0 0.0
        %1277 = vmatpush2.msra.mxu0 0.0
        %1278 = vmatprep.subr.mxu0 0.0
        %1279 = vmatpush2.msra.mxu0 0.0
        %1280 = vmatprep.subr.mxu0 0.0
        %1281 = vmatpush2.msra.mxu0 0.0
        %1282 = vmatprep.subr.mxu0 0.0
        %1283 = vmatpush2.msra.mxu0 0.0
        %1284 = vmatprep.subr.mxu0 0.0
        %1285 = vmatpush2.msra.mxu0 0.0
        %1286 = vmatprep.subr.mxu0 0.0
        %1287 = vmatpush2.msra.mxu0 0.0
        %1288 = vmatprep.subr.mxu0 0.0
        %1289 = vmatpush2.msra.mxu0 0.0
        %1290 = vmatprep.subr.mxu0 0.0
        %1291 = vmatpush2.msra.mxu0 0.0
        %1292 = vmatprep.mubr.f32.mxu0 0.0
        %1293 = vmatmul.mubr.f32.gmra.mxu0 %v1220
        %v1294 = vpop.f32.mrf.mxu0
        %v1295 = vadd.f32 0.0, %v1294
        %v1296 = vpop.f32.mrf.mxu0
        %1297 = vmatprep.mubr.f32.mxu0 0.0
        %1298 = vmatmul.mubr.f32.gmra.mxu0 %v1222
        %v1299 = vpop.f32.mrf.mxu0
        %v1300 = vadd.f32 0.0, %v1299
        %v1301 = vpop.f32.mrf.mxu0
        %1302 = vmatprep.mubr.f32.mxu0 0.0
        %1303 = vmatmul.mubr.f32.gmra.mxu0 %v1224
        %v1304 = vpop.f32.mrf.mxu0
        %v1305 = vadd.f32 0.0, %v1304
        %v1306 = vpop.f32.mrf.mxu0
        %1307 = vmatprep.mubr.f32.mxu0 0.0
        %1308 = vmatmul.mubr.f32.gmra.mxu0 %v1226
        %v1309 = vpop.f32.mrf.mxu0
        %v1310 = vadd.f32 0.0, %v1309
        %v1311 = vpop.f32.mrf.mxu0
        %1312 = vdwg.mxu0
        %v1314 = vsel %vm916, %v894, 0
        %v1317 = vsel %vm916, %v898, 0
        %v1320 = vsel %vm916, %v902, 0
        %v1323 = vsel %vm916, %v906, 0
        %1325 = vmatprep.subr.mxu0 0.0
        %1326 = vmatpush1.msra.mxu0 0.0
        %1327 = vmatprep.subr.mxu0 0.0
        %1328 = vmatpush1.msra.mxu0 0.0
        %1329 = vmatprep.subr.mxu0 0.0
        %1330 = vmatpush1.msra.mxu0 0.0
        %1331 = vmatprep.subr.mxu0 0.0
        %1332 = vmatpush1.msra.mxu0 0.0
        %1333 = vmatprep.subr.mxu0 0.0
        %1334 = vmatpush1.msra.mxu0 0.0
        %1335 = vmatprep.subr.mxu0 0.0
        %1336 = vmatpush1.msra.mxu0 0.0
        %1337 = vmatprep.subr.mxu0 0.0
        %1338 = vmatpush1.msra.mxu0 0.0
        %1339 = vmatprep.subr.mxu0 0.0
        %1340 = vmatpush1.msra.mxu0 0.0
        %1341 = vmatprep.subr.mxu0 0.0
        %1342 = vmatpush1.msra.mxu0 %v915
        %1343 = vmatprep.subr.mxu0 0.0
        %1344 = vmatpush1.msra.mxu0 %v914
        %1345 = vmatprep.subr.mxu0 0.0
        %1346 = vmatpush1.msra.mxu0 %v913
        %1347 = vmatprep.subr.mxu0 0.0
        %1348 = vmatpush1.msra.mxu0 %v912
        %1349 = vmatprep.subr.mxu0 0.0
        %1350 = vmatpush1.msra.mxu0 %v911
        %1351 = vmatprep.subr.mxu0 0.0
        %1352 = vmatpush1.msra.mxu0 %v910
        %1353 = vmatprep.subr.mxu0 0.0
        %1354 = vmatpush1.msra.mxu0 %v909
        %1355 = vmatprep.subr.mxu0 0.0
        %1356 = vmatpush1.msra.mxu0 %v908
        %1357 = vmatprep.subr.mxu0 0.0
        %1358 = vmatpush2.msra.mxu0 0.0
        %1359 = vmatprep.subr.mxu0 0.0
        %1360 = vmatpush2.msra.mxu0 0.0
        %1361 = vmatprep.subr.mxu0 0.0
        %1362 = vmatpush2.msra.mxu0 0.0
        %1363 = vmatprep.subr.mxu0 0.0
        %1364 = vmatpush2.msra.mxu0 0.0
        %1365 = vmatprep.subr.mxu0 0.0
        %1366 = vmatpush2.msra.mxu0 0.0
        %1367 = vmatprep.subr.mxu0 0.0
        %1368 = vmatpush2.msra.mxu0 0.0
        %1369 = vmatprep.subr.mxu0 0.0
        %1370 = vmatpush2.msra.mxu0 0.0
        %1371 = vmatprep.subr.mxu0 0.0
        %1372 = vmatpush2.msra.mxu0 0.0
        %1373 = vmatprep.subr.mxu0 0.0
        %1374 = vmatpush2.msra.mxu0 0.0
        %1375 = vmatprep.subr.mxu0 0.0
        %1376 = vmatpush2.msra.mxu0 0.0
        %1377 = vmatprep.subr.mxu0 0.0
        %1378 = vmatpush2.msra.mxu0 0.0
        %1379 = vmatprep.subr.mxu0 0.0
        %1380 = vmatpush2.msra.mxu0 0.0
        %1381 = vmatprep.subr.mxu0 0.0
        %1382 = vmatpush2.msra.mxu0 0.0
        %1383 = vmatprep.subr.mxu0 0.0
        %1384 = vmatpush2.msra.mxu0 0.0
        %1385 = vmatprep.subr.mxu0 0.0
        %1386 = vmatpush2.msra.mxu0 0.0
        %1387 = vmatprep.subr.mxu0 0.0
        %1388 = vmatpush2.msra.mxu0 0.0
        %1389 = vmatprep.mubr.f32.mxu0 0.0
        %1390 = vmatmul.mubr.f32.gmra.mxu0 %v1314
        %v1391 = vpop.f32.mrf.mxu0
        %v1392 = vadd.f32 0.0, %v1391
        %v1393 = vpop.f32.mrf.mxu0
        %1394 = vmatprep.mubr.f32.mxu0 0.0
        %1395 = vmatmul.mubr.f32.gmra.mxu0 %v1317
        %v1396 = vpop.f32.mrf.mxu0
        %v1397 = vadd.f32 0.0, %v1396
        %v1398 = vpop.f32.mrf.mxu0
        %1399 = vmatprep.mubr.f32.mxu0 0.0
        %1400 = vmatmul.mubr.f32.gmra.mxu0 %v1320
        %v1401 = vpop.f32.mrf.mxu0
        %v1402 = vadd.f32 0.0, %v1401
        %v1403 = vpop.f32.mrf.mxu0
        %1404 = vmatprep.mubr.f32.mxu0 0.0
        %1405 = vmatmul.mubr.f32.gmra.mxu0 %v1323
        %v1406 = vpop.f32.mrf.mxu0
        %v1407 = vadd.f32 0.0, %v1406
        %v1408 = vpop.f32.mrf.mxu0
        %1409 = vdwg.mxu0
        %1410 = vrot.lane.b32.xlu0 %v894, 64
        %v1411 = vpop.permute.xlu0 %1410
        %1412 = vrot.lane.b32.xlu0 %v898, 64
        %v1413 = vpop.permute.xlu0 %1412
        %1414 = vrot.lane.b32.xlu0 %v902, 64
        %v1415 = vpop.permute.xlu0 %1414
        %1416 = vrot.lane.b32.xlu0 %v906, 64
        %v1417 = vpop.permute.xlu0 %1416
        %v1418 = vsel %vm916, %v1411, 0
        %v1420 = vsel %vm916, %v1413, 0
        %v1422 = vsel %vm916, %v1415, 0
        %v1424 = vsel %vm916, %v1417, 0
        %1426 = vmatprep.subr.mxu0 0.0
        %1427 = vmatpush1.msra.mxu0 0.0
        %1428 = vmatprep.subr.mxu0 0.0
        %1429 = vmatpush1.msra.mxu0 0.0
        %1430 = vmatprep.subr.mxu0 0.0
        %1431 = vmatpush1.msra.mxu0 0.0
        %1432 = vmatprep.subr.mxu0 0.0
        %1433 = vmatpush1.msra.mxu0 0.0
        %1434 = vmatprep.subr.mxu0 0.0
        %1435 = vmatpush1.msra.mxu0 0.0
        %1436 = vmatprep.subr.mxu0 0.0
        %1437 = vmatpush1.msra.mxu0 0.0
        %1438 = vmatprep.subr.mxu0 0.0
        %1439 = vmatpush1.msra.mxu0 0.0
        %1440 = vmatprep.subr.mxu0 0.0
        %1441 = vmatpush1.msra.mxu0 0.0
        %1442 = vmatprep.subr.mxu0 0.0
        %1443 = vmatpush1.msra.mxu0 %v915
        %1444 = vmatprep.subr.mxu0 0.0
        %1445 = vmatpush1.msra.mxu0 %v914
        %1446 = vmatprep.subr.mxu0 0.0
        %1447 = vmatpush1.msra.mxu0 %v913
        %1448 = vmatprep.subr.mxu0 0.0
        %1449 = vmatpush1.msra.mxu0 %v912
        %1450 = vmatprep.subr.mxu0 0.0
        %1451 = vmatpush1.msra.mxu0 %v911
        %1452 = vmatprep.subr.mxu0 0.0
        %1453 = vmatpush1.msra.mxu0 %v910
        %1454 = vmatprep.subr.mxu0 0.0
        %1455 = vmatpush1.msra.mxu0 %v909
        %1456 = vmatprep.subr.mxu0 0.0
        %1457 = vmatpush1.msra.mxu0 %v908
        %1458 = vmatprep.subr.mxu0 0.0
        %1459 = vmatpush2.msra.mxu0 0.0
        %1460 = vmatprep.subr.mxu0 0.0
        %1461 = vmatpush2.msra.mxu0 0.0
        %1462 = vmatprep.subr.mxu0 0.0
        %1463 = vmatpush2.msra.mxu0 0.0
        %1464 = vmatprep.subr.mxu0 0.0
        %1465 = vmatpush2.msra.mxu0 0.0
        %1466 = vmatprep.subr.mxu0 0.0
        %1467 = vmatpush2.msra.mxu0 0.0
        %1468 = vmatprep.subr.mxu0 0.0
        %1469 = vmatpush2.msra.mxu0 0.0
        %1470 = vmatprep.subr.mxu0 0.0
        %1471 = vmatpush2.msra.mxu0 0.0
        %1472 = vmatprep.subr.mxu0 0.0
        %1473 = vmatpush2.msra.mxu0 0.0
        %1474 = vmatprep.subr.mxu0 0.0
        %1475 = vmatpush2.msra.mxu0 0.0
        %1476 = vmatprep.subr.mxu0 0.0
        %1477 = vmatpush2.msra.mxu0 0.0
        %1478 = vmatprep.subr.mxu0 0.0
        %1479 = vmatpush2.msra.mxu0 0.0
        %1480 = vmatprep.subr.mxu0 0.0
        %1481 = vmatpush2.msra.mxu0 0.0
        %1482 = vmatprep.subr.mxu0 0.0
        %1483 = vmatpush2.msra.mxu0 0.0
        %1484 = vmatprep.subr.mxu0 0.0
        %1485 = vmatpush2.msra.mxu0 0.0
        %1486 = vmatprep.subr.mxu0 0.0
        %1487 = vmatpush2.msra.mxu0 0.0
        %1488 = vmatprep.subr.mxu0 0.0
        %1489 = vmatpush2.msra.mxu0 0.0
        %1490 = vmatprep.mubr.f32.mxu0 0.0
        %1491 = vmatmul.mubr.f32.gmra.mxu0 %v1418
        %v1492 = vpop.f32.mrf.mxu0
        %v1493 = vadd.f32 0.0, %v1492
        %v1494 = vpop.f32.mrf.mxu0
        %1495 = vmatprep.mubr.f32.mxu0 0.0
        %1496 = vmatmul.mubr.f32.gmra.mxu0 %v1420
        %v1497 = vpop.f32.mrf.mxu0
        %v1498 = vadd.f32 0.0, %v1497
        %v1499 = vpop.f32.mrf.mxu0
        %1500 = vmatprep.mubr.f32.mxu0 0.0
        %1501 = vmatmul.mubr.f32.gmra.mxu0 %v1422
        %v1502 = vpop.f32.mrf.mxu0
        %v1503 = vadd.f32 0.0, %v1502
        %v1504 = vpop.f32.mrf.mxu0
        %1505 = vmatprep.mubr.f32.mxu0 0.0
        %1506 = vmatmul.mubr.f32.gmra.mxu0 %v1424
        %v1507 = vpop.f32.mrf.mxu0
        %v1508 = vadd.f32 0.0, %v1507
        %v1509 = vpop.f32.mrf.mxu0
        %1510 = vdwg.mxu0
        %v1512 = vsel %vm916, %v895, 0
        %v1515 = vsel %vm916, %v899, 0
        %v1518 = vsel %vm916, %v903, 0
        %v1521 = vsel %vm916, %v907, 0
        %1523 = vmatprep.subr.mxu0 0.0
        %1524 = vmatpush1.msra.mxu0 0.0
        %1525 = vmatprep.subr.mxu0 0.0
        %1526 = vmatpush1.msra.mxu0 0.0
        %1527 = vmatprep.subr.mxu0 0.0
        %1528 = vmatpush1.msra.mxu0 0.0
        %1529 = vmatprep.subr.mxu0 0.0
        %1530 = vmatpush1.msra.mxu0 0.0
        %1531 = vmatprep.subr.mxu0 0.0
        %1532 = vmatpush1.msra.mxu0 0.0
        %1533 = vmatprep.subr.mxu0 0.0
        %1534 = vmatpush1.msra.mxu0 0.0
        %1535 = vmatprep.subr.mxu0 0.0
        %1536 = vmatpush1.msra.mxu0 0.0
        %1537 = vmatprep.subr.mxu0 0.0
        %1538 = vmatpush1.msra.mxu0 0.0
        %1539 = vmatprep.subr.mxu0 0.0
        %1540 = vmatpush1.msra.mxu0 %v915
        %1541 = vmatprep.subr.mxu0 0.0
        %1542 = vmatpush1.msra.mxu0 %v914
        %1543 = vmatprep.subr.mxu0 0.0
        %1544 = vmatpush1.msra.mxu0 %v913
        %1545 = vmatprep.subr.mxu0 0.0
        %1546 = vmatpush1.msra.mxu0 %v912
        %1547 = vmatprep.subr.mxu0 0.0
        %1548 = vmatpush1.msra.mxu0 %v911
        %1549 = vmatprep.subr.mxu0 0.0
        %1550 = vmatpush1.msra.mxu0 %v910
        %1551 = vmatprep.subr.mxu0 0.0
        %1552 = vmatpush1.msra.mxu0 %v909
        %1553 = vmatprep.subr.mxu0 0.0
        %1554 = vmatpush1.msra.mxu0 %v908
        %1555 = vmatprep.subr.mxu0 0.0
        %1556 = vmatpush2.msra.mxu0 0.0
        %1557 = vmatprep.subr.mxu0 0.0
        %1558 = vmatpush2.msra.mxu0 0.0
        %1559 = vmatprep.subr.mxu0 0.0
        %1560 = vmatpush2.msra.mxu0 0.0
        %1561 = vmatprep.subr.mxu0 0.0
        %1562 = vmatpush2.msra.mxu0 0.0
        %1563 = vmatprep.subr.mxu0 0.0
        %1564 = vmatpush2.msra.mxu0 0.0
        %1565 = vmatprep.subr.mxu0 0.0
        %1566 = vmatpush2.msra.mxu0 0.0
        %1567 = vmatprep.subr.mxu0 0.0
        %1568 = vmatpush2.msra.mxu0 0.0
        %1569 = vmatprep.subr.mxu0 0.0
        %1570 = vmatpush2.msra.mxu0 0.0
        %1571 = vmatprep.subr.mxu0 0.0
        %1572 = vmatpush2.msra.mxu0 0.0
        %1573 = vmatprep.subr.mxu0 0.0
        %1574 = vmatpush2.msra.mxu0 0.0
        %1575 = vmatprep.subr.mxu0 0.0
        %1576 = vmatpush2.msra.mxu0 0.0
        %1577 = vmatprep.subr.mxu0 0.0
        %1578 = vmatpush2.msra.mxu0 0.0
        %1579 = vmatprep.subr.mxu0 0.0
        %1580 = vmatpush2.msra.mxu0 0.0
        %1581 = vmatprep.subr.mxu0 0.0
        %1582 = vmatpush2.msra.mxu0 0.0
        %1583 = vmatprep.subr.mxu0 0.0
        %1584 = vmatpush2.msra.mxu0 0.0
        %1585 = vmatprep.subr.mxu0 0.0
        %1586 = vmatpush2.msra.mxu0 0.0
        %1587 = vmatprep.mubr.f32.mxu0 0.0
        %1588 = vmatmul.mubr.f32.gmra.mxu0 %v1512
        %v1589 = vpop.f32.mrf.mxu0
        %v1590 = vadd.f32 0.0, %v1589
        %v1591 = vpop.f32.mrf.mxu0
        %1592 = vmatprep.mubr.f32.mxu0 0.0
        %1593 = vmatmul.mubr.f32.gmra.mxu0 %v1515
        %v1594 = vpop.f32.mrf.mxu0
        %v1595 = vadd.f32 0.0, %v1594
        %v1596 = vpop.f32.mrf.mxu0
        %1597 = vmatprep.mubr.f32.mxu0 0.0
        %1598 = vmatmul.mubr.f32.gmra.mxu0 %v1518
        %v1599 = vpop.f32.mrf.mxu0
        %v1600 = vadd.f32 0.0, %v1599
        %v1601 = vpop.f32.mrf.mxu0
        %1602 = vmatprep.mubr.f32.mxu0 0.0
        %1603 = vmatmul.mubr.f32.gmra.mxu0 %v1521
        %v1604 = vpop.f32.mrf.mxu0
        %v1605 = vadd.f32 0.0, %v1604
        %v1606 = vpop.f32.mrf.mxu0
        %1607 = vdwg.mxu0
        %1608 = vrot.lane.b32.xlu0 %v895, 64
        %v1609 = vpop.permute.xlu0 %1608
        %1610 = vrot.lane.b32.xlu0 %v899, 64
        %v1611 = vpop.permute.xlu0 %1610
        %1612 = vrot.lane.b32.xlu0 %v903, 64
        %v1613 = vpop.permute.xlu0 %1612
        %1614 = vrot.lane.b32.xlu0 %v907, 64
        %v1615 = vpop.permute.xlu0 %1614
        %v1616 = vsel %vm916, %v1609, 0
        %v1618 = vsel %vm916, %v1611, 0
        %v1620 = vsel %vm916, %v1613, 0
        %v1622 = vsel %vm916, %v1615, 0
        %1624 = vmatprep.subr.mxu0 0.0
        %1625 = vmatpush1.msra.mxu0 0.0
        %1626 = vmatprep.subr.mxu0 0.0
        %1627 = vmatpush1.msra.mxu0 0.0
        %1628 = vmatprep.subr.mxu0 0.0
        %1629 = vmatpush1.msra.mxu0 0.0
        %1630 = vmatprep.subr.mxu0 0.0
        %1631 = vmatpush1.msra.mxu0 0.0
        %1632 = vmatprep.subr.mxu0 0.0
        %1633 = vmatpush1.msra.mxu0 0.0
        %1634 = vmatprep.subr.mxu0 0.0
        %1635 = vmatpush1.msra.mxu0 0.0
        %1636 = vmatprep.subr.mxu0 0.0
        %1637 = vmatpush1.msra.mxu0 0.0
        %1638 = vmatprep.subr.mxu0 0.0
        %1639 = vmatpush1.msra.mxu0 0.0
        %1640 = vmatprep.subr.mxu0 0.0
        %1641 = vmatpush1.msra.mxu0 %v915
        %1642 = vmatprep.subr.mxu0 0.0
        %1643 = vmatpush1.msra.mxu0 %v914
        %1644 = vmatprep.subr.mxu0 0.0
        %1645 = vmatpush1.msra.mxu0 %v913
        %1646 = vmatprep.subr.mxu0 0.0
        %1647 = vmatpush1.msra.mxu0 %v912
        %1648 = vmatprep.subr.mxu0 0.0
        %1649 = vmatpush1.msra.mxu0 %v911
        %1650 = vmatprep.subr.mxu0 0.0
        %1651 = vmatpush1.msra.mxu0 %v910
        %1652 = vmatprep.subr.mxu0 0.0
        %1653 = vmatpush1.msra.mxu0 %v909
        %1654 = vmatprep.subr.mxu0 0.0
        %1655 = vmatpush1.msra.mxu0 %v908
        %1656 = vmatprep.subr.mxu0 0.0
        %1657 = vmatpush2.msra.mxu0 0.0
        %1658 = vmatprep.subr.mxu0 0.0
        %1659 = vmatpush2.msra.mxu0 0.0
        %1660 = vmatprep.subr.mxu0 0.0
        %1661 = vmatpush2.msra.mxu0 0.0
        %1662 = vmatprep.subr.mxu0 0.0
        %1663 = vmatpush2.msra.mxu0 0.0
        %1664 = vmatprep.subr.mxu0 0.0
        %1665 = vmatpush2.msra.mxu0 0.0
        %1666 = vmatprep.subr.mxu0 0.0
        %1667 = vmatpush2.msra.mxu0 0.0
        %1668 = vmatprep.subr.mxu0 0.0
        %1669 = vmatpush2.msra.mxu0 0.0
        %1670 = vmatprep.subr.mxu0 0.0
        %1671 = vmatpush2.msra.mxu0 0.0
        %1672 = vmatprep.subr.mxu0 0.0
        %1673 = vmatpush2.msra.mxu0 0.0
        %1674 = vmatprep.subr.mxu0 0.0
        %1675 = vmatpush2.msra.mxu0 0.0
        %1676 = vmatprep.subr.mxu0 0.0
        %1677 = vmatpush2.msra.mxu0 0.0
        %1678 = vmatprep.subr.mxu0 0.0
        %1679 = vmatpush2.msra.mxu0 0.0
        %1680 = vmatprep.subr.mxu0 0.0
        %1681 = vmatpush2.msra.mxu0 0.0
        %1682 = vmatprep.subr.mxu0 0.0
        %1683 = vmatpush2.msra.mxu0 0.0
        %1684 = vmatprep.subr.mxu0 0.0
        %1685 = vmatpush2.msra.mxu0 0.0
        %1686 = vmatprep.subr.mxu0 0.0
        %1687 = vmatpush2.msra.mxu0 0.0
        %1688 = vmatprep.mubr.f32.mxu0 0.0
        %1689 = vmatmul.mubr.f32.gmra.mxu0 %v1616
        %v1690 = vpop.f32.mrf.mxu0
        %v1691 = vadd.f32 0.0, %v1690
        %v1692 = vpop.f32.mrf.mxu0
        %1693 = vmatprep.mubr.f32.mxu0 0.0
        %1694 = vmatmul.mubr.f32.gmra.mxu0 %v1618
        %v1695 = vpop.f32.mrf.mxu0
        %v1696 = vadd.f32 0.0, %v1695
        %v1697 = vpop.f32.mrf.mxu0
        %1698 = vmatprep.mubr.f32.mxu0 0.0
        %1699 = vmatmul.mubr.f32.gmra.mxu0 %v1620
        %v1700 = vpop.f32.mrf.mxu0
        %v1701 = vadd.f32 0.0, %v1700
        %v1702 = vpop.f32.mrf.mxu0
        %1703 = vmatprep.mubr.f32.mxu0 0.0
        %1704 = vmatmul.mubr.f32.gmra.mxu0 %v1622
        %v1705 = vpop.f32.mrf.mxu0
        %v1706 = vadd.f32 0.0, %v1705
        %v1707 = vpop.f32.mrf.mxu0
        %1708 = vdwg.mxu0
        %1713 = vrot.lane.b32.xlu0 %v1097, 32
        %v1714 = vpop.permute.xlu0 %1713
        %1715 = vrot.lane.b32.xlu0 %v1102, 32
        %v1716 = vpop.permute.xlu0 %1715
        %1717 = vrot.lane.b32.xlu0 %v1107, 32
        %v1718 = vpop.permute.xlu0 %1717
        %1719 = vrot.lane.b32.xlu0 %v1112, 32
        %v1720 = vpop.permute.xlu0 %1719
        %1729 = vrot.lane.b32.xlu0 %v1194, 64
        %v1730 = vpop.permute.xlu0 %1729
        %1731 = vrot.lane.b32.xlu0 %v1199, 64
        %v1732 = vpop.permute.xlu0 %1731
        %1733 = vrot.lane.b32.xlu0 %v1204, 64
        %v1734 = vpop.permute.xlu0 %1733
        %1735 = vrot.lane.b32.xlu0 %v1209, 64
        %v1736 = vpop.permute.xlu0 %1735
        %1745 = vrot.lane.b32.xlu0 %v1295, 96
        %v1746 = vpop.permute.xlu0 %1745
        %1747 = vrot.lane.b32.xlu0 %v1300, 96
        %v1748 = vpop.permute.xlu0 %1747
        %1749 = vrot.lane.b32.xlu0 %v1305, 96
        %v1750 = vpop.permute.xlu0 %1749
        %1751 = vrot.lane.b32.xlu0 %v1310, 96
        %v1752 = vpop.permute.xlu0 %1751
        %1761 = vrot.lane.b32.xlu0 %v1493, 32
        %v1762 = vpop.permute.xlu0 %1761
        %1763 = vrot.lane.b32.xlu0 %v1498, 32
        %v1764 = vpop.permute.xlu0 %1763
        %1765 = vrot.lane.b32.xlu0 %v1503, 32
        %v1766 = vpop.permute.xlu0 %1765
        %1767 = vrot.lane.b32.xlu0 %v1508, 32
        %v1768 = vpop.permute.xlu0 %1767
        %1777 = vrot.lane.b32.xlu0 %v1590, 64
        %v1778 = vpop.permute.xlu0 %1777
        %1779 = vrot.lane.b32.xlu0 %v1595, 64
        %v1780 = vpop.permute.xlu0 %1779
        %1781 = vrot.lane.b32.xlu0 %v1600, 64
        %v1782 = vpop.permute.xlu0 %1781
        %1783 = vrot.lane.b32.xlu0 %v1605, 64
        %v1784 = vpop.permute.xlu0 %1783
        %1793 = vrot.lane.b32.xlu0 %v1691, 96
        %v1794 = vpop.permute.xlu0 %1793
        %1795 = vrot.lane.b32.xlu0 %v1696, 96
        %v1796 = vpop.permute.xlu0 %1795
        %1797 = vrot.lane.b32.xlu0 %v1701, 96
        %v1798 = vpop.permute.xlu0 %1797
        %1799 = vrot.lane.b32.xlu0 %v1706, 96
        %v1800 = vpop.permute.xlu0 %1799
        %vm1805 = vcmask 261120
        %v1806 = vsel %vm1805, %v996, %v1714
        %v1807 = vsel %vm1805, %v1001, %v1716
        %v1808 = vsel %vm1805, %v1006, %v1718
        %v1809 = vsel %vm1805, %v1011, %v1720
        %v1810 = vsel %vm916, %v1806, %v1730
        %v1811 = vsel %vm916, %v1807, %v1732
        %v1812 = vsel %vm916, %v1808, %v1734
        %v1813 = vsel %vm916, %v1809, %v1736
        %vm1814 = vcmask 785408
        %v1815 = vsel %vm1814, %v1810, %v1746
        %v1816 = vsel %vm1814, %v1811, %v1748
        %v1817 = vsel %vm1814, %v1812, %v1750
        %v1818 = vsel %vm1814, %v1813, %v1752
        %v1819 = vsel %vm1805, %v1392, %v1762
        %v1820 = vsel %vm1805, %v1397, %v1764
        %v1821 = vsel %vm1805, %v1402, %v1766
        %v1822 = vsel %vm1805, %v1407, %v1768
        %v1823 = vsel %vm916, %v1819, %v1778
        %v1824 = vsel %vm916, %v1820, %v1780
        %v1825 = vsel %vm916, %v1821, %v1782
        %v1826 = vsel %vm916, %v1822, %v1784
        %v1827 = vsel %vm1814, %v1823, %v1794
        %v1828 = vsel %vm1814, %v1824, %v1796
        %v1829 = vsel %vm1814, %v1825, %v1798
        %v1830 = vsel %vm1814, %v1826, %v1800
        %1835 = vrot.lane.b32.xlu0 %v1827, 2
        %v1836 = vpop.permute.xlu0 %1835
        %1837 = vrot.lane.b32.xlu0 %v1828, 2
        %v1838 = vpop.permute.xlu0 %1837
        %1839 = vrot.lane.b32.xlu0 %v1829, 2
        %v1840 = vpop.permute.xlu0 %1839
        %1841 = vrot.lane.b32.xlu0 %v1830, 2
        %v1842 = vpop.permute.xlu0 %1841
        %1851 = vrot.lane.b32.xlu0 %v1815, 2
        %v1852 = vpop.permute.xlu0 %1851
        %1853 = vrot.lane.b32.xlu0 %v1816, 2
        %v1854 = vpop.permute.xlu0 %1853
        %1855 = vrot.lane.b32.xlu0 %v1817, 2
        %v1856 = vpop.permute.xlu0 %1855
        %1857 = vrot.lane.b32.xlu0 %v1818, 2
        %v1858 = vpop.permute.xlu0 %1857
        %v1859 = vsel %vm376, %v1852, %v1836
        %v1860 = vsel %vm376, %v1854, %v1838
        %v1861 = vsel %vm376, %v1856, %v1840
        %v1862 = vsel %vm376, %v1858, %v1842
        %v1871 = vsel %vm376, %v1836, %v1852
        %v1872 = vsel %vm376, %v1838, %v1854
        %v1873 = vsel %vm376, %v1840, %v1856
        %v1874 = vsel %vm376, %v1842, %v1858
        %v1875 = vld [vmem:[#allocation5] ss:$8 sm:$0x3]
        %v1877 = vlaneseq
        %v1878 = vshrl.u32 %v1877, 7
        %v1879 = vsub.s32 0, %v1878
        %v1880 = vrot.slane %v1875, %v1879
        %v1881 = vlaneseq
        %v1882 = vshrl.u32 %v1881, 7
        %v1883 = vsub.s32 1, %v1882
        %v1884 = vrot.slane %v1875, %v1883
        %v1887 = vmul.f32 %v1871, %v1880
        %v1888 = vmul.f32 %v1859, %v1884
        %v1889 = vmul.f32 %v1872, %v1880
        %v1890 = vmul.f32 %v1860, %v1884
        %v1891 = vmul.f32 %v1873, %v1880
        %v1892 = vmul.f32 %v1861, %v1884
        %v1893 = vmul.f32 %v1874, %v1880
        %v1894 = vmul.f32 %v1862, %v1884
        %1895 = vrot.lane.b32.xlu0 %v1827, 1
        %v1896 = vpop.permute.xlu0 %1895
        %1897 = vrot.lane.b32.xlu0 %v1828, 1
        %v1898 = vpop.permute.xlu0 %1897
        %1899 = vrot.lane.b32.xlu0 %v1829, 1
        %v1900 = vpop.permute.xlu0 %1899
        %1901 = vrot.lane.b32.xlu0 %v1830, 1
        %v1902 = vpop.permute.xlu0 %1901
        %1907 = vrot.lane.b32.xlu0 %v1815, 1
        %v1908 = vpop.permute.xlu0 %1907
        %1909 = vrot.lane.b32.xlu0 %v1816, 1
        %v1910 = vpop.permute.xlu0 %1909
        %1911 = vrot.lane.b32.xlu0 %v1817, 1
        %v1912 = vpop.permute.xlu0 %1911
        %1913 = vrot.lane.b32.xlu0 %v1818, 1
        %v1914 = vpop.permute.xlu0 %1913
        %v1915 = vsel %vm420, %v1908, %v1896
        %v1916 = vsel %vm420, %v1910, %v1898
        %v1917 = vsel %vm420, %v1912, %v1900
        %v1918 = vsel %vm420, %v1914, %v1902
        %v1927 = vsel %vm420, %v1896, %v1908
        %v1928 = vsel %vm420, %v1898, %v1910
        %v1929 = vsel %vm420, %v1900, %v1912
        %v1930 = vsel %vm420, %v1902, %v1914
        %s1931 = scalar_lea.vmem [#allocation5], 1
        %v1932 = vld [vmem:[%s1931] ss:$8 sm:$0x3]
        %v1934 = vlaneseq
        %v1935 = vshrl.u32 %v1934, 7
        %v1936 = vsub.s32 0, %v1935
        %v1937 = vrot.slane %v1932, %v1936
        %v1938 = vlaneseq
        %v1939 = vshrl.u32 %v1938, 7
        %v1940 = vsub.s32 1, %v1939
        %v1941 = vrot.slane %v1932, %v1940
        %v1944 = vmul.f32 %v1927, %v1937
        %v1945 = vmul.f32 %v1915, %v1941
        %v1946 = vmul.f32 %v1928, %v1937
        %v1947 = vmul.f32 %v1916, %v1941
        %v1948 = vmul.f32 %v1929, %v1937
        %v1949 = vmul.f32 %v1917, %v1941
        %v1950 = vmul.f32 %v1930, %v1937
        %v1951 = vmul.f32 %v1918, %v1941
        %s1952 = scalar_lea.vmem [#allocation5], 2
        %v1953 = vld [vmem:[%s1952] ss:$8 sm:$0x3]
        %v1955 = vlaneseq
        %v1956 = vshrl.u32 %v1955, 7
        %v1957 = vsub.s32 0, %v1956
        %v1958 = vrot.slane %v1953, %v1957
        %v1959 = vlaneseq
        %v1960 = vshrl.u32 %v1959, 7
        %v1961 = vsub.s32 1, %v1960
        %v1962 = vrot.slane %v1953, %v1961
        %v1965 = vmul.f32 %v1815, %v1958
        %v1966 = vmul.f32 %v1827, %v1962
        %v1967 = vmul.f32 %v1816, %v1958
        %v1968 = vmul.f32 %v1828, %v1962
        %v1969 = vmul.f32 %v1817, %v1958
        %v1970 = vmul.f32 %v1829, %v1962
        %v1971 = vmul.f32 %v1818, %v1958
        %v1972 = vmul.f32 %v1830, %v1962
        %1973 = vrot.lane.b32.xlu0 %v1815, 127
        %v1974 = vpop.permute.xlu0 %1973
        %1975 = vrot.lane.b32.xlu0 %v1827, 127
        %v1976 = vpop.permute.xlu0 %1975
        %1977 = vrot.lane.b32.xlu0 %v1816, 127
        %v1978 = vpop.permute.xlu0 %1977
        %1979 = vrot.lane.b32.xlu0 %v1828, 127
        %v1980 = vpop.permute.xlu0 %1979
        %1981 = vrot.lane.b32.xlu0 %v1817, 127
        %v1982 = vpop.permute.xlu0 %1981
        %1983 = vrot.lane.b32.xlu0 %v1829, 127
        %v1984 = vpop.permute.xlu0 %1983
        %1985 = vrot.lane.b32.xlu0 %v1818, 127
        %v1986 = vpop.permute.xlu0 %1985
        %1987 = vrot.lane.b32.xlu0 %v1830, 127
        %v1988 = vpop.permute.xlu0 %1987
        %v1989 = vsel %vm491, %v1974, %v1976
        %v1990 = vsel %vm491, %v1978, %v1980
        %v1991 = vsel %vm491, %v1982, %v1984
        %v1992 = vsel %vm491, %v1986, %v1988
        %v2005 = vsel %vm491, %v1976, %v1974
        %v2006 = vsel %vm491, %v1980, %v1978
        %v2007 = vsel %vm491, %v1984, %v1982
        %v2008 = vsel %vm491, %v1988, %v1986
        %s2009 = scalar_lea.vmem [#allocation5], 3
        %v2010 = vld [vmem:[%s2009] ss:$8 sm:$0x3]
        %v2012 = vlaneseq
        %v2013 = vshrl.u32 %v2012, 7
        %v2014 = vsub.s32 0, %v2013
        %v2015 = vrot.slane %v2010, %v2014
        %v2016 = vlaneseq
        %v2017 = vshrl.u32 %v2016, 7
        %v2018 = vsub.s32 1, %v2017
        %v2019 = vrot.slane %v2010, %v2018
        %v2022 = vmul.f32 %v1989, %v2015
        %v2023 = vmul.f32 %v2005, %v2019
        %v2024 = vmul.f32 %v1990, %v2015
        %v2025 = vmul.f32 %v2006, %v2019
        %v2026 = vmul.f32 %v1991, %v2015
        %v2027 = vmul.f32 %v2007, %v2019
        %v2028 = vmul.f32 %v1992, %v2015
        %v2029 = vmul.f32 %v2008, %v2019
        %2030 = vrot.lane.b32.xlu0 %v1815, 126
        %v2031 = vpop.permute.xlu0 %2030
        %2032 = vrot.lane.b32.xlu0 %v1827, 126
        %v2033 = vpop.permute.xlu0 %2032
        %2034 = vrot.lane.b32.xlu0 %v1816, 126
        %v2035 = vpop.permute.xlu0 %2034
        %2036 = vrot.lane.b32.xlu0 %v1828, 126
        %v2037 = vpop.permute.xlu0 %2036
        %2038 = vrot.lane.b32.xlu0 %v1817, 126
        %v2039 = vpop.permute.xlu0 %2038
        %2040 = vrot.lane.b32.xlu0 %v1829, 126
        %v2041 = vpop.permute.xlu0 %2040
        %2042 = vrot.lane.b32.xlu0 %v1818, 126
        %v2043 = vpop.permute.xlu0 %2042
        %2044 = vrot.lane.b32.xlu0 %v1830, 126
        %v2045 = vpop.permute.xlu0 %2044
        %v2046 = vsel %vm536, %v2031, %v2033
        %v2047 = vsel %vm536, %v2035, %v2037
        %v2048 = vsel %vm536, %v2039, %v2041
        %v2049 = vsel %vm536, %v2043, %v2045
        %v2062 = vsel %vm536, %v2033, %v2031
        %v2063 = vsel %vm536, %v2037, %v2035
        %v2064 = vsel %vm536, %v2041, %v2039
        %v2065 = vsel %vm536, %v2045, %v2043
        %s2066 = scalar_lea.vmem [#allocation5], 4
        %v2067 = vld [vmem:[%s2066] ss:$8 sm:$0x3]
        %v2069 = vlaneseq
        %v2070 = vshrl.u32 %v2069, 7
        %v2071 = vsub.s32 0, %v2070
        %v2072 = vrot.slane %v2067, %v2071
        %v2073 = vlaneseq
        %v2074 = vshrl.u32 %v2073, 7
        %v2075 = vsub.s32 1, %v2074
        %v2076 = vrot.slane %v2067, %v2075
        %v2079 = vmul.f32 %v2046, %v2072
        %v2080 = vmul.f32 %v2062, %v2076
        %v2081 = vmul.f32 %v2047, %v2072
        %v2082 = vmul.f32 %v2063, %v2076
        %v2083 = vmul.f32 %v2048, %v2072
        %v2084 = vmul.f32 %v2064, %v2076
        %v2085 = vmul.f32 %v2049, %v2072
        %v2086 = vmul.f32 %v2065, %v2076
        %v2087 = vld [vmem:[%s3] sm:$0xff]
        %v2088 = vld [vmem:[%s3 + $0x8] sm:$0xff]
        %v2089 = vld [vmem:[%s3 + $0x10] sm:$0xff]
        %v2090 = vld [vmem:[%s3 + $0x18] sm:$0xff]
        %v2091 = vld [vmem:[%s3 + $0x20] sm:$0xff]
        %v2092 = vld [vmem:[%s3 + $0x28] sm:$0xff]
        %v2093 = vld [vmem:[%s3 + $0x30] sm:$0xff]
        %v2094 = vld [vmem:[%s3 + $0x38] sm:$0xff]
        %v2095 = vld [vmem:[%s4] sm:$0xff]
        %v2096 = vld [vmem:[%s4 + $0x8] sm:$0xff]
        %v2097 = vld [vmem:[%s4 + $0x10] sm:$0xff]
        %v2098 = vld [vmem:[%s4 + $0x18] sm:$0xff]
        %2100 = vset.pattern.permute.xlu0 0
        %2101 = vperm.xlu0 %2100, %v2095
        %v2102 = vpop.permute.xlu0 %2101
        %2105 = vset.pattern.permute.xlu0 0
        %2106 = vperm.xlu0 %2105, %v2096
        %v2107 = vpop.permute.xlu0 %2106
        %2110 = vset.pattern.permute.xlu0 0
        %2111 = vperm.xlu0 %2110, %v2097
        %v2112 = vpop.permute.xlu0 %2111
        %2115 = vset.pattern.permute.xlu0 0
        %2116 = vperm.xlu0 %2115, %v2098
        %v2117 = vpop.permute.xlu0 %2116
        %v2120 = vsel %vm1805, %v2088, 0
        %v2123 = vsel %vm1805, %v2090, 0
        %v2126 = vsel %vm1805, %v2092, 0
        %v2129 = vsel %vm1805, %v2094, 0
        %2131 = vmatprep.subr.mxu0 %v2029
        %2132 = vmatpush1.msra.mxu0 %v2028
        %2133 = vmatprep.subr.mxu0 %v2027
        %2134 = vmatpush1.msra.mxu0 %v2026
        %2135 = vmatprep.subr.mxu0 %v2025
        %2136 = vmatpush1.msra.mxu0 %v2024
        %2137 = vmatprep.subr.mxu0 %v2023
        %2138 = vmatpush1.msra.mxu0 %v2022
        %2139 = vmatprep.subr.mxu0 %v1972
        %2140 = vmatpush1.msra.mxu0 %v1971
        %2141 = vmatprep.subr.mxu0 %v1970
        %2142 = vmatpush1.msra.mxu0 %v1969
        %2143 = vmatprep.subr.mxu0 %v1968
        %2144 = vmatpush1.msra.mxu0 %v1967
        %2145 = vmatprep.subr.mxu0 %v1966
        %2146 = vmatpush1.msra.mxu0 %v1965
        %2147 = vmatprep.subr.mxu0 %v1951
        %2148 = vmatpush1.msra.mxu0 %v1950
        %2149 = vmatprep.subr.mxu0 %v1949
        %2150 = vmatpush1.msra.mxu0 %v1948
        %2151 = vmatprep.subr.mxu0 %v1947
        %2152 = vmatpush1.msra.mxu0 %v1946
        %2153 = vmatprep.subr.mxu0 %v1945
        %2154 = vmatpush1.msra.mxu0 %v1944
        %2155 = vmatprep.subr.mxu0 %v1894
        %2156 = vmatpush1.msra.mxu0 %v1893
        %2157 = vmatprep.subr.mxu0 %v1892
        %2158 = vmatpush1.msra.mxu0 %v1891
        %2159 = vmatprep.subr.mxu0 %v1890
        %2160 = vmatpush1.msra.mxu0 %v1889
        %2161 = vmatprep.subr.mxu0 %v1888
        %2162 = vmatpush1.msra.mxu0 %v1887
        %2163 = vmatprep.subr.mxu0 0.0
        %2164 = vmatpush2.msra.mxu0 0.0
        %2165 = vmatprep.subr.mxu0 0.0
        %2166 = vmatpush2.msra.mxu0 0.0
        %2167 = vmatprep.subr.mxu0 0.0
        %2168 = vmatpush2.msra.mxu0 0.0
        %2169 = vmatprep.subr.mxu0 0.0
        %2170 = vmatpush2.msra.mxu0 0.0
        %2171 = vmatprep.subr.mxu0 0.0
        %2172 = vmatpush2.msra.mxu0 0.0
        %2173 = vmatprep.subr.mxu0 0.0
        %2174 = vmatpush2.msra.mxu0 0.0
        %2175 = vmatprep.subr.mxu0 0.0
        %2176 = vmatpush2.msra.mxu0 0.0
        %2177 = vmatprep.subr.mxu0 0.0
        %2178 = vmatpush2.msra.mxu0 0.0
        %2179 = vmatprep.subr.mxu0 0.0
        %2180 = vmatpush2.msra.mxu0 0.0
        %2181 = vmatprep.subr.mxu0 0.0
        %2182 = vmatpush2.msra.mxu0 0.0
        %2183 = vmatprep.subr.mxu0 0.0
        %2184 = vmatpush2.msra.mxu0 0.0
        %2185 = vmatprep.subr.mxu0 0.0
        %2186 = vmatpush2.msra.mxu0 0.0
        %2187 = vmatprep.subr.mxu0 %v2086
        %2188 = vmatpush2.msra.mxu0 %v2085
        %2189 = vmatprep.subr.mxu0 %v2084
        %2190 = vmatpush2.msra.mxu0 %v2083
        %2191 = vmatprep.subr.mxu0 %v2082
        %2192 = vmatpush2.msra.mxu0 %v2081
        %2193 = vmatprep.subr.mxu0 %v2080
        %2194 = vmatpush2.msra.mxu0 %v2079
        %2195 = vmatprep.mubr.f32.mxu0 %v2120
        %2196 = vmatmul.mubr.f32.gmra.mxu0 %v2087
        %v2197 = vpop.f32.mrf.mxu0
        %v2198 = vadd.f32 %v2102, %v2197
        %v2199 = vpop.f32.mrf.mxu0
        %v2200 = vadd.f32 %v2102, %v2199
        %2201 = vmatprep.mubr.f32.mxu0 %v2123
        %2202 = vmatmul.mubr.f32.gmra.mxu0 %v2089
        %v2203 = vpop.f32.mrf.mxu0
        %v2204 = vadd.f32 %v2107, %v2203
        %v2205 = vpop.f32.mrf.mxu0
        %v2206 = vadd.f32 %v2107, %v2205
        %2207 = vmatprep.mubr.f32.mxu0 %v2126
        %2208 = vmatmul.mubr.f32.gmra.mxu0 %v2091
        %v2209 = vpop.f32.mrf.mxu0
        %v2210 = vadd.f32 %v2112, %v2209
        %v2211 = vpop.f32.mrf.mxu0
        %v2212 = vadd.f32 %v2112, %v2211
        %2213 = vmatprep.mubr.f32.mxu0 %v2129
        %2214 = vmatmul.mubr.f32.gmra.mxu0 %v2093
        %v2215 = vpop.f32.mrf.mxu0
        %v2216 = vadd.f32 %v2117, %v2215
        %v2217 = vpop.f32.mrf.mxu0
        %v2218 = vadd.f32 %v2117, %v2217
        %2219 = vdwg.mxu0
        %v2220 = vmax.f32 %v2198, 0.0
        %v2221 = vmax.f32 %v2200, 0.0
        %v2222 = vmax.f32 %v2204, 0.0
        %v2223 = vmax.f32 %v2206, 0.0
        %v2224 = vmax.f32 %v2210, 0.0
        %v2225 = vmax.f32 %v2212, 0.0
        %v2226 = vmax.f32 %v2216, 0.0
        %v2227 = vmax.f32 %v2218, 0.0
        %2236 = vrot.lane.b32.xlu0 %v2220, 127
        %v2237 = vpop.permute.xlu0 %2236
        %2238 = vrot.lane.b32.xlu0 %v2221, 127
        %v2239 = vpop.permute.xlu0 %2238
        %2240 = vrot.lane.b32.xlu0 %v2222, 127
        %v2241 = vpop.permute.xlu0 %2240
        %2242 = vrot.lane.b32.xlu0 %v2223, 127
        %v2243 = vpop.permute.xlu0 %2242
        %2244 = vrot.lane.b32.xlu0 %v2224, 127
        %v2245 = vpop.permute.xlu0 %2244
        %2246 = vrot.lane.b32.xlu0 %v2225, 127
        %v2247 = vpop.permute.xlu0 %2246
        %2248 = vrot.lane.b32.xlu0 %v2226, 127
        %v2249 = vpop.permute.xlu0 %2248
        %2250 = vrot.lane.b32.xlu0 %v2227, 127
        %v2251 = vpop.permute.xlu0 %2250
        %v2252 = vsel %vm491, %v2237, %v2239
        %v2253 = vsel %vm491, %v2241, %v2243
        %v2254 = vsel %vm491, %v2245, %v2247
        %v2255 = vsel %vm491, %v2249, %v2251
        %v2268 = vsel %vm491, %v2239, %v2237
        %v2269 = vsel %vm491, %v2243, %v2241
        %v2270 = vsel %vm491, %v2247, %v2245
        %v2271 = vsel %vm491, %v2251, %v2249
        %v2272 = vmax.f32 %v2220, %v2252
        %v2273 = vmax.f32 %v2221, %v2268
        %v2274 = vmax.f32 %v2222, %v2253
        %v2275 = vmax.f32 %v2223, %v2269
        %v2276 = vmax.f32 %v2224, %v2254
        %v2277 = vmax.f32 %v2225, %v2270
        %v2278 = vmax.f32 %v2226, %v2255
        %v2279 = vmax.f32 %v2227, %v2271
        %v2280 = vld [vmem:[%s8] sm:$0xff]
        %v2281 = vld [vmem:[%s8 + $0x8] sm:$0xff]
        %v2282 = vld [vmem:[%s8 + $0x10] sm:$0xff]
        %v2283 = vld [vmem:[%s8 + $0x18] sm:$0xff]
        %v2285 = vsel %vm1805, %v2272, 0
        %v2288 = vsel %vm1805, %v2274, 0
        %v2291 = vsel %vm1805, %v2276, 0
        %v2294 = vsel %vm1805, %v2278, 0
        %2296 = vmatprep.subr.mxu0 0.0
        %2297 = vmatpush1.msra.mxu0 0.0
        %2298 = vmatprep.subr.mxu0 0.0
        %2299 = vmatpush1.msra.mxu0 0.0
        %2300 = vmatprep.subr.mxu0 0.0
        %2301 = vmatpush1.msra.mxu0 0.0
        %2302 = vmatprep.subr.mxu0 0.0
        %2303 = vmatpush1.msra.mxu0 0.0
        %2304 = vmatprep.subr.mxu0 0.0
        %2305 = vmatpush1.msra.mxu0 0.0
        %2306 = vmatprep.subr.mxu0 0.0
        %2307 = vmatpush1.msra.mxu0 0.0
        %2308 = vmatprep.subr.mxu0 0.0
        %2309 = vmatpush1.msra.mxu0 0.0
        %2310 = vmatprep.subr.mxu0 0.0
        %2311 = vmatpush1.msra.mxu0 0.0
        %2312 = vmatprep.subr.mxu0 0.0
        %2313 = vmatpush1.msra.mxu0 0.0
        %2314 = vmatprep.subr.mxu0 0.0
        %2315 = vmatpush1.msra.mxu0 0.0
        %2316 = vmatprep.subr.mxu0 0.0
        %2317 = vmatpush1.msra.mxu0 0.0
        %2318 = vmatprep.subr.mxu0 0.0
        %2319 = vmatpush1.msra.mxu0 0.0
        %2320 = vmatprep.subr.mxu0 0.0
        %2321 = vmatpush1.msra.mxu0 %v2283
        %2322 = vmatprep.subr.mxu0 0.0
        %2323 = vmatpush1.msra.mxu0 %v2282
        %2324 = vmatprep.subr.mxu0 0.0
        %2325 = vmatpush1.msra.mxu0 %v2281
        %2326 = vmatprep.subr.mxu0 0.0
        %2327 = vmatpush1.msra.mxu0 %v2280
        %2328 = vmatprep.subr.mxu0 0.0
        %2329 = vmatpush2.msra.mxu0 0.0
        %2330 = vmatprep.subr.mxu0 0.0
        %2331 = vmatpush2.msra.mxu0 0.0
        %2332 = vmatprep.subr.mxu0 0.0
        %2333 = vmatpush2.msra.mxu0 0.0
        %2334 = vmatprep.subr.mxu0 0.0
        %2335 = vmatpush2.msra.mxu0 0.0
        %2336 = vmatprep.subr.mxu0 0.0
        %2337 = vmatpush2.msra.mxu0 0.0
        %2338 = vmatprep.subr.mxu0 0.0
        %2339 = vmatpush2.msra.mxu0 0.0
        %2340 = vmatprep.subr.mxu0 0.0
        %2341 = vmatpush2.msra.mxu0 0.0
        %2342 = vmatprep.subr.mxu0 0.0
        %2343 = vmatpush2.msra.mxu0 0.0
        %2344 = vmatprep.subr.mxu0 0.0
        %2345 = vmatpush2.msra.mxu0 0.0
        %2346 = vmatprep.subr.mxu0 0.0
        %2347 = vmatpush2.msra.mxu0 0.0
        %2348 = vmatprep.subr.mxu0 0.0
        %2349 = vmatpush2.msra.mxu0 0.0
        %2350 = vmatprep.subr.mxu0 0.0
        %2351 = vmatpush2.msra.mxu0 0.0
        %2352 = vmatprep.subr.mxu0 0.0
        %2353 = vmatpush2.msra.mxu0 0.0
        %2354 = vmatprep.subr.mxu0 0.0
        %2355 = vmatpush2.msra.mxu0 0.0
        %2356 = vmatprep.subr.mxu0 0.0
        %2357 = vmatpush2.msra.mxu0 0.0
        %2358 = vmatprep.subr.mxu0 0.0
        %2359 = vmatpush2.msra.mxu0 0.0
        %2360 = vmatprep.mubr.f32.mxu0 0.0
        %2361 = vmatmul.mubr.f32.gmra.mxu0 %v2285
        %v2362 = vpop.f32.mrf.mxu0
        %v2363 = vadd.f32 0.0, %v2362
        %v2364 = vpop.f32.mrf.mxu0
        %2365 = vmatprep.mubr.f32.mxu0 0.0
        %2366 = vmatmul.mubr.f32.gmra.mxu0 %v2288
        %v2367 = vpop.f32.mrf.mxu0
        %v2368 = vadd.f32 0.0, %v2367
        %v2369 = vpop.f32.mrf.mxu0
        %2370 = vmatprep.mubr.f32.mxu0 0.0
        %2371 = vmatmul.mubr.f32.gmra.mxu0 %v2291
        %v2372 = vpop.f32.mrf.mxu0
        %v2373 = vadd.f32 0.0, %v2372
        %v2374 = vpop.f32.mrf.mxu0
        %2375 = vmatprep.mubr.f32.mxu0 0.0
        %2376 = vmatmul.mubr.f32.gmra.mxu0 %v2294
        %v2377 = vpop.f32.mrf.mxu0
        %v2378 = vadd.f32 0.0, %v2377
        %v2379 = vpop.f32.mrf.mxu0
        %2380 = vdwg.mxu0
        %2381 = vrot.lane.b32.xlu0 %v2272, 96
        %v2382 = vpop.permute.xlu0 %2381
        %2383 = vrot.lane.b32.xlu0 %v2274, 96
        %v2384 = vpop.permute.xlu0 %2383
        %2385 = vrot.lane.b32.xlu0 %v2276, 96
        %v2386 = vpop.permute.xlu0 %2385
        %2387 = vrot.lane.b32.xlu0 %v2278, 96
        %v2388 = vpop.permute.xlu0 %2387
        %v2389 = vsel %vm1805, %v2382, 0
        %v2391 = vsel %vm1805, %v2384, 0
        %v2393 = vsel %vm1805, %v2386, 0
        %v2395 = vsel %vm1805, %v2388, 0
        %2397 = vmatprep.subr.mxu0 0.0
        %2398 = vmatpush1.msra.mxu0 0.0
        %2399 = vmatprep.subr.mxu0 0.0
        %2400 = vmatpush1.msra.mxu0 0.0
        %2401 = vmatprep.subr.mxu0 0.0
        %2402 = vmatpush1.msra.mxu0 0.0
        %2403 = vmatprep.subr.mxu0 0.0
        %2404 = vmatpush1.msra.mxu0 0.0
        %2405 = vmatprep.subr.mxu0 0.0
        %2406 = vmatpush1.msra.mxu0 0.0
        %2407 = vmatprep.subr.mxu0 0.0
        %2408 = vmatpush1.msra.mxu0 0.0
        %2409 = vmatprep.subr.mxu0 0.0
        %2410 = vmatpush1.msra.mxu0 0.0
        %2411 = vmatprep.subr.mxu0 0.0
        %2412 = vmatpush1.msra.mxu0 0.0
        %2413 = vmatprep.subr.mxu0 0.0
        %2414 = vmatpush1.msra.mxu0 0.0
        %2415 = vmatprep.subr.mxu0 0.0
        %2416 = vmatpush1.msra.mxu0 0.0
        %2417 = vmatprep.subr.mxu0 0.0
        %2418 = vmatpush1.msra.mxu0 0.0
        %2419 = vmatprep.subr.mxu0 0.0
        %2420 = vmatpush1.msra.mxu0 0.0
        %2421 = vmatprep.subr.mxu0 0.0
        %2422 = vmatpush1.msra.mxu0 %v2283
        %2423 = vmatprep.subr.mxu0 0.0
        %2424 = vmatpush1.msra.mxu0 %v2282
        %2425 = vmatprep.subr.mxu0 0.0
        %2426 = vmatpush1.msra.mxu0 %v2281
        %2427 = vmatprep.subr.mxu0 0.0
        %2428 = vmatpush1.msra.mxu0 %v2280
        %2429 = vmatprep.subr.mxu0 0.0
        %2430 = vmatpush2.msra.mxu0 0.0
        %2431 = vmatprep.subr.mxu0 0.0
        %2432 = vmatpush2.msra.mxu0 0.0
        %2433 = vmatprep.subr.mxu0 0.0
        %2434 = vmatpush2.msra.mxu0 0.0
        %2435 = vmatprep.subr.mxu0 0.0
        %2436 = vmatpush2.msra.mxu0 0.0
        %2437 = vmatprep.subr.mxu0 0.0
        %2438 = vmatpush2.msra.mxu0 0.0
        %2439 = vmatprep.subr.mxu0 0.0
        %2440 = vmatpush2.msra.mxu0 0.0
        %2441 = vmatprep.subr.mxu0 0.0
        %2442 = vmatpush2.msra.mxu0 0.0
        %2443 = vmatprep.subr.mxu0 0.0
        %2444 = vmatpush2.msra.mxu0 0.0
        %2445 = vmatprep.subr.mxu0 0.0
        %2446 = vmatpush2.msra.mxu0 0.0
        %2447 = vmatprep.subr.mxu0 0.0
        %2448 = vmatpush2.msra.mxu0 0.0
        %2449 = vmatprep.subr.mxu0 0.0
        %2450 = vmatpush2.msra.mxu0 0.0
        %2451 = vmatprep.subr.mxu0 0.0
        %2452 = vmatpush2.msra.mxu0 0.0
        %2453 = vmatprep.subr.mxu0 0.0
        %2454 = vmatpush2.msra.mxu0 0.0
        %2455 = vmatprep.subr.mxu0 0.0
        %2456 = vmatpush2.msra.mxu0 0.0
        %2457 = vmatprep.subr.mxu0 0.0
        %2458 = vmatpush2.msra.mxu0 0.0
        %2459 = vmatprep.subr.mxu0 0.0
        %2460 = vmatpush2.msra.mxu0 0.0
        %2461 = vmatprep.mubr.f32.mxu0 0.0
        %2462 = vmatmul.mubr.f32.gmra.mxu0 %v2389
        %v2463 = vpop.f32.mrf.mxu0
        %v2464 = vadd.f32 0.0, %v2463
        %v2465 = vpop.f32.mrf.mxu0
        %2466 = vmatprep.mubr.f32.mxu0 0.0
        %2467 = vmatmul.mubr.f32.gmra.mxu0 %v2391
        %v2468 = vpop.f32.mrf.mxu0
        %v2469 = vadd.f32 0.0, %v2468
        %v2470 = vpop.f32.mrf.mxu0
        %2471 = vmatprep.mubr.f32.mxu0 0.0
        %2472 = vmatmul.mubr.f32.gmra.mxu0 %v2393
        %v2473 = vpop.f32.mrf.mxu0
        %v2474 = vadd.f32 0.0, %v2473
        %v2475 = vpop.f32.mrf.mxu0
        %2476 = vmatprep.mubr.f32.mxu0 0.0
        %2477 = vmatmul.mubr.f32.gmra.mxu0 %v2395
        %v2478 = vpop.f32.mrf.mxu0
        %v2479 = vadd.f32 0.0, %v2478
        %v2480 = vpop.f32.mrf.mxu0
        %2481 = vdwg.mxu0
        %2482 = vrot.lane.b32.xlu0 %v2272, 64
        %v2483 = vpop.permute.xlu0 %2482
        %2484 = vrot.lane.b32.xlu0 %v2274, 64
        %v2485 = vpop.permute.xlu0 %2484
        %2486 = vrot.lane.b32.xlu0 %v2276, 64
        %v2487 = vpop.permute.xlu0 %2486
        %2488 = vrot.lane.b32.xlu0 %v2278, 64
        %v2489 = vpop.permute.xlu0 %2488
        %v2490 = vsel %vm1805, %v2483, 0
        %v2492 = vsel %vm1805, %v2485, 0
        %v2494 = vsel %vm1805, %v2487, 0
        %v2496 = vsel %vm1805, %v2489, 0
        %2498 = vmatprep.subr.mxu0 0.0
        %2499 = vmatpush1.msra.mxu0 0.0
        %2500 = vmatprep.subr.mxu0 0.0
        %2501 = vmatpush1.msra.mxu0 0.0
        %2502 = vmatprep.subr.mxu0 0.0
        %2503 = vmatpush1.msra.mxu0 0.0
        %2504 = vmatprep.subr.mxu0 0.0
        %2505 = vmatpush1.msra.mxu0 0.0
        %2506 = vmatprep.subr.mxu0 0.0
        %2507 = vmatpush1.msra.mxu0 0.0
        %2508 = vmatprep.subr.mxu0 0.0
        %2509 = vmatpush1.msra.mxu0 0.0
        %2510 = vmatprep.subr.mxu0 0.0
        %2511 = vmatpush1.msra.mxu0 0.0
        %2512 = vmatprep.subr.mxu0 0.0
        %2513 = vmatpush1.msra.mxu0 0.0
        %2514 = vmatprep.subr.mxu0 0.0
        %2515 = vmatpush1.msra.mxu0 0.0
        %2516 = vmatprep.subr.mxu0 0.0
        %2517 = vmatpush1.msra.mxu0 0.0
        %2518 = vmatprep.subr.mxu0 0.0
        %2519 = vmatpush1.msra.mxu0 0.0
        %2520 = vmatprep.subr.mxu0 0.0
        %2521 = vmatpush1.msra.mxu0 0.0
        %2522 = vmatprep.subr.mxu0 0.0
        %2523 = vmatpush1.msra.mxu0 %v2283
        %2524 = vmatprep.subr.mxu0 0.0
        %2525 = vmatpush1.msra.mxu0 %v2282
        %2526 = vmatprep.subr.mxu0 0.0
        %2527 = vmatpush1.msra.mxu0 %v2281
        %2528 = vmatprep.subr.mxu0 0.0
        %2529 = vmatpush1.msra.mxu0 %v2280
        %2530 = vmatprep.subr.mxu0 0.0
        %2531 = vmatpush2.msra.mxu0 0.0
        %2532 = vmatprep.subr.mxu0 0.0
        %2533 = vmatpush2.msra.mxu0 0.0
        %2534 = vmatprep.subr.mxu0 0.0
        %2535 = vmatpush2.msra.mxu0 0.0
        %2536 = vmatprep.subr.mxu0 0.0
        %2537 = vmatpush2.msra.mxu0 0.0
        %2538 = vmatprep.subr.mxu0 0.0
        %2539 = vmatpush2.msra.mxu0 0.0
        %2540 = vmatprep.subr.mxu0 0.0
        %2541 = vmatpush2.msra.mxu0 0.0
        %2542 = vmatprep.subr.mxu0 0.0
        %2543 = vmatpush2.msra.mxu0 0.0
        %2544 = vmatprep.subr.mxu0 0.0
        %2545 = vmatpush2.msra.mxu0 0.0
        %2546 = vmatprep.subr.mxu0 0.0
        %2547 = vmatpush2.msra.mxu0 0.0
        %2548 = vmatprep.subr.mxu0 0.0
        %2549 = vmatpush2.msra.mxu0 0.0
        %2550 = vmatprep.subr.mxu0 0.0
        %2551 = vmatpush2.msra.mxu0 0.0
        %2552 = vmatprep.subr.mxu0 0.0
        %2553 = vmatpush2.msra.mxu0 0.0
        %2554 = vmatprep.subr.mxu0 0.0
        %2555 = vmatpush2.msra.mxu0 0.0
        %2556 = vmatprep.subr.mxu0 0.0
        %2557 = vmatpush2.msra.mxu0 0.0
        %2558 = vmatprep.subr.mxu0 0.0
        %2559 = vmatpush2.msra.mxu0 0.0
        %2560 = vmatprep.subr.mxu0 0.0
        %2561 = vmatpush2.msra.mxu0 0.0
        %2562 = vmatprep.mubr.f32.mxu0 0.0
        %2563 = vmatmul.mubr.f32.gmra.mxu0 %v2490
        %v2564 = vpop.f32.mrf.mxu0
        %v2565 = vadd.f32 0.0, %v2564
        %v2566 = vpop.f32.mrf.mxu0
        %2567 = vmatprep.mubr.f32.mxu0 0.0
        %2568 = vmatmul.mubr.f32.gmra.mxu0 %v2492
        %v2569 = vpop.f32.mrf.mxu0
        %v2570 = vadd.f32 0.0, %v2569
        %v2571 = vpop.f32.mrf.mxu0
        %2572 = vmatprep.mubr.f32.mxu0 0.0
        %2573 = vmatmul.mubr.f32.gmra.mxu0 %v2494
        %v2574 = vpop.f32.mrf.mxu0
        %v2575 = vadd.f32 0.0, %v2574
        %v2576 = vpop.f32.mrf.mxu0
        %2577 = vmatprep.mubr.f32.mxu0 0.0
        %2578 = vmatmul.mubr.f32.gmra.mxu0 %v2496
        %v2579 = vpop.f32.mrf.mxu0
        %v2580 = vadd.f32 0.0, %v2579
        %v2581 = vpop.f32.mrf.mxu0
        %2582 = vdwg.mxu0
        %2583 = vrot.lane.b32.xlu0 %v2272, 32
        %v2584 = vpop.permute.xlu0 %2583
        %2585 = vrot.lane.b32.xlu0 %v2274, 32
        %v2586 = vpop.permute.xlu0 %2585
        %2587 = vrot.lane.b32.xlu0 %v2276, 32
        %v2588 = vpop.permute.xlu0 %2587
        %2589 = vrot.lane.b32.xlu0 %v2278, 32
        %v2590 = vpop.permute.xlu0 %2589
        %v2591 = vsel %vm1805, %v2584, 0
        %v2593 = vsel %vm1805, %v2586, 0
        %v2595 = vsel %vm1805, %v2588, 0
        %v2597 = vsel %vm1805, %v2590, 0
        %2599 = vmatprep.subr.mxu0 0.0
        %2600 = vmatpush1.msra.mxu0 0.0
        %2601 = vmatprep.subr.mxu0 0.0
        %2602 = vmatpush1.msra.mxu0 0.0
        %2603 = vmatprep.subr.mxu0 0.0
        %2604 = vmatpush1.msra.mxu0 0.0
        %2605 = vmatprep.subr.mxu0 0.0
        %2606 = vmatpush1.msra.mxu0 0.0
        %2607 = vmatprep.subr.mxu0 0.0
        %2608 = vmatpush1.msra.mxu0 0.0
        %2609 = vmatprep.subr.mxu0 0.0
        %2610 = vmatpush1.msra.mxu0 0.0
        %2611 = vmatprep.subr.mxu0 0.0
        %2612 = vmatpush1.msra.mxu0 0.0
        %2613 = vmatprep.subr.mxu0 0.0
        %2614 = vmatpush1.msra.mxu0 0.0
        %2615 = vmatprep.subr.mxu0 0.0
        %2616 = vmatpush1.msra.mxu0 0.0
        %2617 = vmatprep.subr.mxu0 0.0
        %2618 = vmatpush1.msra.mxu0 0.0
        %2619 = vmatprep.subr.mxu0 0.0
        %2620 = vmatpush1.msra.mxu0 0.0
        %2621 = vmatprep.subr.mxu0 0.0
        %2622 = vmatpush1.msra.mxu0 0.0
        %2623 = vmatprep.subr.mxu0 0.0
        %2624 = vmatpush1.msra.mxu0 %v2283
        %2625 = vmatprep.subr.mxu0 0.0
        %2626 = vmatpush1.msra.mxu0 %v2282
        %2627 = vmatprep.subr.mxu0 0.0
        %2628 = vmatpush1.msra.mxu0 %v2281
        %2629 = vmatprep.subr.mxu0 0.0
        %2630 = vmatpush1.msra.mxu0 %v2280
        %2631 = vmatprep.subr.mxu0 0.0
        %2632 = vmatpush2.msra.mxu0 0.0
        %2633 = vmatprep.subr.mxu0 0.0
        %2634 = vmatpush2.msra.mxu0 0.0
        %2635 = vmatprep.subr.mxu0 0.0
        %2636 = vmatpush2.msra.mxu0 0.0
        %2637 = vmatprep.subr.mxu0 0.0
        %2638 = vmatpush2.msra.mxu0 0.0
        %2639 = vmatprep.subr.mxu0 0.0
        %2640 = vmatpush2.msra.mxu0 0.0
        %2641 = vmatprep.subr.mxu0 0.0
        %2642 = vmatpush2.msra.mxu0 0.0
        %2643 = vmatprep.subr.mxu0 0.0
        %2644 = vmatpush2.msra.mxu0 0.0
        %2645 = vmatprep.subr.mxu0 0.0
        %2646 = vmatpush2.msra.mxu0 0.0
        %2647 = vmatprep.subr.mxu0 0.0
        %2648 = vmatpush2.msra.mxu0 0.0
        %2649 = vmatprep.subr.mxu0 0.0
        %2650 = vmatpush2.msra.mxu0 0.0
        %2651 = vmatprep.subr.mxu0 0.0
        %2652 = vmatpush2.msra.mxu0 0.0
        %2653 = vmatprep.subr.mxu0 0.0
        %2654 = vmatpush2.msra.mxu0 0.0
        %2655 = vmatprep.subr.mxu0 0.0
        %2656 = vmatpush2.msra.mxu0 0.0
        %2657 = vmatprep.subr.mxu0 0.0
        %2658 = vmatpush2.msra.mxu0 0.0
        %2659 = vmatprep.subr.mxu0 0.0
        %2660 = vmatpush2.msra.mxu0 0.0
        %2661 = vmatprep.subr.mxu0 0.0
        %2662 = vmatpush2.msra.mxu0 0.0
        %2663 = vmatprep.mubr.f32.mxu0 0.0
        %2664 = vmatmul.mubr.f32.gmra.mxu0 %v2591
        %v2665 = vpop.f32.mrf.mxu0
        %v2666 = vadd.f32 0.0, %v2665
        %v2667 = vpop.f32.mrf.mxu0
        %2668 = vmatprep.mubr.f32.mxu0 0.0
        %2669 = vmatmul.mubr.f32.gmra.mxu0 %v2593
        %v2670 = vpop.f32.mrf.mxu0
        %v2671 = vadd.f32 0.0, %v2670
        %v2672 = vpop.f32.mrf.mxu0
        %2673 = vmatprep.mubr.f32.mxu0 0.0
        %2674 = vmatmul.mubr.f32.gmra.mxu0 %v2595
        %v2675 = vpop.f32.mrf.mxu0
        %v2676 = vadd.f32 0.0, %v2675
        %v2677 = vpop.f32.mrf.mxu0
        %2678 = vmatprep.mubr.f32.mxu0 0.0
        %2679 = vmatmul.mubr.f32.gmra.mxu0 %v2597
        %v2680 = vpop.f32.mrf.mxu0
        %v2681 = vadd.f32 0.0, %v2680
        %v2682 = vpop.f32.mrf.mxu0
        %2683 = vdwg.mxu0
        %v2685 = vsel %vm1805, %v2273, 0
        %v2688 = vsel %vm1805, %v2275, 0
        %v2691 = vsel %vm1805, %v2277, 0
        %v2694 = vsel %vm1805, %v2279, 0
        %2696 = vmatprep.subr.mxu0 0.0
        %2697 = vmatpush1.msra.mxu0 0.0
        %2698 = vmatprep.subr.mxu0 0.0
        %2699 = vmatpush1.msra.mxu0 0.0
        %2700 = vmatprep.subr.mxu0 0.0
        %2701 = vmatpush1.msra.mxu0 0.0
        %2702 = vmatprep.subr.mxu0 0.0
        %2703 = vmatpush1.msra.mxu0 0.0
        %2704 = vmatprep.subr.mxu0 0.0
        %2705 = vmatpush1.msra.mxu0 0.0
        %2706 = vmatprep.subr.mxu0 0.0
        %2707 = vmatpush1.msra.mxu0 0.0
        %2708 = vmatprep.subr.mxu0 0.0
        %2709 = vmatpush1.msra.mxu0 0.0
        %2710 = vmatprep.subr.mxu0 0.0
        %2711 = vmatpush1.msra.mxu0 0.0
        %2712 = vmatprep.subr.mxu0 0.0
        %2713 = vmatpush1.msra.mxu0 0.0
        %2714 = vmatprep.subr.mxu0 0.0
        %2715 = vmatpush1.msra.mxu0 0.0
        %2716 = vmatprep.subr.mxu0 0.0
        %2717 = vmatpush1.msra.mxu0 0.0
        %2718 = vmatprep.subr.mxu0 0.0
        %2719 = vmatpush1.msra.mxu0 0.0
        %2720 = vmatprep.subr.mxu0 0.0
        %2721 = vmatpush1.msra.mxu0 %v2283
        %2722 = vmatprep.subr.mxu0 0.0
        %2723 = vmatpush1.msra.mxu0 %v2282
        %2724 = vmatprep.subr.mxu0 0.0
        %2725 = vmatpush1.msra.mxu0 %v2281
        %2726 = vmatprep.subr.mxu0 0.0
        %2727 = vmatpush1.msra.mxu0 %v2280
        %2728 = vmatprep.subr.mxu0 0.0
        %2729 = vmatpush2.msra.mxu0 0.0
        %2730 = vmatprep.subr.mxu0 0.0
        %2731 = vmatpush2.msra.mxu0 0.0
        %2732 = vmatprep.subr.mxu0 0.0
        %2733 = vmatpush2.msra.mxu0 0.0
        %2734 = vmatprep.subr.mxu0 0.0
        %2735 = vmatpush2.msra.mxu0 0.0
        %2736 = vmatprep.subr.mxu0 0.0
        %2737 = vmatpush2.msra.mxu0 0.0
        %2738 = vmatprep.subr.mxu0 0.0
        %2739 = vmatpush2.msra.mxu0 0.0
        %2740 = vmatprep.subr.mxu0 0.0
        %2741 = vmatpush2.msra.mxu0 0.0
        %2742 = vmatprep.subr.mxu0 0.0
        %2743 = vmatpush2.msra.mxu0 0.0
        %2744 = vmatprep.subr.mxu0 0.0
        %2745 = vmatpush2.msra.mxu0 0.0
        %2746 = vmatprep.subr.mxu0 0.0
        %2747 = vmatpush2.msra.mxu0 0.0
        %2748 = vmatprep.subr.mxu0 0.0
        %2749 = vmatpush2.msra.mxu0 0.0
        %2750 = vmatprep.subr.mxu0 0.0
        %2751 = vmatpush2.msra.mxu0 0.0
        %2752 = vmatprep.subr.mxu0 0.0
        %2753 = vmatpush2.msra.mxu0 0.0
        %2754 = vmatprep.subr.mxu0 0.0
        %2755 = vmatpush2.msra.mxu0 0.0
        %2756 = vmatprep.subr.mxu0 0.0
        %2757 = vmatpush2.msra.mxu0 0.0
        %2758 = vmatprep.subr.mxu0 0.0
        %2759 = vmatpush2.msra.mxu0 0.0
        %2760 = vmatprep.mubr.f32.mxu0 0.0
        %2761 = vmatmul.mubr.f32.gmra.mxu0 %v2685
        %v2762 = vpop.f32.mrf.mxu0
        %v2763 = vadd.f32 0.0, %v2762
        %v2764 = vpop.f32.mrf.mxu0
        %2765 = vmatprep.mubr.f32.mxu0 0.0
        %2766 = vmatmul.mubr.f32.gmra.mxu0 %v2688
        %v2767 = vpop.f32.mrf.mxu0
        %v2768 = vadd.f32 0.0, %v2767
        %v2769 = vpop.f32.mrf.mxu0
        %2770 = vmatprep.mubr.f32.mxu0 0.0
        %2771 = vmatmul.mubr.f32.gmra.mxu0 %v2691
        %v2772 = vpop.f32.mrf.mxu0
        %v2773 = vadd.f32 0.0, %v2772
        %v2774 = vpop.f32.mrf.mxu0
        %2775 = vmatprep.mubr.f32.mxu0 0.0
        %2776 = vmatmul.mubr.f32.gmra.mxu0 %v2694
        %v2777 = vpop.f32.mrf.mxu0
        %v2778 = vadd.f32 0.0, %v2777
        %v2779 = vpop.f32.mrf.mxu0
        %2780 = vdwg.mxu0
        %2781 = vrot.lane.b32.xlu0 %v2273, 96
        %v2782 = vpop.permute.xlu0 %2781
        %2783 = vrot.lane.b32.xlu0 %v2275, 96
        %v2784 = vpop.permute.xlu0 %2783
        %2785 = vrot.lane.b32.xlu0 %v2277, 96
        %v2786 = vpop.permute.xlu0 %2785
        %2787 = vrot.lane.b32.xlu0 %v2279, 96
        %v2788 = vpop.permute.xlu0 %2787
        %v2789 = vsel %vm1805, %v2782, 0
        %v2791 = vsel %vm1805, %v2784, 0
        %v2793 = vsel %vm1805, %v2786, 0
        %v2795 = vsel %vm1805, %v2788, 0
        %2797 = vmatprep.subr.mxu0 0.0
        %2798 = vmatpush1.msra.mxu0 0.0
        %2799 = vmatprep.subr.mxu0 0.0
        %2800 = vmatpush1.msra.mxu0 0.0
        %2801 = vmatprep.subr.mxu0 0.0
        %2802 = vmatpush1.msra.mxu0 0.0
        %2803 = vmatprep.subr.mxu0 0.0
        %2804 = vmatpush1.msra.mxu0 0.0
        %2805 = vmatprep.subr.mxu0 0.0
        %2806 = vmatpush1.msra.mxu0 0.0
        %2807 = vmatprep.subr.mxu0 0.0
        %2808 = vmatpush1.msra.mxu0 0.0
        %2809 = vmatprep.subr.mxu0 0.0
        %2810 = vmatpush1.msra.mxu0 0.0
        %2811 = vmatprep.subr.mxu0 0.0
        %2812 = vmatpush1.msra.mxu0 0.0
        %2813 = vmatprep.subr.mxu0 0.0
        %2814 = vmatpush1.msra.mxu0 0.0
        %2815 = vmatprep.subr.mxu0 0.0
        %2816 = vmatpush1.msra.mxu0 0.0
        %2817 = vmatprep.subr.mxu0 0.0
        %2818 = vmatpush1.msra.mxu0 0.0
        %2819 = vmatprep.subr.mxu0 0.0
        %2820 = vmatpush1.msra.mxu0 0.0
        %2821 = vmatprep.subr.mxu0 0.0
        %2822 = vmatpush1.msra.mxu0 %v2283
        %2823 = vmatprep.subr.mxu0 0.0
        %2824 = vmatpush1.msra.mxu0 %v2282
        %2825 = vmatprep.subr.mxu0 0.0
        %2826 = vmatpush1.msra.mxu0 %v2281
        %2827 = vmatprep.subr.mxu0 0.0
        %2828 = vmatpush1.msra.mxu0 %v2280
        %2829 = vmatprep.subr.mxu0 0.0
        %2830 = vmatpush2.msra.mxu0 0.0
        %2831 = vmatprep.subr.mxu0 0.0
        %2832 = vmatpush2.msra.mxu0 0.0
        %2833 = vmatprep.subr.mxu0 0.0
        %2834 = vmatpush2.msra.mxu0 0.0
        %2835 = vmatprep.subr.mxu0 0.0
        %2836 = vmatpush2.msra.mxu0 0.0
        %2837 = vmatprep.subr.mxu0 0.0
        %2838 = vmatpush2.msra.mxu0 0.0
        %2839 = vmatprep.subr.mxu0 0.0
        %2840 = vmatpush2.msra.mxu0 0.0
        %2841 = vmatprep.subr.mxu0 0.0
        %2842 = vmatpush2.msra.mxu0 0.0
        %2843 = vmatprep.subr.mxu0 0.0
        %2844 = vmatpush2.msra.mxu0 0.0
        %2845 = vmatprep.subr.mxu0 0.0
        %2846 = vmatpush2.msra.mxu0 0.0
        %2847 = vmatprep.subr.mxu0 0.0
        %2848 = vmatpush2.msra.mxu0 0.0
        %2849 = vmatprep.subr.mxu0 0.0
        %2850 = vmatpush2.msra.mxu0 0.0
        %2851 = vmatprep.subr.mxu0 0.0
        %2852 = vmatpush2.msra.mxu0 0.0
        %2853 = vmatprep.subr.mxu0 0.0
        %2854 = vmatpush2.msra.mxu0 0.0
        %2855 = vmatprep.subr.mxu0 0.0
        %2856 = vmatpush2.msra.mxu0 0.0
        %2857 = vmatprep.subr.mxu0 0.0
        %2858 = vmatpush2.msra.mxu0 0.0
        %2859 = vmatprep.subr.mxu0 0.0
        %2860 = vmatpush2.msra.mxu0 0.0
        %2861 = vmatprep.mubr.f32.mxu0 0.0
        %2862 = vmatmul.mubr.f32.gmra.mxu0 %v2789
        %v2863 = vpop.f32.mrf.mxu0
        %v2864 = vadd.f32 0.0, %v2863
        %v2865 = vpop.f32.mrf.mxu0
        %2866 = vmatprep.mubr.f32.mxu0 0.0
        %2867 = vmatmul.mubr.f32.gmra.mxu0 %v2791
        %v2868 = vpop.f32.mrf.mxu0
        %v2869 = vadd.f32 0.0, %v2868
        %v2870 = vpop.f32.mrf.mxu0
        %2871 = vmatprep.mubr.f32.mxu0 0.0
        %2872 = vmatmul.mubr.f32.gmra.mxu0 %v2793
        %v2873 = vpop.f32.mrf.mxu0
        %v2874 = vadd.f32 0.0, %v2873
        %v2875 = vpop.f32.mrf.mxu0
        %2876 = vmatprep.mubr.f32.mxu0 0.0
        %2877 = vmatmul.mubr.f32.gmra.mxu0 %v2795
        %v2878 = vpop.f32.mrf.mxu0
        %v2879 = vadd.f32 0.0, %v2878
        %v2880 = vpop.f32.mrf.mxu0
        %2881 = vdwg.mxu0
        %2882 = vrot.lane.b32.xlu0 %v2273, 64
        %v2883 = vpop.permute.xlu0 %2882
        %2884 = vrot.lane.b32.xlu0 %v2275, 64
        %v2885 = vpop.permute.xlu0 %2884
        %2886 = vrot.lane.b32.xlu0 %v2277, 64
        %v2887 = vpop.permute.xlu0 %2886
        %2888 = vrot.lane.b32.xlu0 %v2279, 64
        %v2889 = vpop.permute.xlu0 %2888
        %v2890 = vsel %vm1805, %v2883, 0
        %v2892 = vsel %vm1805, %v2885, 0
        %v2894 = vsel %vm1805, %v2887, 0
        %v2896 = vsel %vm1805, %v2889, 0
        %2898 = vmatprep.subr.mxu0 0.0
        %2899 = vmatpush1.msra.mxu0 0.0
        %2900 = vmatprep.subr.mxu0 0.0
        %2901 = vmatpush1.msra.mxu0 0.0
        %2902 = vmatprep.subr.mxu0 0.0
        %2903 = vmatpush1.msra.mxu0 0.0
        %2904 = vmatprep.subr.mxu0 0.0
        %2905 = vmatpush1.msra.mxu0 0.0
        %2906 = vmatprep.subr.mxu0 0.0
        %2907 = vmatpush1.msra.mxu0 0.0
        %2908 = vmatprep.subr.mxu0 0.0
        %2909 = vmatpush1.msra.mxu0 0.0
        %2910 = vmatprep.subr.mxu0 0.0
        %2911 = vmatpush1.msra.mxu0 0.0
        %2912 = vmatprep.subr.mxu0 0.0
        %2913 = vmatpush1.msra.mxu0 0.0
        %2914 = vmatprep.subr.mxu0 0.0
        %2915 = vmatpush1.msra.mxu0 0.0
        %2916 = vmatprep.subr.mxu0 0.0
        %2917 = vmatpush1.msra.mxu0 0.0
        %2918 = vmatprep.subr.mxu0 0.0
        %2919 = vmatpush1.msra.mxu0 0.0
        %2920 = vmatprep.subr.mxu0 0.0
        %2921 = vmatpush1.msra.mxu0 0.0
        %2922 = vmatprep.subr.mxu0 0.0
        %2923 = vmatpush1.msra.mxu0 %v2283
        %2924 = vmatprep.subr.mxu0 0.0
        %2925 = vmatpush1.msra.mxu0 %v2282
        %2926 = vmatprep.subr.mxu0 0.0
        %2927 = vmatpush1.msra.mxu0 %v2281
        %2928 = vmatprep.subr.mxu0 0.0
        %2929 = vmatpush1.msra.mxu0 %v2280
        %2930 = vmatprep.subr.mxu0 0.0
        %2931 = vmatpush2.msra.mxu0 0.0
        %2932 = vmatprep.subr.mxu0 0.0
        %2933 = vmatpush2.msra.mxu0 0.0
        %2934 = vmatprep.subr.mxu0 0.0
        %2935 = vmatpush2.msra.mxu0 0.0
        %2936 = vmatprep.subr.mxu0 0.0
        %2937 = vmatpush2.msra.mxu0 0.0
        %2938 = vmatprep.subr.mxu0 0.0
        %2939 = vmatpush2.msra.mxu0 0.0
        %2940 = vmatprep.subr.mxu0 0.0
        %2941 = vmatpush2.msra.mxu0 0.0
        %2942 = vmatprep.subr.mxu0 0.0
        %2943 = vmatpush2.msra.mxu0 0.0
        %2944 = vmatprep.subr.mxu0 0.0
        %2945 = vmatpush2.msra.mxu0 0.0
        %2946 = vmatprep.subr.mxu0 0.0
        %2947 = vmatpush2.msra.mxu0 0.0
        %2948 = vmatprep.subr.mxu0 0.0
        %2949 = vmatpush2.msra.mxu0 0.0
        %2950 = vmatprep.subr.mxu0 0.0
        %2951 = vmatpush2.msra.mxu0 0.0
        %2952 = vmatprep.subr.mxu0 0.0
        %2953 = vmatpush2.msra.mxu0 0.0
        %2954 = vmatprep.subr.mxu0 0.0
        %2955 = vmatpush2.msra.mxu0 0.0
        %2956 = vmatprep.subr.mxu0 0.0
        %2957 = vmatpush2.msra.mxu0 0.0
        %2958 = vmatprep.subr.mxu0 0.0
        %2959 = vmatpush2.msra.mxu0 0.0
        %2960 = vmatprep.subr.mxu0 0.0
        %2961 = vmatpush2.msra.mxu0 0.0
        %2962 = vmatprep.mubr.f32.mxu0 0.0
        %2963 = vmatmul.mubr.f32.gmra.mxu0 %v2890
        %v2964 = vpop.f32.mrf.mxu0
        %v2965 = vadd.f32 0.0, %v2964
        %v2966 = vpop.f32.mrf.mxu0
        %2967 = vmatprep.mubr.f32.mxu0 0.0
        %2968 = vmatmul.mubr.f32.gmra.mxu0 %v2892
        %v2969 = vpop.f32.mrf.mxu0
        %v2970 = vadd.f32 0.0, %v2969
        %v2971 = vpop.f32.mrf.mxu0
        %2972 = vmatprep.mubr.f32.mxu0 0.0
        %2973 = vmatmul.mubr.f32.gmra.mxu0 %v2894
        %v2974 = vpop.f32.mrf.mxu0
        %v2975 = vadd.f32 0.0, %v2974
        %v2976 = vpop.f32.mrf.mxu0
        %2977 = vmatprep.mubr.f32.mxu0 0.0
        %2978 = vmatmul.mubr.f32.gmra.mxu0 %v2896
        %v2979 = vpop.f32.mrf.mxu0
        %v2980 = vadd.f32 0.0, %v2979
        %v2981 = vpop.f32.mrf.mxu0
        %2982 = vdwg.mxu0
        %2983 = vrot.lane.b32.xlu0 %v2273, 32
        %v2984 = vpop.permute.xlu0 %2983
        %2985 = vrot.lane.b32.xlu0 %v2275, 32
        %v2986 = vpop.permute.xlu0 %2985
        %2987 = vrot.lane.b32.xlu0 %v2277, 32
        %v2988 = vpop.permute.xlu0 %2987
        %2989 = vrot.lane.b32.xlu0 %v2279, 32
        %v2990 = vpop.permute.xlu0 %2989
        %v2991 = vsel %vm1805, %v2984, 0
        %v2993 = vsel %vm1805, %v2986, 0
        %v2995 = vsel %vm1805, %v2988, 0
        %v2997 = vsel %vm1805, %v2990, 0
        %2999 = vmatprep.subr.mxu0 0.0
        %3000 = vmatpush1.msra.mxu0 0.0
        %3001 = vmatprep.subr.mxu0 0.0
        %3002 = vmatpush1.msra.mxu0 0.0
        %3003 = vmatprep.subr.mxu0 0.0
        %3004 = vmatpush1.msra.mxu0 0.0
        %3005 = vmatprep.subr.mxu0 0.0
        %3006 = vmatpush1.msra.mxu0 0.0
        %3007 = vmatprep.subr.mxu0 0.0
        %3008 = vmatpush1.msra.mxu0 0.0
        %3009 = vmatprep.subr.mxu0 0.0
        %3010 = vmatpush1.msra.mxu0 0.0
        %3011 = vmatprep.subr.mxu0 0.0
        %3012 = vmatpush1.msra.mxu0 0.0
        %3013 = vmatprep.subr.mxu0 0.0
        %3014 = vmatpush1.msra.mxu0 0.0
        %3015 = vmatprep.subr.mxu0 0.0
        %3016 = vmatpush1.msra.mxu0 0.0
        %3017 = vmatprep.subr.mxu0 0.0
        %3018 = vmatpush1.msra.mxu0 0.0
        %3019 = vmatprep.subr.mxu0 0.0
        %3020 = vmatpush1.msra.mxu0 0.0
        %3021 = vmatprep.subr.mxu0 0.0
        %3022 = vmatpush1.msra.mxu0 0.0
        %3023 = vmatprep.subr.mxu0 0.0
        %3024 = vmatpush1.msra.mxu0 %v2283
        %3025 = vmatprep.subr.mxu0 0.0
        %3026 = vmatpush1.msra.mxu0 %v2282
        %3027 = vmatprep.subr.mxu0 0.0
        %3028 = vmatpush1.msra.mxu0 %v2281
        %3029 = vmatprep.subr.mxu0 0.0
        %3030 = vmatpush1.msra.mxu0 %v2280
        %3031 = vmatprep.subr.mxu0 0.0
        %3032 = vmatpush2.msra.mxu0 0.0
        %3033 = vmatprep.subr.mxu0 0.0
        %3034 = vmatpush2.msra.mxu0 0.0
        %3035 = vmatprep.subr.mxu0 0.0
        %3036 = vmatpush2.msra.mxu0 0.0
        %3037 = vmatprep.subr.mxu0 0.0
        %3038 = vmatpush2.msra.mxu0 0.0
        %3039 = vmatprep.subr.mxu0 0.0
        %3040 = vmatpush2.msra.mxu0 0.0
        %3041 = vmatprep.subr.mxu0 0.0
        %3042 = vmatpush2.msra.mxu0 0.0
        %3043 = vmatprep.subr.mxu0 0.0
        %3044 = vmatpush2.msra.mxu0 0.0
        %3045 = vmatprep.subr.mxu0 0.0
        %3046 = vmatpush2.msra.mxu0 0.0
        %3047 = vmatprep.subr.mxu0 0.0
        %3048 = vmatpush2.msra.mxu0 0.0
        %3049 = vmatprep.subr.mxu0 0.0
        %3050 = vmatpush2.msra.mxu0 0.0
        %3051 = vmatprep.subr.mxu0 0.0
        %3052 = vmatpush2.msra.mxu0 0.0
        %3053 = vmatprep.subr.mxu0 0.0
        %3054 = vmatpush2.msra.mxu0 0.0
        %3055 = vmatprep.subr.mxu0 0.0
        %3056 = vmatpush2.msra.mxu0 0.0
        %3057 = vmatprep.subr.mxu0 0.0
        %3058 = vmatpush2.msra.mxu0 0.0
        %3059 = vmatprep.subr.mxu0 0.0
        %3060 = vmatpush2.msra.mxu0 0.0
        %3061 = vmatprep.subr.mxu0 0.0
        %3062 = vmatpush2.msra.mxu0 0.0
        %3063 = vmatprep.mubr.f32.mxu0 0.0
        %3064 = vmatmul.mubr.f32.gmra.mxu0 %v2991
        %v3065 = vpop.f32.mrf.mxu0
        %v3066 = vadd.f32 0.0, %v3065
        %v3067 = vpop.f32.mrf.mxu0
        %3068 = vmatprep.mubr.f32.mxu0 0.0
        %3069 = vmatmul.mubr.f32.gmra.mxu0 %v2993
        %v3070 = vpop.f32.mrf.mxu0
        %v3071 = vadd.f32 0.0, %v3070
        %v3072 = vpop.f32.mrf.mxu0
        %3073 = vmatprep.mubr.f32.mxu0 0.0
        %3074 = vmatmul.mubr.f32.gmra.mxu0 %v2995
        %v3075 = vpop.f32.mrf.mxu0
        %v3076 = vadd.f32 0.0, %v3075
        %v3077 = vpop.f32.mrf.mxu0
        %3078 = vmatprep.mubr.f32.mxu0 0.0
        %3079 = vmatmul.mubr.f32.gmra.mxu0 %v2997
        %v3080 = vpop.f32.mrf.mxu0
        %v3081 = vadd.f32 0.0, %v3080
        %v3082 = vpop.f32.mrf.mxu0
        %3083 = vdwg.mxu0
        %3088 = vrot.lane.b32.xlu0 %v2464, 16
        %v3089 = vpop.permute.xlu0 %3088
        %3090 = vrot.lane.b32.xlu0 %v2469, 16
        %v3091 = vpop.permute.xlu0 %3090
        %3092 = vrot.lane.b32.xlu0 %v2474, 16
        %v3093 = vpop.permute.xlu0 %3092
        %3094 = vrot.lane.b32.xlu0 %v2479, 16
        %v3095 = vpop.permute.xlu0 %3094
        %3104 = vrot.lane.b32.xlu0 %v2565, 32
        %v3105 = vpop.permute.xlu0 %3104
        %3106 = vrot.lane.b32.xlu0 %v2570, 32
        %v3107 = vpop.permute.xlu0 %3106
        %3108 = vrot.lane.b32.xlu0 %v2575, 32
        %v3109 = vpop.permute.xlu0 %3108
        %3110 = vrot.lane.b32.xlu0 %v2580, 32
        %v3111 = vpop.permute.xlu0 %3110
        %3120 = vrot.lane.b32.xlu0 %v2666, 48
        %v3121 = vpop.permute.xlu0 %3120
        %3122 = vrot.lane.b32.xlu0 %v2671, 48
        %v3123 = vpop.permute.xlu0 %3122
        %3124 = vrot.lane.b32.xlu0 %v2676, 48
        %v3125 = vpop.permute.xlu0 %3124
        %3126 = vrot.lane.b32.xlu0 %v2681, 48
        %v3127 = vpop.permute.xlu0 %3126
        %3136 = vrot.lane.b32.xlu0 %v2763, 64
        %v3137 = vpop.permute.xlu0 %3136
        %3138 = vrot.lane.b32.xlu0 %v2768, 64
        %v3139 = vpop.permute.xlu0 %3138
        %3140 = vrot.lane.b32.xlu0 %v2773, 64
        %v3141 = vpop.permute.xlu0 %3140
        %3142 = vrot.lane.b32.xlu0 %v2778, 64
        %v3143 = vpop.permute.xlu0 %3142
        %3152 = vrot.lane.b32.xlu0 %v2864, 80
        %v3153 = vpop.permute.xlu0 %3152
        %3154 = vrot.lane.b32.xlu0 %v2869, 80
        %v3155 = vpop.permute.xlu0 %3154
        %3156 = vrot.lane.b32.xlu0 %v2874, 80
        %v3157 = vpop.permute.xlu0 %3156
        %3158 = vrot.lane.b32.xlu0 %v2879, 80
        %v3159 = vpop.permute.xlu0 %3158
        %3168 = vrot.lane.b32.xlu0 %v2965, 96
        %v3169 = vpop.permute.xlu0 %3168
        %3170 = vrot.lane.b32.xlu0 %v2970, 96
        %v3171 = vpop.permute.xlu0 %3170
        %3172 = vrot.lane.b32.xlu0 %v2975, 96
        %v3173 = vpop.permute.xlu0 %3172
        %3174 = vrot.lane.b32.xlu0 %v2980, 96
        %v3175 = vpop.permute.xlu0 %3174
        %3184 = vrot.lane.b32.xlu0 %v3066, 112
        %v3185 = vpop.permute.xlu0 %3184
        %3186 = vrot.lane.b32.xlu0 %v3071, 112
        %v3187 = vpop.permute.xlu0 %3186
        %3188 = vrot.lane.b32.xlu0 %v3076, 112
        %v3189 = vpop.permute.xlu0 %3188
        %3190 = vrot.lane.b32.xlu0 %v3081, 112
        %v3191 = vpop.permute.xlu0 %3190
        %vm3196 = vcmask 130048
        %v3197 = vsel %vm3196, %v2363, %v3089
        %v3198 = vsel %vm3196, %v2368, %v3091
        %v3199 = vsel %vm3196, %v2373, %v3093
        %v3200 = vsel %vm3196, %v2378, %v3095
        %v3201 = vsel %vm1805, %v3197, %v3105
        %v3202 = vsel %vm1805, %v3198, %v3107
        %v3203 = vsel %vm1805, %v3199, %v3109
        %v3204 = vsel %vm1805, %v3200, %v3111
        %vm3205 = vcmask 392192
        %v3206 = vsel %vm3205, %v3201, %v3121
        %v3207 = vsel %vm3205, %v3202, %v3123
        %v3208 = vsel %vm3205, %v3203, %v3125
        %v3209 = vsel %vm3205, %v3204, %v3127
        %v3210 = vsel %vm916, %v3206, %v3137
        %v3211 = vsel %vm916, %v3207, %v3139
        %v3212 = vsel %vm916, %v3208, %v3141
        %v3213 = vsel %vm916, %v3209, %v3143
        %vm3214 = vcmask 654336
        %v3215 = vsel %vm3214, %v3210, %v3153
        %v3216 = vsel %vm3214, %v3211, %v3155
        %v3217 = vsel %vm3214, %v3212, %v3157
        %v3218 = vsel %vm3214, %v3213, %v3159
        %v3219 = vsel %vm1814, %v3215, %v3169
        %v3220 = vsel %vm1814, %v3216, %v3171
        %v3221 = vsel %vm1814, %v3217, %v3173
        %v3222 = vsel %vm1814, %v3218, %v3175
        %vm3223 = vcmask 916480
        %v3224 = vsel %vm3223, %v3219, %v3185
        %v3225 = vsel %vm3223, %v3220, %v3187
        %v3226 = vsel %vm3223, %v3221, %v3189
        %v3227 = vsel %vm3223, %v3222, %v3191
        %3228 = vst [vmem:[%s352] sm:$0xff] %v3224
        %3229 = vst [vmem:[%s352 + $0x8] sm:$0xff] %v3225
        %3230 = vst [vmem:[%s352 + $0x10] sm:$0xff] %v3226
        %3231 = vst [vmem:[%s352 + $0x18] sm:$0xff] %v3227
        %s3232 = sand.u32 %s227, 1
        %s3233 = scalar_lea.sflag [#allocation4], %s3232
        %s3234 = sand.u32 %s227, 1
        %s3235 = smul.addr %s3234, 32
        %s3236 = scalar_lea.vmem [#allocation7], %s3235
        // Predicated region
        $region65: #{tpu_custom_call.1} parent=55 // pred_check
          %p3237 = pneg %p237
        $region66: #{tpu_custom_call.1} parent=55 // pred_check_branch
          %3239 = sbr.rel (%p3237) target = $region68
        $region67: #{tpu_custom_call.1} parent=55 // pred_region
          %s3241 = ssub.s32 512, 512
          %3242 = vsyncadd %s3233, %s3241
          %s3243 = smul.addr %s25, 128
          %s3244 = scalar_lea.hbm %s9, %s3243
          %s3245 = sshll.u32 %s3236, 4
          %s3246 = int_to_ptr.vmem [resolvable:$true] %s3245
          %3251 = dma.vmem_to_hbm [thread:$0]  %s3246, 512, %s3244, %s3233, 128, 256, 8
        $region68: #{tpu_custom_call.1} parent=55 // pred_fallthru
          _
      $region56: #{tpu_custom_call.1} parent=5 // pred_fallthru
        _
      %p3252 = scmp.le.s32.totalorder 2, %s20
      // Predicated region
      $region69: #{tpu_custom_call.1} parent=5 // pred_check
        %p3253 = pneg %p3252
      $region70: #{tpu_custom_call.1} parent=5 // pred_check_branch
        %3255 = sbr.rel (%p3253) target = $region72
      $region71: #{tpu_custom_call.1} parent=5 // pred_region
        %s3256 = ssub.s32 %s20, 2
        // Predicated region
        $region73: #{tpu_custom_call.1} parent=71 // pred_check
          %p3257 = pneg %p243
        $region74: #{tpu_custom_call.1} parent=71 // pred_check_branch
          %3259 = sbr.rel (%p3257) target = $region76
        $region75: #{tpu_custom_call.1} parent=71 // pred_region
          %s3260 = sand.u32 %s228, 1
          %s3261 = scalar_lea.sflag [#allocation4], %s3260
          %s3262 = sand.u32 %s228, 1
          %s3263 = smul.addr %s3262, 32
          %s3264 = scalar_lea.vmem [#allocation7], %s3263
          %3265 = dma.done %s3261, 512
        $region76: #{tpu_custom_call.1} parent=71 // pred_fallthru
          _
      $region72: #{tpu_custom_call.1} parent=5 // pred_fallthru
        _
    $region6: #{tpu_custom_call.1} parent=1 // loop_footer
      %s24 = sadd.s32 1, %s20
    $region7: #{tpu_custom_call.1} parent=1 // loop_footer_branch
      %19 = sbr.rel target = $region3
    $region8: #{tpu_custom_call.1} parent=1 // loop_exit
      _
    %3266 = vsyncpa [#allocation3], 1
    %s3267 = scalar_lea.sflag [#allocation3], 1
    %3268 = vsyncpa %s3267, 1
    %3269 = vsyncpa [#allocation6], 1
    %3270 = vsyncpa [#allocation4], 1
    %s3271 = scalar_lea.sflag [#allocation4], 1
    %3272 = vsyncpa %s3271, 1

</llo_original>
